<compile_context>
chip_gen: v7x
topology: tpu7x:2x2x1
jax: 0.10.0
libtpu: 0.0.40
codegen_flags: <defaults>
</compile_context>

<pallas_src>
import jax
import jax.numpy as jnp
from jax import lax
from jax.experimental import pallas as pl
from jax.experimental.pallas import tpu as pltpu


def _distill_kernel(depth_ref, sem_ref, w_depth_ref, w_sem_ref,
                    depth_out_ref, sem_out_ref):
    # block shapes: features (1, H, W, C) bf16, weights (3, 3, C, 2C) bf16
    _, H, W, C = depth_ref.shape
    HW = H * W

    depth = depth_ref[0].astype(jnp.float32)        # (H, W, C) f32
    sem = sem_ref[0].astype(jnp.float32)
    w_depth = w_depth_ref[...]                      # (3, 3, C, 2C) bf16
    w_sem = w_sem_ref[...]

    # 0/1 masks that zero the out-of-image column for the dx=0 / dx=2 taps
    # (hoisted: computed once, shared by both inputs and all dy).
    col = lax.broadcasted_iota(jnp.int32, (H, W, C), 1)
    mask_l = (col >= 1).astype(jnp.float32).reshape(HW, C)       # dx == 0
    mask_r = (col <= W - 2).astype(jnp.float32).reshape(HW, C)   # dx == 2

    def flat_hpad(x):
        # Pad 2 zero rows above/below (major-dim concat is cheap) and flatten.
        # A 3x3 tap (dy, dx) then becomes the contiguous row-slice starting at
        # (dy+1)*W + dx - 1; row wrap-around at image edges is fixed by mask_l/r.
        z = jnp.zeros((2, W, C), jnp.float32)
        return jnp.concatenate([z, x, z], axis=0).reshape((H + 4) * W, C)

    f_depth = flat_hpad(depth)
    f_sem = flat_hpad(sem)

    def conv_pair(flat, w):
        # 3x3 conv of one input against the fused (C, 2C) weight:
        # result[:, :C] is the "conv" branch, result[:, C:] the "attention" branch.
        acc = None
        for dy in range(3):
            for dx in range(3):
                start = (dy + 1) * W + dx - 1
                patch = flat[start:start + HW, :]
                if dx == 0:
                    patch = patch * mask_l
                elif dx == 2:
                    patch = patch * mask_r
                d = jnp.dot(patch.astype(jnp.bfloat16), w[dy, dx],
                            preferred_element_type=jnp.float32)
                acc = d if acc is None else acc + d
        return acc                                   # (HW, 2C) f32

    conv_sem = conv_pair(f_sem, w_sem)       # [:, :C]=conv_s2d(sem),   [:, C:]=attn_d2s(sem)
    conv_depth = conv_pair(f_depth, w_depth)  # [:, :C]=conv_d2s(depth), [:, C:]=attn_s2d(depth)

    # f32 epilogue: sigmoid gates, cross products, residual adds.
    s2d = conv_sem[:, :C] * jax.nn.sigmoid(conv_depth[:, C:])
    d2s = conv_depth[:, :C] * jax.nn.sigmoid(conv_sem[:, C:])

    depth_out_ref[0] = (depth + s2d.reshape(H, W, C)).astype(depth_out_ref.dtype)
    sem_out_ref[0] = (sem + d2s.reshape(H, W, C)).astype(sem_out_ref.dtype)


@jax.jit
def multi_task_distillation(depth_nchw, sem_nchw, params):
    """depth_nchw, sem_nchw: (B, C, H, W) float32. params: dict of HWIO (3,3,C,C) weights."""
    B, C, H, W = depth_nchw.shape

    # NCHW -> NHWC, cast to bf16 (fused under jit; halves input DMA bytes).
    depth = jnp.transpose(depth_nchw, (0, 2, 3, 1)).astype(jnp.bfloat16)
    sem = jnp.transpose(sem_nchw, (0, 2, 3, 1)).astype(jnp.bfloat16)

    # Fuse the two weights that consume the same input into one (3,3,C,2C) tensor:
    #   applied to depth: [conv_d2s | attn_s2d], applied to sem: [conv_s2d | attn_d2s]
    w_depth = jnp.concatenate([params["w_d2s_conv"], params["w_s2d_attn"]],
                              axis=-1).astype(jnp.bfloat16)
    w_sem = jnp.concatenate([params["w_s2d_conv"], params["w_d2s_attn"]],
                            axis=-1).astype(jnp.bfloat16)

    feat_spec = pl.BlockSpec((1, H, W, C), lambda b: (b, 0, 0, 0))
    w_spec = pl.BlockSpec((3, 3, C, 2 * C), lambda b: (0, 0, 0, 0))

    out_shape = (jax.ShapeDtypeStruct((B, H, W, C), jnp.float32),
                 jax.ShapeDtypeStruct((B, H, W, C), jnp.float32))

    # TODO(synk): for large BEV maps add a second grid axis of row tiles with a
    # 1-row manual-DMA halo so the working set fits v7x's 64 MiB VMEM and both
    # TensorCores / the DMA pipeline get more steps; at these shapes whole-image
    # blocks are far inside the VMEM budget.
    depth_new, sem_new = pl.pallas_call(
        _distill_kernel,
        out_shape=out_shape,
        grid_spec=pltpu.PrefetchScalarGridSpec(
            num_scalar_prefetch=0,
            grid=(B,),
            in_specs=[feat_spec, feat_spec, w_spec, w_spec],
            out_specs=[feat_spec, feat_spec],
        ),
        compiler_params=pltpu.CompilerParams(
            dimension_semantics=("parallel",)),
    )(depth, sem, w_depth, w_sem)

    # NHWC -> NCHW to match the PyTorch output convention.
    return (jnp.transpose(depth_new, (0, 3, 1, 2)),
            jnp.transpose(sem_new, (0, 3, 1, 2)))


def _reference(depth_nchw, sem_nchw, params):
    """Pure-JAX f32 reference using lax.conv_general_dilated (NCHW, OIHW)."""
    def conv(x, w_hwio):
        w_oihw = jnp.transpose(w_hwio, (3, 2, 0, 1))  # HWIO -> OIHW
        return lax.conv_general_dilated(
            x, w_oihw, window_strides=(1, 1), padding=((1, 1), (1, 1)),
            dimension_numbers=("NCHW", "OIHW", "NCHW"),
            precision=lax.Precision.HIGHEST)

    s2d = conv(sem_nchw, params["w_s2d_conv"]) * jax.nn.sigmoid(
        conv(depth_nchw, params["w_s2d_attn"]))
    d2s = conv(depth_nchw, params["w_d2s_conv"]) * jax.nn.sigmoid(
        conv(sem_nchw, params["w_d2s_attn"]))
    return depth_nchw + s2d, sem_nchw + d2s


def init_params(channels, key):
    """Deterministic synthetic weights; shapes match nn.Conv2d(C, C, 3, bias=False)."""
    keys = jax.random.split(key, 4)
    fan_in = channels * 3 * 3
    scale = (2.0 / fan_in) ** 0.5
    names = ["w_s2d_conv", "w_s2d_attn", "w_d2s_conv", "w_d2s_attn"]
    return {
        n: scale * jax.random.normal(k, (3, 3, channels, channels), jnp.float32)
        for n, k in zip(names, keys)
    }


if __name__ == "__main__":
    B, C, H, W = 2, 4, 16, 16
    key = jax.random.PRNGKey(0)
    k_depth, k_sem, k_params = jax.random.split(key, 3)

    depth = jax.random.normal(k_depth, (B, C, H, W), jnp.float32)
    sem = jax.random.normal(k_sem, (B, C, H, W), jnp.float32)
    params = init_params(C, k_params)

    depth_new, sem_new = multi_task_distillation(depth, sem, params)
    jax.block_until_ready(depth_new)
    jax.block_until_ready(sem_new)

    # The kernel feeds bf16 operands to the MXU (f32 accumulation / f32 epilogue),
    # so compare against an exact f32 reference evaluated on the same
    # bf16-rounded inputs and weights.
    rnd = lambda t: t.astype(jnp.bfloat16).astype(jnp.float32)
    params_r = {k: rnd(v) for k, v in params.items()}
    depth_ref, sem_ref = _reference(rnd(depth), rnd(sem), params_r)

    assert jnp.allclose(depth_new, depth_ref, atol=2e-3, rtol=2e-3), (
        float(jnp.max(jnp.abs(depth_new - depth_ref))))
    assert jnp.allclose(sem_new, sem_ref, atol=2e-3, rtol=2e-3), (
        float(jnp.max(jnp.abs(sem_new - sem_ref))))

    print("KERNEL_OK")
</pallas_src>

<mosaic_0001>
module attributes {stable_mosaic.version = 11 : i64} {
  func.func @_distill_kernel(%arg0: i32, %arg1: memref<1x16x16x4xbf16, #tpu.memory_space<vmem>>, %arg2: memref<1x16x16x4xbf16, #tpu.memory_space<vmem>>, %arg3: memref<3x3x4x8xbf16, #tpu.memory_space<vmem>>, %arg4: memref<3x3x4x8xbf16, #tpu.memory_space<vmem>>, %arg5: memref<1x16x16x4xf32, #tpu.memory_space<vmem>>, %arg6: memref<1x16x16x4xf32, #tpu.memory_space<vmem>>) attributes {dimension_semantics = [#tpu.dimension_semantics<parallel>], iteration_bounds = array<i64: 2>, scalar_prefetch = 0 : i64, scratch_operands = 0 : i64, tpu.core_type = #tpu.core_type<tc>, window_params = [{transform_indices = @transform_0, window_bounds = array<i64: 1, 16, 16, 4>}, {transform_indices = @transform_1, window_bounds = array<i64: 1, 16, 16, 4>}, {pipeline_mode = #tpu.pipeline_mode<synchronous>, transform_indices = @transform_2, window_bounds = array<i64: 3, 3, 4, 8>}, {pipeline_mode = #tpu.pipeline_mode<synchronous>, transform_indices = @transform_3, window_bounds = array<i64: 3, 3, 4, 8>}, {transform_indices = @transform_4, window_bounds = array<i64: 1, 16, 16, 4>}, {transform_indices = @transform_5, window_bounds = array<i64: 1, 16, 16, 4>}]} {
    %c0 = arith.constant 0 : index
    %c0_0 = arith.constant 0 : index
    %c0_1 = arith.constant 0 : index
    %c0_2 = arith.constant 0 : index
    %0 = vector.load %arg1[%c0, %c0_0, %c0_1, %c0_2] : memref<1x16x16x4xbf16, #tpu.memory_space<vmem>>, vector<1x16x16x4xbf16>
    %1 = vector.shape_cast %0 : vector<1x16x16x4xbf16> to vector<16x16x4xbf16>
    %2 = arith.extf %1 : vector<16x16x4xbf16> to vector<16x16x4xf32>
    %c0_3 = arith.constant 0 : index
    %c0_4 = arith.constant 0 : index
    %c0_5 = arith.constant 0 : index
    %c0_6 = arith.constant 0 : index
    %3 = vector.load %arg2[%c0_3, %c0_4, %c0_5, %c0_6] : memref<1x16x16x4xbf16, #tpu.memory_space<vmem>>, vector<1x16x16x4xbf16>
    %4 = vector.shape_cast %3 : vector<1x16x16x4xbf16> to vector<16x16x4xbf16>
    %5 = arith.extf %4 : vector<16x16x4xbf16> to vector<16x16x4xf32>
    %c0_7 = arith.constant 0 : index
    %c0_8 = arith.constant 0 : index
    %c0_9 = arith.constant 0 : index
    %c0_10 = arith.constant 0 : index
    %6 = vector.load %arg3[%c0_7, %c0_8, %c0_9, %c0_10] : memref<3x3x4x8xbf16, #tpu.memory_space<vmem>>, vector<3x3x4x8xbf16>
    %c0_11 = arith.constant 0 : index
    %c0_12 = arith.constant 0 : index
    %c0_13 = arith.constant 0 : index
    %c0_14 = arith.constant 0 : index
    %7 = vector.load %arg4[%c0_11, %c0_12, %c0_13, %c0_14] : memref<3x3x4x8xbf16, #tpu.memory_space<vmem>>, vector<3x3x4x8xbf16>
    %8 = tpu.iota {dimensions = array<i32: 1>} : vector<16x16x4xi32>
    %c1_i32 = arith.constant 1 : i32
    %9 = vector.broadcast %c1_i32 : i32 to vector<16x16x4xi32>
    %10 = arith.cmpi sge, %8, %9 : vector<16x16x4xi32>
    %11 = arith.extui %10 : vector<16x16x4xi1> to vector<16x16x4xi32>
    %12 = arith.sitofp %11 : vector<16x16x4xi32> to vector<16x16x4xf32>
    %13 = vector.shape_cast %12 : vector<16x16x4xf32> to vector<256x4xf32>
    %c14_i32 = arith.constant 14 : i32
    %14 = vector.broadcast %c14_i32 : i32 to vector<16x16x4xi32>
    %15 = arith.cmpi sle, %8, %14 : vector<16x16x4xi32>
    %16 = arith.extui %15 : vector<16x16x4xi1> to vector<16x16x4xi32>
    %17 = arith.sitofp %16 : vector<16x16x4xi32> to vector<16x16x4xf32>
    %18 = vector.shape_cast %17 : vector<16x16x4xf32> to vector<256x4xf32>
    %cst = arith.constant 0.000000e+00 : f32
    %19 = vector.broadcast %cst : f32 to vector<2x16x4xf32>
    %20 = tpu.concatenate %19, %2, %19 in 0 : vector<2x16x4xf32>, vector<16x16x4xf32>, vector<2x16x4xf32> -> vector<20x16x4xf32>
    %21 = vector.shape_cast %20 : vector<20x16x4xf32> to vector<320x4xf32>
    %cst_15 = arith.constant 0.000000e+00 : f32
    %22 = vector.broadcast %cst_15 : f32 to vector<2x16x4xf32>
    %23 = tpu.concatenate %22, %5, %22 in 0 : vector<2x16x4xf32>, vector<16x16x4xf32>, vector<2x16x4xf32> -> vector<20x16x4xf32>
    %24 = vector.shape_cast %23 : vector<20x16x4xf32> to vector<320x4xf32>
    %25 = vector.extract_strided_slice %24 {offsets = [15, 0], sizes = [256, 4], strides = [1, 1]} : vector<320x4xf32> to vector<256x4xf32>
    %26 = arith.mulf %25, %13 : vector<256x4xf32>
    %27 = arith.truncf %26 : vector<256x4xf32> to vector<256x4xbf16>
    %28 = vector.extract_strided_slice %7 {offsets = [0, 0, 0, 0], sizes = [1, 1, 4, 8], strides = [1, 1, 1, 1]} : vector<3x3x4x8xbf16> to vector<1x1x4x8xbf16>
    %29 = vector.shape_cast %28 : vector<1x1x4x8xbf16> to vector<4x8xbf16>
    %cst_16 = arith.constant dense<0.000000e+00> : vector<256x8xf32>
    %30 = tpu.matmul %27, %29, %cst_16 {dimension_numbers = #tpu.dot_dimension_numbers<[1], [0], [0], [1], [0, 0, 1, 1], [], []>} : vector<256x4xbf16>, vector<4x8xbf16>, vector<256x8xf32> -> vector<256x8xf32>
    %31 = vector.extract_strided_slice %24 {offsets = [16, 0], sizes = [256, 4], strides = [1, 1]} : vector<320x4xf32> to vector<256x4xf32>
    %32 = arith.truncf %31 : vector<256x4xf32> to vector<256x4xbf16>
    %33 = vector.extract_strided_slice %7 {offsets = [0, 1, 0, 0], sizes = [1, 1, 4, 8], strides = [1, 1, 1, 1]} : vector<3x3x4x8xbf16> to vector<1x1x4x8xbf16>
    %34 = vector.shape_cast %33 : vector<1x1x4x8xbf16> to vector<4x8xbf16>
    %cst_17 = arith.constant dense<0.000000e+00> : vector<256x8xf32>
    %35 = tpu.matmul %32, %34, %cst_17 {dimension_numbers = #tpu.dot_dimension_numbers<[1], [0], [0], [1], [0, 0, 1, 1], [], []>} : vector<256x4xbf16>, vector<4x8xbf16>, vector<256x8xf32> -> vector<256x8xf32>
    %36 = arith.addf %30, %35 : vector<256x8xf32>
    %37 = vector.extract_strided_slice %24 {offsets = [17, 0], sizes = [256, 4], strides = [1, 1]} : vector<320x4xf32> to vector<256x4xf32>
    %38 = arith.mulf %37, %18 : vector<256x4xf32>
    %39 = arith.truncf %38 : vector<256x4xf32> to vector<256x4xbf16>
    %40 = vector.extract_strided_slice %7 {offsets = [0, 2, 0, 0], sizes = [1, 1, 4, 8], strides = [1, 1, 1, 1]} : vector<3x3x4x8xbf16> to vector<1x1x4x8xbf16>
    %41 = vector.shape_cast %40 : vector<1x1x4x8xbf16> to vector<4x8xbf16>
    %cst_18 = arith.constant dense<0.000000e+00> : vector<256x8xf32>
    %42 = tpu.matmul %39, %41, %cst_18 {dimension_numbers = #tpu.dot_dimension_numbers<[1], [0], [0], [1], [0, 0, 1, 1], [], []>} : vector<256x4xbf16>, vector<4x8xbf16>, vector<256x8xf32> -> vector<256x8xf32>
    %43 = arith.addf %36, %42 : vector<256x8xf32>
    %44 = vector.extract_strided_slice %24 {offsets = [31, 0], sizes = [256, 4], strides = [1, 1]} : vector<320x4xf32> to vector<256x4xf32>
    %45 = arith.mulf %44, %13 : vector<256x4xf32>
    %46 = arith.truncf %45 : vector<256x4xf32> to vector<256x4xbf16>
    %47 = vector.extract_strided_slice %7 {offsets = [1, 0, 0, 0], sizes = [1, 1, 4, 8], strides = [1, 1, 1, 1]} : vector<3x3x4x8xbf16> to vector<1x1x4x8xbf16>
    %48 = vector.shape_cast %47 : vector<1x1x4x8xbf16> to vector<4x8xbf16>
    %cst_19 = arith.constant dense<0.000000e+00> : vector<256x8xf32>
    %49 = tpu.matmul %46, %48, %cst_19 {dimension_numbers = #tpu.dot_dimension_numbers<[1], [0], [0], [1], [0, 0, 1, 1], [], []>} : vector<256x4xbf16>, vector<4x8xbf16>, vector<256x8xf32> -> vector<256x8xf32>
    %50 = arith.addf %43, %49 : vector<256x8xf32>
    %51 = vector.extract_strided_slice %24 {offsets = [32, 0], sizes = [256, 4], strides = [1, 1]} : vector<320x4xf32> to vector<256x4xf32>
    %52 = arith.truncf %51 : vector<256x4xf32> to vector<256x4xbf16>
    %53 = vector.extract_strided_slice %7 {offsets = [1, 1, 0, 0], sizes = [1, 1, 4, 8], strides = [1, 1, 1, 1]} : vector<3x3x4x8xbf16> to vector<1x1x4x8xbf16>
    %54 = vector.shape_cast %53 : vector<1x1x4x8xbf16> to vector<4x8xbf16>
    %cst_20 = arith.constant dense<0.000000e+00> : vector<256x8xf32>
    %55 = tpu.matmul %52, %54, %cst_20 {dimension_numbers = #tpu.dot_dimension_numbers<[1], [0], [0], [1], [0, 0, 1, 1], [], []>} : vector<256x4xbf16>, vector<4x8xbf16>, vector<256x8xf32> -> vector<256x8xf32>
    %56 = arith.addf %50, %55 : vector<256x8xf32>
    %57 = vector.extract_strided_slice %24 {offsets = [33, 0], sizes = [256, 4], strides = [1, 1]} : vector<320x4xf32> to vector<256x4xf32>
    %58 = arith.mulf %57, %18 : vector<256x4xf32>
    %59 = arith.truncf %58 : vector<256x4xf32> to vector<256x4xbf16>
    %60 = vector.extract_strided_slice %7 {offsets = [1, 2, 0, 0], sizes = [1, 1, 4, 8], strides = [1, 1, 1, 1]} : vector<3x3x4x8xbf16> to vector<1x1x4x8xbf16>
    %61 = vector.shape_cast %60 : vector<1x1x4x8xbf16> to vector<4x8xbf16>
    %cst_21 = arith.constant dense<0.000000e+00> : vector<256x8xf32>
    %62 = tpu.matmul %59, %61, %cst_21 {dimension_numbers = #tpu.dot_dimension_numbers<[1], [0], [0], [1], [0, 0, 1, 1], [], []>} : vector<256x4xbf16>, vector<4x8xbf16>, vector<256x8xf32> -> vector<256x8xf32>
    %63 = arith.addf %56, %62 : vector<256x8xf32>
    %64 = vector.extract_strided_slice %24 {offsets = [47, 0], sizes = [256, 4], strides = [1, 1]} : vector<320x4xf32> to vector<256x4xf32>
    %65 = arith.mulf %64, %13 : vector<256x4xf32>
    %66 = arith.truncf %65 : vector<256x4xf32> to vector<256x4xbf16>
    %67 = vector.extract_strided_slice %7 {offsets = [2, 0, 0, 0], sizes = [1, 1, 4, 8], strides = [1, 1, 1, 1]} : vector<3x3x4x8xbf16> to vector<1x1x4x8xbf16>
    %68 = vector.shape_cast %67 : vector<1x1x4x8xbf16> to vector<4x8xbf16>
    %cst_22 = arith.constant dense<0.000000e+00> : vector<256x8xf32>
    %69 = tpu.matmul %66, %68, %cst_22 {dimension_numbers = #tpu.dot_dimension_numbers<[1], [0], [0], [1], [0, 0, 1, 1], [], []>} : vector<256x4xbf16>, vector<4x8xbf16>, vector<256x8xf32> -> vector<256x8xf32>
    %70 = arith.addf %63, %69 : vector<256x8xf32>
    %71 = vector.extract_strided_slice %24 {offsets = [48, 0], sizes = [256, 4], strides = [1, 1]} : vector<320x4xf32> to vector<256x4xf32>
    %72 = arith.truncf %71 : vector<256x4xf32> to vector<256x4xbf16>
    %73 = vector.extract_strided_slice %7 {offsets = [2, 1, 0, 0], sizes = [1, 1, 4, 8], strides = [1, 1, 1, 1]} : vector<3x3x4x8xbf16> to vector<1x1x4x8xbf16>
    %74 = vector.shape_cast %73 : vector<1x1x4x8xbf16> to vector<4x8xbf16>
    %cst_23 = arith.constant dense<0.000000e+00> : vector<256x8xf32>
    %75 = tpu.matmul %72, %74, %cst_23 {dimension_numbers = #tpu.dot_dimension_numbers<[1], [0], [0], [1], [0, 0, 1, 1], [], []>} : vector<256x4xbf16>, vector<4x8xbf16>, vector<256x8xf32> -> vector<256x8xf32>
    %76 = arith.addf %70, %75 : vector<256x8xf32>
    %77 = vector.extract_strided_slice %24 {offsets = [49, 0], sizes = [256, 4], strides = [1, 1]} : vector<320x4xf32> to vector<256x4xf32>
    %78 = arith.mulf %77, %18 : vector<256x4xf32>
    %79 = arith.truncf %78 : vector<256x4xf32> to vector<256x4xbf16>
    %80 = vector.extract_strided_slice %7 {offsets = [2, 2, 0, 0], sizes = [1, 1, 4, 8], strides = [1, 1, 1, 1]} : vector<3x3x4x8xbf16> to vector<1x1x4x8xbf16>
    %81 = vector.shape_cast %80 : vector<1x1x4x8xbf16> to vector<4x8xbf16>
    %cst_24 = arith.constant dense<0.000000e+00> : vector<256x8xf32>
    %82 = tpu.matmul %79, %81, %cst_24 {dimension_numbers = #tpu.dot_dimension_numbers<[1], [0], [0], [1], [0, 0, 1, 1], [], []>} : vector<256x4xbf16>, vector<4x8xbf16>, vector<256x8xf32> -> vector<256x8xf32>
    %83 = arith.addf %76, %82 : vector<256x8xf32>
    %84 = vector.extract_strided_slice %21 {offsets = [15, 0], sizes = [256, 4], strides = [1, 1]} : vector<320x4xf32> to vector<256x4xf32>
    %85 = arith.mulf %84, %13 : vector<256x4xf32>
    %86 = arith.truncf %85 : vector<256x4xf32> to vector<256x4xbf16>
    %87 = vector.extract_strided_slice %6 {offsets = [0, 0, 0, 0], sizes = [1, 1, 4, 8], strides = [1, 1, 1, 1]} : vector<3x3x4x8xbf16> to vector<1x1x4x8xbf16>
    %88 = vector.shape_cast %87 : vector<1x1x4x8xbf16> to vector<4x8xbf16>
    %cst_25 = arith.constant dense<0.000000e+00> : vector<256x8xf32>
    %89 = tpu.matmul %86, %88, %cst_25 {dimension_numbers = #tpu.dot_dimension_numbers<[1], [0], [0], [1], [0, 0, 1, 1], [], []>} : vector<256x4xbf16>, vector<4x8xbf16>, vector<256x8xf32> -> vector<256x8xf32>
    %90 = vector.extract_strided_slice %21 {offsets = [16, 0], sizes = [256, 4], strides = [1, 1]} : vector<320x4xf32> to vector<256x4xf32>
    %91 = arith.truncf %90 : vector<256x4xf32> to vector<256x4xbf16>
    %92 = vector.extract_strided_slice %6 {offsets = [0, 1, 0, 0], sizes = [1, 1, 4, 8], strides = [1, 1, 1, 1]} : vector<3x3x4x8xbf16> to vector<1x1x4x8xbf16>
    %93 = vector.shape_cast %92 : vector<1x1x4x8xbf16> to vector<4x8xbf16>
    %cst_26 = arith.constant dense<0.000000e+00> : vector<256x8xf32>
    %94 = tpu.matmul %91, %93, %cst_26 {dimension_numbers = #tpu.dot_dimension_numbers<[1], [0], [0], [1], [0, 0, 1, 1], [], []>} : vector<256x4xbf16>, vector<4x8xbf16>, vector<256x8xf32> -> vector<256x8xf32>
    %95 = arith.addf %89, %94 : vector<256x8xf32>
    %96 = vector.extract_strided_slice %21 {offsets = [17, 0], sizes = [256, 4], strides = [1, 1]} : vector<320x4xf32> to vector<256x4xf32>
    %97 = arith.mulf %96, %18 : vector<256x4xf32>
    %98 = arith.truncf %97 : vector<256x4xf32> to vector<256x4xbf16>
    %99 = vector.extract_strided_slice %6 {offsets = [0, 2, 0, 0], sizes = [1, 1, 4, 8], strides = [1, 1, 1, 1]} : vector<3x3x4x8xbf16> to vector<1x1x4x8xbf16>
    %100 = vector.shape_cast %99 : vector<1x1x4x8xbf16> to vector<4x8xbf16>
    %cst_27 = arith.constant dense<0.000000e+00> : vector<256x8xf32>
    %101 = tpu.matmul %98, %100, %cst_27 {dimension_numbers = #tpu.dot_dimension_numbers<[1], [0], [0], [1], [0, 0, 1, 1], [], []>} : vector<256x4xbf16>, vector<4x8xbf16>, vector<256x8xf32> -> vector<256x8xf32>
    %102 = arith.addf %95, %101 : vector<256x8xf32>
    %103 = vector.extract_strided_slice %21 {offsets = [31, 0], sizes = [256, 4], strides = [1, 1]} : vector<320x4xf32> to vector<256x4xf32>
    %104 = arith.mulf %103, %13 : vector<256x4xf32>
    %105 = arith.truncf %104 : vector<256x4xf32> to vector<256x4xbf16>
    %106 = vector.extract_strided_slice %6 {offsets = [1, 0, 0, 0], sizes = [1, 1, 4, 8], strides = [1, 1, 1, 1]} : vector<3x3x4x8xbf16> to vector<1x1x4x8xbf16>
    %107 = vector.shape_cast %106 : vector<1x1x4x8xbf16> to vector<4x8xbf16>
    %cst_28 = arith.constant dense<0.000000e+00> : vector<256x8xf32>
    %108 = tpu.matmul %105, %107, %cst_28 {dimension_numbers = #tpu.dot_dimension_numbers<[1], [0], [0], [1], [0, 0, 1, 1], [], []>} : vector<256x4xbf16>, vector<4x8xbf16>, vector<256x8xf32> -> vector<256x8xf32>
    %109 = arith.addf %102, %108 : vector<256x8xf32>
    %110 = vector.extract_strided_slice %21 {offsets = [32, 0], sizes = [256, 4], strides = [1, 1]} : vector<320x4xf32> to vector<256x4xf32>
    %111 = arith.truncf %110 : vector<256x4xf32> to vector<256x4xbf16>
    %112 = vector.extract_strided_slice %6 {offsets = [1, 1, 0, 0], sizes = [1, 1, 4, 8], strides = [1, 1, 1, 1]} : vector<3x3x4x8xbf16> to vector<1x1x4x8xbf16>
    %113 = vector.shape_cast %112 : vector<1x1x4x8xbf16> to vector<4x8xbf16>
    %cst_29 = arith.constant dense<0.000000e+00> : vector<256x8xf32>
    %114 = tpu.matmul %111, %113, %cst_29 {dimension_numbers = #tpu.dot_dimension_numbers<[1], [0], [0], [1], [0, 0, 1, 1], [], []>} : vector<256x4xbf16>, vector<4x8xbf16>, vector<256x8xf32> -> vector<256x8xf32>
    %115 = arith.addf %109, %114 : vector<256x8xf32>
    %116 = vector.extract_strided_slice %21 {offsets = [33, 0], sizes = [256, 4], strides = [1, 1]} : vector<320x4xf32> to vector<256x4xf32>
    %117 = arith.mulf %116, %18 : vector<256x4xf32>
    %118 = arith.truncf %117 : vector<256x4xf32> to vector<256x4xbf16>
    %119 = vector.extract_strided_slice %6 {offsets = [1, 2, 0, 0], sizes = [1, 1, 4, 8], strides = [1, 1, 1, 1]} : vector<3x3x4x8xbf16> to vector<1x1x4x8xbf16>
    %120 = vector.shape_cast %119 : vector<1x1x4x8xbf16> to vector<4x8xbf16>
    %cst_30 = arith.constant dense<0.000000e+00> : vector<256x8xf32>
    %121 = tpu.matmul %118, %120, %cst_30 {dimension_numbers = #tpu.dot_dimension_numbers<[1], [0], [0], [1], [0, 0, 1, 1], [], []>} : vector<256x4xbf16>, vector<4x8xbf16>, vector<256x8xf32> -> vector<256x8xf32>
    %122 = arith.addf %115, %121 : vector<256x8xf32>
    %123 = vector.extract_strided_slice %21 {offsets = [47, 0], sizes = [256, 4], strides = [1, 1]} : vector<320x4xf32> to vector<256x4xf32>
    %124 = arith.mulf %123, %13 : vector<256x4xf32>
    %125 = arith.truncf %124 : vector<256x4xf32> to vector<256x4xbf16>
    %126 = vector.extract_strided_slice %6 {offsets = [2, 0, 0, 0], sizes = [1, 1, 4, 8], strides = [1, 1, 1, 1]} : vector<3x3x4x8xbf16> to vector<1x1x4x8xbf16>
    %127 = vector.shape_cast %126 : vector<1x1x4x8xbf16> to vector<4x8xbf16>
    %cst_31 = arith.constant dense<0.000000e+00> : vector<256x8xf32>
    %128 = tpu.matmul %125, %127, %cst_31 {dimension_numbers = #tpu.dot_dimension_numbers<[1], [0], [0], [1], [0, 0, 1, 1], [], []>} : vector<256x4xbf16>, vector<4x8xbf16>, vector<256x8xf32> -> vector<256x8xf32>
    %129 = arith.addf %122, %128 : vector<256x8xf32>
    %130 = vector.extract_strided_slice %21 {offsets = [48, 0], sizes = [256, 4], strides = [1, 1]} : vector<320x4xf32> to vector<256x4xf32>
    %131 = arith.truncf %130 : vector<256x4xf32> to vector<256x4xbf16>
    %132 = vector.extract_strided_slice %6 {offsets = [2, 1, 0, 0], sizes = [1, 1, 4, 8], strides = [1, 1, 1, 1]} : vector<3x3x4x8xbf16> to vector<1x1x4x8xbf16>
    %133 = vector.shape_cast %132 : vector<1x1x4x8xbf16> to vector<4x8xbf16>
    %cst_32 = arith.constant dense<0.000000e+00> : vector<256x8xf32>
    %134 = tpu.matmul %131, %133, %cst_32 {dimension_numbers = #tpu.dot_dimension_numbers<[1], [0], [0], [1], [0, 0, 1, 1], [], []>} : vector<256x4xbf16>, vector<4x8xbf16>, vector<256x8xf32> -> vector<256x8xf32>
    %135 = arith.addf %129, %134 : vector<256x8xf32>
    %136 = vector.extract_strided_slice %21 {offsets = [49, 0], sizes = [256, 4], strides = [1, 1]} : vector<320x4xf32> to vector<256x4xf32>
    %137 = arith.mulf %136, %18 : vector<256x4xf32>
    %138 = arith.truncf %137 : vector<256x4xf32> to vector<256x4xbf16>
    %139 = vector.extract_strided_slice %6 {offsets = [2, 2, 0, 0], sizes = [1, 1, 4, 8], strides = [1, 1, 1, 1]} : vector<3x3x4x8xbf16> to vector<1x1x4x8xbf16>
    %140 = vector.shape_cast %139 : vector<1x1x4x8xbf16> to vector<4x8xbf16>
    %cst_33 = arith.constant dense<0.000000e+00> : vector<256x8xf32>
    %141 = tpu.matmul %138, %140, %cst_33 {dimension_numbers = #tpu.dot_dimension_numbers<[1], [0], [0], [1], [0, 0, 1, 1], [], []>} : vector<256x4xbf16>, vector<4x8xbf16>, vector<256x8xf32> -> vector<256x8xf32>
    %142 = arith.addf %135, %141 : vector<256x8xf32>
    %143 = vector.extract_strided_slice %83 {offsets = [0, 0], sizes = [256, 4], strides = [1, 1]} : vector<256x8xf32> to vector<256x4xf32>
    %144 = vector.extract_strided_slice %142 {offsets = [0, 4], sizes = [256, 4], strides = [1, 1]} : vector<256x8xf32> to vector<256x4xf32>
    %145 = arith.negf %144 : vector<256x4xf32>
    %146 = math.exp %145 : vector<256x4xf32>
    %cst_34 = arith.constant 1.000000e+00 : f32
    %147 = vector.broadcast %cst_34 : f32 to vector<256x4xf32>
    %148 = arith.addf %147, %146 : vector<256x4xf32>
    %149 = arith.divf %147, %148 : vector<256x4xf32>
    %150 = arith.mulf %143, %149 : vector<256x4xf32>
    %151 = vector.extract_strided_slice %142 {offsets = [0, 0], sizes = [256, 4], strides = [1, 1]} : vector<256x8xf32> to vector<256x4xf32>
    %152 = vector.extract_strided_slice %83 {offsets = [0, 4], sizes = [256, 4], strides = [1, 1]} : vector<256x8xf32> to vector<256x4xf32>
    %153 = arith.negf %152 : vector<256x4xf32>
    %154 = math.exp %153 : vector<256x4xf32>
    %cst_35 = arith.constant 1.000000e+00 : f32
    %155 = vector.broadcast %cst_35 : f32 to vector<256x4xf32>
    %156 = arith.addf %155, %154 : vector<256x4xf32>
    %157 = arith.divf %155, %156 : vector<256x4xf32>
    %158 = arith.mulf %151, %157 : vector<256x4xf32>
    %159 = vector.shape_cast %150 : vector<256x4xf32> to vector<16x16x4xf32>
    %160 = arith.addf %2, %159 : vector<16x16x4xf32>
    %c0_36 = arith.constant 0 : index
    %c0_37 = arith.constant 0 : index
    %c0_38 = arith.constant 0 : index
    %c0_39 = arith.constant 0 : index
    %161 = vector.load %arg5[%c0_36, %c0_37, %c0_38, %c0_39] : memref<1x16x16x4xf32, #tpu.memory_space<vmem>>, vector<1x16x16x4xf32>
    %162 = vector.shape_cast %161 : vector<1x16x16x4xf32> to vector<16x16x4xf32>
    %163 = vector.shape_cast %160 : vector<16x16x4xf32> to vector<1x16x16x4xf32>
    tpu.vector_store %arg5[%c0_36, %c0_37, %c0_38, %c0_39], %163 {strides = array<i32>} : memref<1x16x16x4xf32, #tpu.memory_space<vmem>>, vector<1x16x16x4xf32>,
    %164 = vector.shape_cast %158 : vector<256x4xf32> to vector<16x16x4xf32>
    %165 = arith.addf %5, %164 : vector<16x16x4xf32>
    %c0_40 = arith.constant 0 : index
    %c0_41 = arith.constant 0 : index
    %c0_42 = arith.constant 0 : index
    %c0_43 = arith.constant 0 : index
    %166 = vector.load %arg6[%c0_40, %c0_41, %c0_42, %c0_43] : memref<1x16x16x4xf32, #tpu.memory_space<vmem>>, vector<1x16x16x4xf32>
    %167 = vector.shape_cast %166 : vector<1x16x16x4xf32> to vector<16x16x4xf32>
    %168 = vector.shape_cast %165 : vector<16x16x4xf32> to vector<1x16x16x4xf32>
    tpu.vector_store %arg6[%c0_40, %c0_41, %c0_42, %c0_43], %168 {strides = array<i32>} : memref<1x16x16x4xf32, #tpu.memory_space<vmem>>, vector<1x16x16x4xf32>,
    return
  }
  func.func @transform_0(%arg0: i32) -> (i32, i32, i32, i32) {
    %c0_i32 = arith.constant 0 : i32
    %c0_i32_0 = arith.constant 0 : i32
    %c0_i32_1 = arith.constant 0 : i32
    %c0_i32_2 = arith.constant 0 : i32
    return %arg0, %c0_i32, %c0_i32_0, %c0_i32_1 : i32, i32, i32, i32
  }
  func.func @transform_1(%arg0: i32) -> (i32, i32, i32, i32) {
    %c0_i32 = arith.constant 0 : i32
    %c0_i32_0 = arith.constant 0 : i32
    %c0_i32_1 = arith.constant 0 : i32
    %c0_i32_2 = arith.constant 0 : i32
    return %arg0, %c0_i32, %c0_i32_0, %c0_i32_1 : i32, i32, i32, i32
  }
  func.func @transform_2(%arg0: i32) -> (i32, i32, i32, i32) {
    %c0_i32 = arith.constant 0 : i32
    %c0_i32_0 = arith.constant 0 : i32
    %c0_i32_1 = arith.constant 0 : i32
    %c0_i32_2 = arith.constant 0 : i32
    %c0_i32_3 = arith.constant 0 : i32
    return %c0_i32, %c0_i32_0, %c0_i32_1, %c0_i32_2 : i32, i32, i32, i32
  }
  func.func @transform_3(%arg0: i32) -> (i32, i32, i32, i32) {
    %c0_i32 = arith.constant 0 : i32
    %c0_i32_0 = arith.constant 0 : i32
    %c0_i32_1 = arith.constant 0 : i32
    %c0_i32_2 = arith.constant 0 : i32
    %c0_i32_3 = arith.constant 0 : i32
    return %c0_i32, %c0_i32_0, %c0_i32_1, %c0_i32_2 : i32, i32, i32, i32
  }
  func.func @transform_4(%arg0: i32) -> (i32, i32, i32, i32) {
    %c0_i32 = arith.constant 0 : i32
    %c0_i32_0 = arith.constant 0 : i32
    %c0_i32_1 = arith.constant 0 : i32
    %c0_i32_2 = arith.constant 0 : i32
    return %arg0, %c0_i32, %c0_i32_0, %c0_i32_1 : i32, i32, i32, i32
  }
  func.func @transform_5(%arg0: i32) -> (i32, i32, i32, i32) {
    %c0_i32 = arith.constant 0 : i32
    %c0_i32_0 = arith.constant 0 : i32
    %c0_i32_1 = arith.constant 0 : i32
    %c0_i32_2 = arith.constant 0 : i32
    return %arg0, %c0_i32, %c0_i32_0, %c0_i32_1 : i32, i32, i32, i32
  }
}

</mosaic_0001>

<llo_original>
// kernel: multi_task_distillation.1
$region0: #{multi_task_distillation.1}
  #allocation0 [shape = 'u32[]', space=smem, size = 0x4, offset = 0x4, fixed_abs, tag = 'smem constant byte address 0x4 - core index']
  #allocation1 [shape = 'u32[144,128]{1,0:T(1,128)}', space=vmem, size = 0x12000, scoped, tag = 'internal scratch']
  %s0 = inlined_call_operand.vmem [shape: bf16[2,16,16,4], index: 0, kind: input, shape index: {}]
  %s1 = inlined_call_operand.vmem [shape: bf16[2,16,16,4], index: 1, kind: input, shape index: {}]
  %s2 = inlined_call_operand.vmem [shape: bf16[3,3,4,8], index: 2, kind: input, shape index: {}]
  %s3 = inlined_call_operand.vmem [shape: bf16[3,3,4,8], index: 3, kind: input, shape index: {}]
  %s4 = inlined_call_operand.vmem [shape: f32[2,16,16,4], index: 4, kind: output, shape index: {0}]
  %s5 = inlined_call_operand.vmem [shape: f32[2,16,16,4], index: 5, kind: output, shape index: {1}]
  %6 = xla_tuple %s4, %s5
  %s7 = sld [smem:[#allocation0]]
  $region57: #{multi_task_distillation.1} parent=0
    _
  %s9 = ssub.s32 1, %s7
  %s10 = scalar_select 0, %s9, %s7
  loop: start=0, step=1, limit=4
  $region2: #{multi_task_distillation.1} parent=0 // loop_pre_header
    _
  $region3: #{multi_task_distillation.1} parent=0 // loop_header
    %s12 = sphi 0, %s16
    %p13 = scmp.ge.s32.totalorder %s12, 4
    %s22 = sphi 0, %s24
    %s25 = sphi 0, %s22
    %s26 = sphi 0, %s25
    %s42 = sphi 0, %s26
    %s48 = sphi 0, %s50
    %s51 = sphi 0, %s48
    %s52 = sphi 0, %s51
    %s68 = sphi 0, %s52
    %s72 = sphi 0, %s72
    %s74 = sphi 0, %s72
    %s75 = sphi 0, %s74
    %s89 = sphi 0, %s75
    %s93 = sphi 0, %s93
    %s95 = sphi 0, %s93
    %s96 = sphi 0, %s95
    %s110 = sphi 0, %s96
    %s116 = sphi 0, %s118
    %s119 = sphi 0, %s116
    %s120 = sphi 0, %s119
    %s136 = sphi 0, %s120
    %s142 = sphi 0, %s144
    %s145 = sphi 0, %s142
    %s146 = sphi 0, %s145
    %s162 = sphi 0, %s146
  $region4: #{multi_task_distillation.1} parent=0 // loop_header_branch
    %15 = sbr.rel (%p13) target = $region8
  $region5: #{multi_task_distillation.1} parent=0 // loop_body
    %s17 = ssub.s32 %s12, 1
    %s18 = ssub.s32 %s12, 2
    %s19 = sadd.s32 %s12, 1
    %s20 = ssub.s32 %s12, %s19
    %p21 = scmp.eq.s32.totalorder %s20, 0
    %s23 = sadd.s32 %s22, 1
    %s24 = scalar_select %p21, %s22, %s23
    %p27 = pneg %p21
    %p28 = scmp.eq.s32.totalorder %s12, 1
    %p29 = por %p27, %p28
    %p30 = scmp.ne.s32.totalorder %s22, %s25
    %p31 = scmp.eq.s32.totalorder %s12, 0
    %p32 = por %p30, %p31
    %p33 = scmp.ne.s32.totalorder %s22, %s25
    %p34 = scmp.eq.s32.totalorder %s17, 1
    %p35 = por %p33, %p34
    %p36 = scmp.ne.s32.totalorder %s25, %s26
    %p37 = scmp.eq.s32.totalorder %s17, 0
    %p38 = por %p36, %p37
    %p39 = scmp.ne.s32.totalorder %s25, %s26
    %p40 = scmp.eq.s32.totalorder %s18, 1
    %p41 = por %p39, %p40
    %p43 = scmp.ne.s32.totalorder %s26, %s42
    %p44 = scmp.eq.s32.totalorder %s18, 0
    %p45 = por %p43, %p44
    %s46 = ssub.s32 %s12, %s19
    %p47 = scmp.eq.s32.totalorder %s46, 0
    %s49 = sadd.s32 %s48, 1
    %s50 = scalar_select %p47, %s48, %s49
    %p53 = pneg %p47
    %p54 = scmp.eq.s32.totalorder %s12, 1
    %p55 = por %p53, %p54
    %p56 = scmp.ne.s32.totalorder %s48, %s51
    %p57 = scmp.eq.s32.totalorder %s12, 0
    %p58 = por %p56, %p57
    %p59 = scmp.ne.s32.totalorder %s48, %s51
    %p60 = scmp.eq.s32.totalorder %s17, 1
    %p61 = por %p59, %p60
    %p62 = scmp.ne.s32.totalorder %s51, %s52
    %p63 = scmp.eq.s32.totalorder %s17, 0
    %p64 = por %p62, %p63
    %p65 = scmp.ne.s32.totalorder %s51, %s52
    %p66 = scmp.eq.s32.totalorder %s18, 1
    %p67 = por %p65, %p66
    %p69 = scmp.ne.s32.totalorder %s52, %s68
    %p70 = scmp.eq.s32.totalorder %s18, 0
    %p71 = por %p69, %p70
    %s73 = sadd.s32 %s72, 1
    %p76 = scmp.eq.s32.totalorder %s12, 1
    %p77 = scmp.ne.s32.totalorder %s72, %s74
    %p78 = scmp.eq.s32.totalorder %s12, 0
    %p79 = por %p77, %p78
    %p80 = scmp.ne.s32.totalorder %s72, %s74
    %p81 = scmp.eq.s32.totalorder %s17, 1
    %p82 = por %p80, %p81
    %p83 = scmp.ne.s32.totalorder %s74, %s75
    %p84 = scmp.eq.s32.totalorder %s17, 0
    %p85 = por %p83, %p84
    %p86 = scmp.ne.s32.totalorder %s74, %s75
    %p87 = scmp.eq.s32.totalorder %s18, 1
    %p88 = por %p86, %p87
    %p90 = scmp.ne.s32.totalorder %s75, %s89
    %p91 = scmp.eq.s32.totalorder %s18, 0
    %p92 = por %p90, %p91
    %s94 = sadd.s32 %s93, 1
    %p97 = scmp.eq.s32.totalorder %s12, 1
    %p98 = scmp.ne.s32.totalorder %s93, %s95
    %p99 = scmp.eq.s32.totalorder %s12, 0
    %p100 = por %p98, %p99
    %p101 = scmp.ne.s32.totalorder %s93, %s95
    %p102 = scmp.eq.s32.totalorder %s17, 1
    %p103 = por %p101, %p102
    %p104 = scmp.ne.s32.totalorder %s95, %s96
    %p105 = scmp.eq.s32.totalorder %s17, 0
    %p106 = por %p104, %p105
    %p107 = scmp.ne.s32.totalorder %s95, %s96
    %p108 = scmp.eq.s32.totalorder %s18, 1
    %p109 = por %p107, %p108
    %p111 = scmp.ne.s32.totalorder %s96, %s110
    %p112 = scmp.eq.s32.totalorder %s18, 0
    %p113 = por %p111, %p112
    %s114 = ssub.s32 %s12, %s19
    %p115 = scmp.eq.s32.totalorder %s114, 0
    %s117 = sadd.s32 %s116, 1
    %s118 = scalar_select %p115, %s116, %s117
    %p121 = pneg %p115
    %p122 = scmp.eq.s32.totalorder %s12, 1
    %p123 = por %p121, %p122
    %p124 = scmp.ne.s32.totalorder %s116, %s119
    %p125 = scmp.eq.s32.totalorder %s12, 0
    %p126 = por %p124, %p125
    %p127 = scmp.ne.s32.totalorder %s116, %s119
    %p128 = scmp.eq.s32.totalorder %s17, 1
    %p129 = por %p127, %p128
    %p130 = scmp.ne.s32.totalorder %s119, %s120
    %p131 = scmp.eq.s32.totalorder %s17, 0
    %p132 = por %p130, %p131
    %p133 = scmp.ne.s32.totalorder %s119, %s120
    %p134 = scmp.eq.s32.totalorder %s18, 1
    %p135 = por %p133, %p134
    %p137 = scmp.ne.s32.totalorder %s120, %s136
    %p138 = scmp.eq.s32.totalorder %s18, 0
    %p139 = por %p137, %p138
    %s140 = ssub.s32 %s12, %s19
    %p141 = scmp.eq.s32.totalorder %s140, 0
    %s143 = sadd.s32 %s142, 1
    %s144 = scalar_select %p141, %s142, %s143
    %p147 = pneg %p141
    %p148 = scmp.eq.s32.totalorder %s12, 1
    %p149 = por %p147, %p148
    %p150 = scmp.ne.s32.totalorder %s142, %s145
    %p151 = scmp.eq.s32.totalorder %s12, 0
    %p152 = por %p150, %p151
    %p153 = scmp.ne.s32.totalorder %s142, %s145
    %p154 = scmp.eq.s32.totalorder %s17, 1
    %p155 = por %p153, %p154
    %p156 = scmp.ne.s32.totalorder %s145, %s146
    %p157 = scmp.eq.s32.totalorder %s17, 0
    %p158 = por %p156, %p157
    %p159 = scmp.ne.s32.totalorder %s145, %s146
    %p160 = scmp.eq.s32.totalorder %s18, 1
    %p161 = por %p159, %p160
    %p163 = scmp.ne.s32.totalorder %s146, %s162
    %p164 = scmp.eq.s32.totalorder %s18, 0
    %p165 = por %p163, %p164
    %p166 = scmp.le.s32.totalorder 1, %s12
    %p167 = scmp.lt.s32.totalorder %s12, 3
    %p168 = pnand %p166, %p167
    %p169 = pneg %p168
    // Predicated region
    $region9: #{multi_task_distillation.1} parent=5 // pred_check
      _
    $region10: #{multi_task_distillation.1} parent=5 // pred_check_branch
      %171 = sbr.rel (%p168) target = $region12
    $region11: #{multi_task_distillation.1} parent=5 // pred_region
      %s172 = ssub.s32 %s12, 1
      // Predicated region
      $region13: #{multi_task_distillation.1} parent=11 // pred_check
        %p173 = pneg %p85
      $region14: #{multi_task_distillation.1} parent=11 // pred_check_branch
        %175 = sbr.rel (%p173) target = $region16
      $region15: #{multi_task_distillation.1} parent=11 // pred_region
        _
      $region16: #{multi_task_distillation.1} parent=11 // pred_fallthru
        _
      // Predicated region
      $region17: #{multi_task_distillation.1} parent=11 // pred_check
        %p176 = pneg %p106
      $region18: #{multi_task_distillation.1} parent=11 // pred_check_branch
        %178 = sbr.rel (%p176) target = $region20
      $region19: #{multi_task_distillation.1} parent=11 // pred_region
        _
      $region20: #{multi_task_distillation.1} parent=11 // pred_fallthru
        _
    $region12: #{multi_task_distillation.1} parent=5 // pred_fallthru
      _
    %p179 = scmp.lt.s32.totalorder %s12, 2
    // Predicated region
    $region21: #{multi_task_distillation.1} parent=5 // pred_check
      %p180 = pneg %p179
    $region22: #{multi_task_distillation.1} parent=5 // pred_check_branch
      %182 = sbr.rel (%p180) target = $region24
    $region23: #{multi_task_distillation.1} parent=5 // pred_region
      // Predicated region
      $region25: #{multi_task_distillation.1} parent=23 // pred_check
        %p183 = pneg %p32
      $region26: #{multi_task_distillation.1} parent=23 // pred_check_branch
        %185 = sbr.rel (%p183) target = $region28
      $region27: #{multi_task_distillation.1} parent=23 // pred_region
        %p186 = scmp.lt.s32.totalorder %s12, 1
        %s187 = scalar_select %p186, %s12, 1
        %s188 = smul.addr %s187, 32
        %s189 = smul.addr %s188, 4
        %s190 = scalar_lea.vmem %s0, %s189
      $region28: #{multi_task_distillation.1} parent=23 // pred_fallthru
        _
      // Predicated region
      $region29: #{multi_task_distillation.1} parent=23 // pred_check
        %p191 = pneg %p58
      $region30: #{multi_task_distillation.1} parent=23 // pred_check_branch
        %193 = sbr.rel (%p191) target = $region32
      $region31: #{multi_task_distillation.1} parent=23 // pred_region
        %p194 = scmp.lt.s32.totalorder %s12, 1
        %s195 = scalar_select %p194, %s12, 1
        %s196 = smul.addr %s195, 32
        %s197 = smul.addr %s196, 4
        %s198 = scalar_lea.vmem %s1, %s197
      $region32: #{multi_task_distillation.1} parent=23 // pred_fallthru
        _
    $region24: #{multi_task_distillation.1} parent=5 // pred_fallthru
      _
    %p199 = scmp.le.s32.totalorder 1, %s12
    %p200 = scmp.lt.s32.totalorder %s12, 3
    %p201 = pnand %p199, %p200
    %p202 = pneg %p201
    // Predicated region
    $region33: #{multi_task_distillation.1} parent=5 // pred_check
      _
    $region34: #{multi_task_distillation.1} parent=5 // pred_check_branch
      %204 = sbr.rel (%p201) target = $region36
    $region35: #{multi_task_distillation.1} parent=5 // pred_region
      %s205 = ssub.s32 %s12, 1
      %p206 = scmp.lt.s32.totalorder %s17, 1
      %s207 = scalar_select %p206, %s17, 1
      %s208 = smul.addr %s207, 32
      %s209 = smul.addr %s208, 4
      %s210 = scalar_lea.vmem %s0, %s209
      %p211 = pneg %p38
      %p212 = pneg %p35
      %p213 = scmp.lt.s32.totalorder %s17, 1
      %s214 = scalar_select %p213, %s17, 1
      %s215 = smul.addr %s214, 32
      %s216 = smul.addr %s215, 4
      %s217 = scalar_lea.vmem %s1, %s216
      %p218 = pneg %p64
      %p219 = pneg %p61
      %p220 = pneg %p85
      %p221 = pneg %p82
      %p222 = pneg %p106
      %p223 = pneg %p103
      %p224 = pneg %p132
      %p225 = pneg %p129
      %p226 = scmp.lt.s32.totalorder %s17, 1
      %s227 = scalar_select %p226, %s17, 1
      %s228 = smul.addr %s227, 32
      %s229 = smul.addr %s228, 8
      %s230 = scalar_lea.vmem %s4, %s229
      %p231 = pneg %p158
      %p232 = pneg %p155
      %p233 = scmp.lt.s32.totalorder %s17, 1
      %s234 = scalar_select %p233, %s17, 1
      %s235 = smul.addr %s234, 32
      %s236 = smul.addr %s235, 8
      %s237 = scalar_lea.vmem %s5, %s236
      %p238 = scmp.lt.s32.totalorder %s17, 1
      %s239 = scalar_select %p238, %s17, 1
      %s240 = smul.addr %s239, 32
      %s241 = smul.addr %s240, 4
      %s242 = scalar_lea.vmem %s0, %s241
      %p243 = scmp.lt.s32.totalorder %s17, 1
      %s244 = scalar_select %p243, %s17, 1
      %s245 = smul.addr %s244, 32
      %s246 = smul.addr %s245, 4
      %s247 = scalar_lea.vmem %s1, %s246
      %p248 = scmp.lt.s32.totalorder %s17, 1
      %s249 = scalar_select %p248, %s17, 1
      %s250 = smul.addr %s249, 32
      %s251 = smul.addr %s250, 8
      %s252 = scalar_lea.vmem %s4, %s251
      %p253 = scmp.lt.s32.totalorder %s17, 1
      %s254 = scalar_select %p253, %s17, 1
      %s255 = smul.addr %s254, 32
      %s256 = smul.addr %s255, 8
      %s257 = scalar_lea.vmem %s5, %s256
      %v259 = vld [vmem:[%s242] sm:$0xf]
      %v260 = vld [vmem:[%s242 + $0x4] sm:$0xf]
      %v261 = vld [vmem:[%s242 + $0x8] sm:$0xf]
      %v262 = vld [vmem:[%s242 + $0xc] sm:$0xf]
      %v263 = vld [vmem:[%s242 + $0x10] sm:$0xf]
      %v264 = vld [vmem:[%s242 + $0x14] sm:$0xf]
      %v265 = vld [vmem:[%s242 + $0x18] sm:$0xf]
      %v266 = vld [vmem:[%s242 + $0x1c] sm:$0xf]
      %v267 = vld [vmem:[%s242 + $0x20] sm:$0xf]
      %v268 = vld [vmem:[%s242 + $0x24] sm:$0xf]
      %v269 = vld [vmem:[%s242 + $0x28] sm:$0xf]
      %v270 = vld [vmem:[%s242 + $0x2c] sm:$0xf]
      %v271 = vld [vmem:[%s242 + $0x30] sm:$0xf]
      %v272 = vld [vmem:[%s242 + $0x34] sm:$0xf]
      %v273 = vld [vmem:[%s242 + $0x38] sm:$0xf]
      %v274 = vld [vmem:[%s242 + $0x3c] sm:$0xf]
      %v275 = vld [vmem:[%s242 + $0x40] sm:$0xf]
      %v276 = vld [vmem:[%s242 + $0x44] sm:$0xf]
      %v277 = vld [vmem:[%s242 + $0x48] sm:$0xf]
      %v278 = vld [vmem:[%s242 + $0x4c] sm:$0xf]
      %v279 = vld [vmem:[%s242 + $0x50] sm:$0xf]
      %v280 = vld [vmem:[%s242 + $0x54] sm:$0xf]
      %v281 = vld [vmem:[%s242 + $0x58] sm:$0xf]
      %v282 = vld [vmem:[%s242 + $0x5c] sm:$0xf]
      %v283 = vld [vmem:[%s242 + $0x60] sm:$0xf]
      %v284 = vld [vmem:[%s242 + $0x64] sm:$0xf]
      %v285 = vld [vmem:[%s242 + $0x68] sm:$0xf]
      %v286 = vld [vmem:[%s242 + $0x6c] sm:$0xf]
      %v287 = vld [vmem:[%s242 + $0x70] sm:$0xf]
      %v288 = vld [vmem:[%s242 + $0x74] sm:$0xf]
      %v289 = vld [vmem:[%s242 + $0x78] sm:$0xf]
      %v290 = vld [vmem:[%s242 + $0x7c] sm:$0xf]
      %v291 = vunpack.c.l.bf16 %v259
      %v292 = vunpack.c.l.bf16 %v260
      %v293 = vunpack.c.l.bf16 %v261
      %v294 = vunpack.c.l.bf16 %v262
      %v295 = vunpack.c.l.bf16 %v263
      %v296 = vunpack.c.l.bf16 %v264
      %v297 = vunpack.c.l.bf16 %v265
      %v298 = vunpack.c.l.bf16 %v266
      %v299 = vunpack.c.l.bf16 %v267
      %v300 = vunpack.c.l.bf16 %v268
      %v301 = vunpack.c.l.bf16 %v269
      %v302 = vunpack.c.l.bf16 %v270
      %v303 = vunpack.c.l.bf16 %v271
      %v304 = vunpack.c.l.bf16 %v272
      %v305 = vunpack.c.l.bf16 %v273
      %v306 = vunpack.c.l.bf16 %v274
      %v307 = vunpack.c.l.bf16 %v275
      %v308 = vunpack.c.l.bf16 %v276
      %v309 = vunpack.c.l.bf16 %v277
      %v310 = vunpack.c.l.bf16 %v278
      %v311 = vunpack.c.l.bf16 %v279
      %v312 = vunpack.c.l.bf16 %v280
      %v313 = vunpack.c.l.bf16 %v281
      %v314 = vunpack.c.l.bf16 %v282
      %v315 = vunpack.c.l.bf16 %v283
      %v316 = vunpack.c.l.bf16 %v284
      %v317 = vunpack.c.l.bf16 %v285
      %v318 = vunpack.c.l.bf16 %v286
      %v319 = vunpack.c.l.bf16 %v287
      %v320 = vunpack.c.l.bf16 %v288
      %v321 = vunpack.c.l.bf16 %v289
      %v322 = vunpack.c.l.bf16 %v290
      %v323 = vld [vmem:[%s247] sm:$0xf]
      %v324 = vld [vmem:[%s247 + $0x4] sm:$0xf]
      %v325 = vld [vmem:[%s247 + $0x8] sm:$0xf]
      %v326 = vld [vmem:[%s247 + $0xc] sm:$0xf]
      %v327 = vld [vmem:[%s247 + $0x10] sm:$0xf]
      %v328 = vld [vmem:[%s247 + $0x14] sm:$0xf]
      %v329 = vld [vmem:[%s247 + $0x18] sm:$0xf]
      %v330 = vld [vmem:[%s247 + $0x1c] sm:$0xf]
      %v331 = vld [vmem:[%s247 + $0x20] sm:$0xf]
      %v332 = vld [vmem:[%s247 + $0x24] sm:$0xf]
      %v333 = vld [vmem:[%s247 + $0x28] sm:$0xf]
      %v334 = vld [vmem:[%s247 + $0x2c] sm:$0xf]
      %v335 = vld [vmem:[%s247 + $0x30] sm:$0xf]
      %v336 = vld [vmem:[%s247 + $0x34] sm:$0xf]
      %v337 = vld [vmem:[%s247 + $0x38] sm:$0xf]
      %v338 = vld [vmem:[%s247 + $0x3c] sm:$0xf]
      %v339 = vld [vmem:[%s247 + $0x40] sm:$0xf]
      %v340 = vld [vmem:[%s247 + $0x44] sm:$0xf]
      %v341 = vld [vmem:[%s247 + $0x48] sm:$0xf]
      %v342 = vld [vmem:[%s247 + $0x4c] sm:$0xf]
      %v343 = vld [vmem:[%s247 + $0x50] sm:$0xf]
      %v344 = vld [vmem:[%s247 + $0x54] sm:$0xf]
      %v345 = vld [vmem:[%s247 + $0x58] sm:$0xf]
      %v346 = vld [vmem:[%s247 + $0x5c] sm:$0xf]
      %v347 = vld [vmem:[%s247 + $0x60] sm:$0xf]
      %v348 = vld [vmem:[%s247 + $0x64] sm:$0xf]
      %v349 = vld [vmem:[%s247 + $0x68] sm:$0xf]
      %v350 = vld [vmem:[%s247 + $0x6c] sm:$0xf]
      %v351 = vld [vmem:[%s247 + $0x70] sm:$0xf]
      %v352 = vld [vmem:[%s247 + $0x74] sm:$0xf]
      %v353 = vld [vmem:[%s247 + $0x78] sm:$0xf]
      %v354 = vld [vmem:[%s247 + $0x7c] sm:$0xf]
      %v355 = vunpack.c.l.bf16 %v323
      %v356 = vunpack.c.l.bf16 %v324
      %v357 = vunpack.c.l.bf16 %v325
      %v358 = vunpack.c.l.bf16 %v326
      %v359 = vunpack.c.l.bf16 %v327
      %v360 = vunpack.c.l.bf16 %v328
      %v361 = vunpack.c.l.bf16 %v329
      %v362 = vunpack.c.l.bf16 %v330
      %v363 = vunpack.c.l.bf16 %v331
      %v364 = vunpack.c.l.bf16 %v332
      %v365 = vunpack.c.l.bf16 %v333
      %v366 = vunpack.c.l.bf16 %v334
      %v367 = vunpack.c.l.bf16 %v335
      %v368 = vunpack.c.l.bf16 %v336
      %v369 = vunpack.c.l.bf16 %v337
      %v370 = vunpack.c.l.bf16 %v338
      %v371 = vunpack.c.l.bf16 %v339
      %v372 = vunpack.c.l.bf16 %v340
      %v373 = vunpack.c.l.bf16 %v341
      %v374 = vunpack.c.l.bf16 %v342
      %v375 = vunpack.c.l.bf16 %v343
      %v376 = vunpack.c.l.bf16 %v344
      %v377 = vunpack.c.l.bf16 %v345
      %v378 = vunpack.c.l.bf16 %v346
      %v379 = vunpack.c.l.bf16 %v347
      %v380 = vunpack.c.l.bf16 %v348
      %v381 = vunpack.c.l.bf16 %v349
      %v382 = vunpack.c.l.bf16 %v350
      %v383 = vunpack.c.l.bf16 %v351
      %v384 = vunpack.c.l.bf16 %v352
      %v385 = vunpack.c.l.bf16 %v353
      %v386 = vunpack.c.l.bf16 %v354
      %v387 = vld [vmem:[%s2] sm:$0x3]
      %v388 = vld [vmem:[%s2 + $0x2] sm:$0x3]
      %v389 = vld [vmem:[%s2 + $0x4] sm:$0x3]
      %v390 = vld [vmem:[%s2 + $0x6] sm:$0x3]
      %v391 = vld [vmem:[%s2 + $0x8] sm:$0x3]
      %v392 = vld [vmem:[%s2 + $0xa] sm:$0x3]
      %v393 = vld [vmem:[%s2 + $0xc] sm:$0x3]
      %v394 = vld [vmem:[%s2 + $0xe] sm:$0x3]
      %v395 = vld [vmem:[%s2 + $0x10] sm:$0x3]
      %v396 = vld [vmem:[%s3] sm:$0x3]
      %v397 = vld [vmem:[%s3 + $0x2] sm:$0x3]
      %v398 = vld [vmem:[%s3 + $0x4] sm:$0x3]
      %v399 = vld [vmem:[%s3 + $0x6] sm:$0x3]
      %v400 = vld [vmem:[%s3 + $0x8] sm:$0x3]
      %v401 = vld [vmem:[%s3 + $0xa] sm:$0x3]
      %v402 = vld [vmem:[%s3 + $0xc] sm:$0x3]
      %v403 = vld [vmem:[%s3 + $0xe] sm:$0x3]
      %v404 = vld [vmem:[%s3 + $0x10] sm:$0x3]
      %v405 = vlaneseq
      %v406 = vshrl.u32 %v405, 7
      %v407 = vadd.s32 %v406, 8
      %vm408 = vcmp.ge.s32.totalorder %v406, 1
      %vm409 = vcmp.ge.s32.totalorder %v407, 1
      %v410 = vsel %vm408, 1, 0
      %v411 = vsel %vm409, 1, 0
      %v412 = vcvt.s32.f32 %v410
      %v413 = vcvt.s32.f32 %v411
      %vm414 = vcmp.le.s32.totalorder %v406, 14
      %vm415 = vcmp.le.s32.totalorder %v407, 14
      %v416 = vsel %vm414, 1, 0
      %v417 = vsel %vm415, 1, 0
      %v418 = vcvt.s32.f32 %v416
      %v419 = vcvt.s32.f32 %v417
      %vm422 = vcmask 1046528
      %v423 = vrot.slane %v412, 1
      %v424 = vrot.slane %v413, 1
      %v425 = vsel %vm422, %v423, %v424
      %v426 = vsel %vm422, %v424, %v423
      %v431 = vmul.f32 %v423, 0.0
      %v432 = vmul.f32 %v425, 0.0
      %v433 = vmul.f32 %v426, 0.0
      %v434 = vmul.f32 %v355, %v425
      %v435 = vmul.f32 %v356, %v426
      %v436 = vmul.f32 %v357, %v425
      %v437 = vmul.f32 %v358, %v426
      %v438 = vmul.f32 %v359, %v425
      %v439 = vmul.f32 %v360, %v426
      %v440 = vmul.f32 %v361, %v425
      %v441 = vmul.f32 %v362, %v426
      %v442 = vmul.f32 %v363, %v425
      %v443 = vmul.f32 %v364, %v426
      %v444 = vmul.f32 %v365, %v425
      %v445 = vmul.f32 %v366, %v426
      %v446 = vmul.f32 %v367, %v425
      %v447 = vmul.f32 %v368, %v426
      %v448 = vmul.f32 %v369, %v425
      %v449 = vmul.f32 %v370, %v426
      %v450 = vmul.f32 %v371, %v425
      %v451 = vmul.f32 %v372, %v426
      %v452 = vmul.f32 %v373, %v425
      %v453 = vmul.f32 %v374, %v426
      %v454 = vmul.f32 %v375, %v425
      %v455 = vmul.f32 %v376, %v426
      %v456 = vmul.f32 %v377, %v425
      %v457 = vmul.f32 %v378, %v426
      %v458 = vmul.f32 %v379, %v425
      %v459 = vmul.f32 %v380, %v426
      %v460 = vmul.f32 %v381, %v425
      %v461 = vmul.f32 %v382, %v426
      %v462 = vmul.f32 %v383, %v425
      %v463 = vmul.f32 %v384, %v424
      %v464 = vpack.c.bf16 %v432, %v431
      %v465 = vpack.c.bf16 %v434, %v433
      %v466 = vpack.c.bf16 %v436, %v435
      %v467 = vpack.c.bf16 %v438, %v437
      %v468 = vpack.c.bf16 %v440, %v439
      %v469 = vpack.c.bf16 %v442, %v441
      %v470 = vpack.c.bf16 %v444, %v443
      %v471 = vpack.c.bf16 %v446, %v445
      %v472 = vpack.c.bf16 %v448, %v447
      %v473 = vpack.c.bf16 %v450, %v449
      %v474 = vpack.c.bf16 %v452, %v451
      %v475 = vpack.c.bf16 %v454, %v453
      %v476 = vpack.c.bf16 %v456, %v455
      %v477 = vpack.c.bf16 %v458, %v457
      %v478 = vpack.c.bf16 %v460, %v459
      %v479 = vpack.c.bf16 %v462, %v461
      %v480 = vpack.c.bf16 %v463, %v463
      %v481 = vpack.c.bf16 0.0, 0.0
      %v482 = vpack.c.bf16 %v356, %v355
      %v483 = vpack.c.bf16 %v358, %v357
      %v484 = vpack.c.bf16 %v360, %v359
      %v485 = vpack.c.bf16 %v362, %v361
      %v486 = vpack.c.bf16 %v364, %v363
      %v487 = vpack.c.bf16 %v366, %v365
      %v488 = vpack.c.bf16 %v368, %v367
      %v489 = vpack.c.bf16 %v370, %v369
      %v490 = vpack.c.bf16 %v372, %v371
      %v491 = vpack.c.bf16 %v374, %v373
      %v492 = vpack.c.bf16 %v376, %v375
      %v493 = vpack.c.bf16 %v378, %v377
      %v494 = vpack.c.bf16 %v380, %v379
      %v495 = vpack.c.bf16 %v382, %v381
      %v496 = vpack.c.bf16 %v384, %v383
      %vm497 = vcmask 31744
      %v499 = vsel %vm497, %v481, 0
      %v502 = vsel %vm497, %v482, 0
      %v505 = vsel %vm497, %v483, 0
      %v508 = vsel %vm497, %v484, 0
      %v511 = vsel %vm497, %v485, 0
      %v514 = vsel %vm497, %v486, 0
      %v517 = vsel %vm497, %v487, 0
      %v520 = vsel %vm497, %v488, 0
      %v523 = vsel %vm497, %v489, 0
      %v526 = vsel %vm497, %v490, 0
      %v529 = vsel %vm497, %v491, 0
      %v532 = vsel %vm497, %v492, 0
      %v535 = vsel %vm497, %v493, 0
      %v538 = vsel %vm497, %v494, 0
      %v541 = vsel %vm497, %v495, 0
      %v544 = vsel %vm497, %v496, 0
      %vm546 = vcmask 1041408
      %v548 = vsel %vm546, %v397, 0
      %550 = vmatprep.subr.bf16.mxu0 0
      %551 = vmatpush1.bf16.msra.mxu0 %v548
      %552 = vmatprep.subr.bf16.mxu0 0
      %553 = vmatpush1.bf16.msra.mxu0 0
      %554 = vmatprep.subr.bf16.mxu0 0
      %555 = vmatpush1.bf16.msra.mxu0 0
      %556 = vmatprep.subr.bf16.mxu0 0
      %557 = vmatpush1.bf16.msra.mxu0 0
      %558 = vmatprep.subr.bf16.mxu0 0
      %559 = vmatpush1.bf16.msra.mxu0 0
      %560 = vmatprep.subr.bf16.mxu0 0
      %561 = vmatpush1.bf16.msra.mxu0 0
      %562 = vmatprep.subr.bf16.mxu0 0
      %563 = vmatpush1.bf16.msra.mxu0 0
      %564 = vmatprep.subr.bf16.mxu0 0
      %565 = vmatpush1.bf16.msra.mxu0 0
      %566 = vmatprep.subr.bf16.mxu0 0
      %567 = vmatpush1.bf16.msra.mxu0 0
      %568 = vmatprep.subr.bf16.mxu0 0
      %569 = vmatpush1.bf16.msra.mxu0 0
      %570 = vmatprep.subr.bf16.mxu0 0
      %571 = vmatpush1.bf16.msra.mxu0 0
      %572 = vmatprep.subr.bf16.mxu0 0
      %573 = vmatpush1.bf16.msra.mxu0 0
      %574 = vmatprep.subr.bf16.mxu0 0
      %575 = vmatpush1.bf16.msra.mxu0 0
      %576 = vmatprep.subr.bf16.mxu0 0
      %577 = vmatpush1.bf16.msra.mxu0 0
      %578 = vmatprep.subr.bf16.mxu0 0
      %579 = vmatpush1.bf16.msra.mxu0 0
      %580 = vmatprep.subr.bf16.mxu0 0
      %581 = vmatpush1.bf16.msra.mxu0 0
      %582 = vmatprep.mubr.bf16.mxu0 0
      %583 = vmatmul.mubr.bf16.gmra.mrb[0].mxu0 %v499
      %v584 = vpop.f32.mrb[0].mxu0
      %v585 = vadd.f32 0.0, %v584
      %v586 = vpop.f32.mrb[0].mxu0
      %v587 = vpop.f32.mrb[0].mxu0
      %v588 = vadd.f32 0.0, %v587
      %v589 = vpop.f32.mrb[0].mxu0
      %590 = vmatprep.mubr.bf16.mxu0 0
      %591 = vmatmul.mubr.bf16.gmra.mrb[0].mxu0 %v502
      %v592 = vpop.f32.mrb[0].mxu0
      %v593 = vadd.f32 0.0, %v592
      %v594 = vpop.f32.mrb[0].mxu0
      %v595 = vpop.f32.mrb[0].mxu0
      %v596 = vadd.f32 0.0, %v595
      %v597 = vpop.f32.mrb[0].mxu0
      %598 = vmatprep.mubr.bf16.mxu0 0
      %599 = vmatmul.mubr.bf16.gmra.mrb[0].mxu0 %v505
      %v600 = vpop.f32.mrb[0].mxu0
      %v601 = vadd.f32 0.0, %v600
      %v602 = vpop.f32.mrb[0].mxu0
      %v603 = vpop.f32.mrb[0].mxu0
      %v604 = vadd.f32 0.0, %v603
      %v605 = vpop.f32.mrb[0].mxu0
      %606 = vmatprep.mubr.bf16.mxu0 0
      %607 = vmatmul.mubr.bf16.gmra.mrb[0].mxu0 %v508
      %v608 = vpop.f32.mrb[0].mxu0
      %v609 = vadd.f32 0.0, %v608
      %v610 = vpop.f32.mrb[0].mxu0
      %v611 = vpop.f32.mrb[0].mxu0
      %v612 = vadd.f32 0.0, %v611
      %v613 = vpop.f32.mrb[0].mxu0
      %614 = vmatprep.mubr.bf16.mxu0 0
      %615 = vmatmul.mubr.bf16.gmra.mrb[0].mxu0 %v511
      %v616 = vpop.f32.mrb[0].mxu0
      %v617 = vadd.f32 0.0, %v616
      %v618 = vpop.f32.mrb[0].mxu0
      %v619 = vpop.f32.mrb[0].mxu0
      %v620 = vadd.f32 0.0, %v619
      %v621 = vpop.f32.mrb[0].mxu0
      %622 = vmatprep.mubr.bf16.mxu0 0
      %623 = vmatmul.mubr.bf16.gmra.mrb[0].mxu0 %v514
      %v624 = vpop.f32.mrb[0].mxu0
      %v625 = vadd.f32 0.0, %v624
      %v626 = vpop.f32.mrb[0].mxu0
      %v627 = vpop.f32.mrb[0].mxu0
      %v628 = vadd.f32 0.0, %v627
      %v629 = vpop.f32.mrb[0].mxu0
      %630 = vmatprep.mubr.bf16.mxu0 0
      %631 = vmatmul.mubr.bf16.gmra.mrb[0].mxu0 %v517
      %v632 = vpop.f32.mrb[0].mxu0
      %v633 = vadd.f32 0.0, %v632
      %v634 = vpop.f32.mrb[0].mxu0
      %v635 = vpop.f32.mrb[0].mxu0
      %v636 = vadd.f32 0.0, %v635
      %v637 = vpop.f32.mrb[0].mxu0
      %638 = vmatprep.mubr.bf16.mxu0 0
      %639 = vmatmul.mubr.bf16.gmra.mrb[0].mxu0 %v520
      %v640 = vpop.f32.mrb[0].mxu0
      %v641 = vadd.f32 0.0, %v640
      %v642 = vpop.f32.mrb[0].mxu0
      %v643 = vpop.f32.mrb[0].mxu0
      %v644 = vadd.f32 0.0, %v643
      %v645 = vpop.f32.mrb[0].mxu0
      %646 = vmatprep.mubr.bf16.mxu0 0
      %647 = vmatmul.mubr.bf16.gmra.mrb[0].mxu0 %v523
      %v648 = vpop.f32.mrb[0].mxu0
      %v649 = vadd.f32 0.0, %v648
      %v650 = vpop.f32.mrb[0].mxu0
      %v651 = vpop.f32.mrb[0].mxu0
      %v652 = vadd.f32 0.0, %v651
      %v653 = vpop.f32.mrb[0].mxu0
      %654 = vmatprep.mubr.bf16.mxu0 0
      %655 = vmatmul.mubr.bf16.gmra.mrb[0].mxu0 %v526
      %v656 = vpop.f32.mrb[0].mxu0
      %v657 = vadd.f32 0.0, %v656
      %v658 = vpop.f32.mrb[0].mxu0
      %v659 = vpop.f32.mrb[0].mxu0
      %v660 = vadd.f32 0.0, %v659
      %v661 = vpop.f32.mrb[0].mxu0
      %662 = vmatprep.mubr.bf16.mxu0 0
      %663 = vmatmul.mubr.bf16.gmra.mrb[0].mxu0 %v529
      %v664 = vpop.f32.mrb[0].mxu0
      %v665 = vadd.f32 0.0, %v664
      %v666 = vpop.f32.mrb[0].mxu0
      %v667 = vpop.f32.mrb[0].mxu0
      %v668 = vadd.f32 0.0, %v667
      %v669 = vpop.f32.mrb[0].mxu0
      %670 = vmatprep.mubr.bf16.mxu0 0
      %671 = vmatmul.mubr.bf16.gmra.mrb[0].mxu0 %v532
      %v672 = vpop.f32.mrb[0].mxu0
      %v673 = vadd.f32 0.0, %v672
      %v674 = vpop.f32.mrb[0].mxu0
      %v675 = vpop.f32.mrb[0].mxu0
      %v676 = vadd.f32 0.0, %v675
      %v677 = vpop.f32.mrb[0].mxu0
      %678 = vmatprep.mubr.bf16.mxu0 0
      %679 = vmatmul.mubr.bf16.gmra.mrb[0].mxu0 %v535
      %v680 = vpop.f32.mrb[0].mxu0
      %v681 = vadd.f32 0.0, %v680
      %v682 = vpop.f32.mrb[0].mxu0
      %v683 = vpop.f32.mrb[0].mxu0
      %v684 = vadd.f32 0.0, %v683
      %v685 = vpop.f32.mrb[0].mxu0
      %686 = vmatprep.mubr.bf16.mxu0 0
      %687 = vmatmul.mubr.bf16.gmra.mrb[0].mxu0 %v538
      %v688 = vpop.f32.mrb[0].mxu0
      %v689 = vadd.f32 0.0, %v688
      %v690 = vpop.f32.mrb[0].mxu0
      %v691 = vpop.f32.mrb[0].mxu0
      %v692 = vadd.f32 0.0, %v691
      %v693 = vpop.f32.mrb[0].mxu0
      %694 = vmatprep.mubr.bf16.mxu0 0
      %695 = vmatmul.mubr.bf16.gmra.mrb[0].mxu0 %v541
      %v696 = vpop.f32.mrb[0].mxu0
      %v697 = vadd.f32 0.0, %v696
      %v698 = vpop.f32.mrb[0].mxu0
      %v699 = vpop.f32.mrb[0].mxu0
      %v700 = vadd.f32 0.0, %v699
      %v701 = vpop.f32.mrb[0].mxu0
      %702 = vmatprep.mubr.bf16.mxu0 0
      %703 = vmatmul.mubr.bf16.gmra.mrb[0].mxu0 %v544
      %v704 = vpop.f32.mrb[0].mxu0
      %v705 = vadd.f32 0.0, %v704
      %v706 = vpop.f32.mrb[0].mxu0
      %v707 = vpop.f32.mrb[0].mxu0
      %v708 = vadd.f32 0.0, %v707
      %v709 = vpop.f32.mrb[0].mxu0
      %710 = vdwg.mxu0
      %vm711 = vsmask.f32 4352
      %v713 = vshrl.u32 %v464, 16
      %v715 = vrot.slane %v713, 3
      %v716 = vshll.u32 %v464, 16
      %v718 = vrot.slane %v716, 4
      %v719 = vor.u32 %v715, %v718
      %v721 = vshrl.u32 %v465, 16
      %v723 = vrot.slane %v721, 3
      %v724 = vshll.u32 %v465, 16
      %v726 = vrot.slane %v724, 4
      %v727 = vor.u32 %v723, %v726
      %v728 = vsel %vm711, %v719, %v727
      %v730 = vshrl.u32 %v466, 16
      %v732 = vrot.slane %v730, 3
      %v733 = vshll.u32 %v466, 16
      %v735 = vrot.slane %v733, 4
      %v736 = vor.u32 %v732, %v735
      %v737 = vsel %vm711, %v727, %v736
      %v739 = vshrl.u32 %v467, 16
      %v741 = vrot.slane %v739, 3
      %v742 = vshll.u32 %v467, 16
      %v744 = vrot.slane %v742, 4
      %v745 = vor.u32 %v741, %v744
      %v746 = vsel %vm711, %v736, %v745
      %v748 = vshrl.u32 %v468, 16
      %v750 = vrot.slane %v748, 3
      %v751 = vshll.u32 %v468, 16
      %v753 = vrot.slane %v751, 4
      %v754 = vor.u32 %v750, %v753
      %v755 = vsel %vm711, %v745, %v754
      %v757 = vshrl.u32 %v469, 16
      %v759 = vrot.slane %v757, 3
      %v760 = vshll.u32 %v469, 16
      %v762 = vrot.slane %v760, 4
      %v763 = vor.u32 %v759, %v762
      %v764 = vsel %vm711, %v754, %v763
      %v766 = vshrl.u32 %v470, 16
      %v768 = vrot.slane %v766, 3
      %v769 = vshll.u32 %v470, 16
      %v771 = vrot.slane %v769, 4
      %v772 = vor.u32 %v768, %v771
      %v773 = vsel %vm711, %v763, %v772
      %v775 = vshrl.u32 %v471, 16
      %v777 = vrot.slane %v775, 3
      %v778 = vshll.u32 %v471, 16
      %v780 = vrot.slane %v778, 4
      %v781 = vor.u32 %v777, %v780
      %v782 = vsel %vm711, %v772, %v781
      %v784 = vshrl.u32 %v472, 16
      %v786 = vrot.slane %v784, 3
      %v787 = vshll.u32 %v472, 16
      %v789 = vrot.slane %v787, 4
      %v790 = vor.u32 %v786, %v789
      %v791 = vsel %vm711, %v781, %v790
      %v793 = vshrl.u32 %v473, 16
      %v795 = vrot.slane %v793, 3
      %v796 = vshll.u32 %v473, 16
      %v798 = vrot.slane %v796, 4
      %v799 = vor.u32 %v795, %v798
      %v800 = vsel %vm711, %v790, %v799
      %v802 = vshrl.u32 %v474, 16
      %v804 = vrot.slane %v802, 3
      %v805 = vshll.u32 %v474, 16
      %v807 = vrot.slane %v805, 4
      %v808 = vor.u32 %v804, %v807
      %v809 = vsel %vm711, %v799, %v808
      %v811 = vshrl.u32 %v475, 16
      %v813 = vrot.slane %v811, 3
      %v814 = vshll.u32 %v475, 16
      %v816 = vrot.slane %v814, 4
      %v817 = vor.u32 %v813, %v816
      %v818 = vsel %vm711, %v808, %v817
      %v820 = vshrl.u32 %v476, 16
      %v822 = vrot.slane %v820, 3
      %v823 = vshll.u32 %v476, 16
      %v825 = vrot.slane %v823, 4
      %v826 = vor.u32 %v822, %v825
      %v827 = vsel %vm711, %v817, %v826
      %v829 = vshrl.u32 %v477, 16
      %v831 = vrot.slane %v829, 3
      %v832 = vshll.u32 %v477, 16
      %v834 = vrot.slane %v832, 4
      %v835 = vor.u32 %v831, %v834
      %v836 = vsel %vm711, %v826, %v835
      %v838 = vshrl.u32 %v478, 16
      %v840 = vrot.slane %v838, 3
      %v841 = vshll.u32 %v478, 16
      %v843 = vrot.slane %v841, 4
      %v844 = vor.u32 %v840, %v843
      %v845 = vsel %vm711, %v835, %v844
      %v847 = vshrl.u32 %v479, 16
      %v849 = vrot.slane %v847, 3
      %v850 = vshll.u32 %v479, 16
      %v852 = vrot.slane %v850, 4
      %v853 = vor.u32 %v849, %v852
      %v854 = vsel %vm711, %v844, %v853
      %v856 = vshrl.u32 %v480, 16
      %v858 = vrot.slane %v856, 3
      %v859 = vshll.u32 %v480, 16
      %v861 = vrot.slane %v859, 4
      %v862 = vor.u32 %v858, %v861
      %v863 = vsel %vm711, %v853, %v862
      %v865 = vsel %vm497, %v728, 0
      %v868 = vsel %vm497, %v737, 0
      %v871 = vsel %vm497, %v746, 0
      %v874 = vsel %vm497, %v755, 0
      %v877 = vsel %vm497, %v764, 0
      %v880 = vsel %vm497, %v773, 0
      %v883 = vsel %vm497, %v782, 0
      %v886 = vsel %vm497, %v791, 0
      %v889 = vsel %vm497, %v800, 0
      %v892 = vsel %vm497, %v809, 0
      %v895 = vsel %vm497, %v818, 0
      %v898 = vsel %vm497, %v827, 0
      %v901 = vsel %vm497, %v836, 0
      %v904 = vsel %vm497, %v845, 0
      %v907 = vsel %vm497, %v854, 0
      %v910 = vsel %vm497, %v863, 0
      %v913 = vsel %vm546, %v396, 0
      %915 = vmatprep.subr.bf16.mxu0 0
      %916 = vmatpush1.bf16.msra.mxu0 %v913
      %917 = vmatprep.subr.bf16.mxu0 0
      %918 = vmatpush1.bf16.msra.mxu0 0
      %919 = vmatprep.subr.bf16.mxu0 0
      %920 = vmatpush1.bf16.msra.mxu0 0
      %921 = vmatprep.subr.bf16.mxu0 0
      %922 = vmatpush1.bf16.msra.mxu0 0
      %923 = vmatprep.subr.bf16.mxu0 0
      %924 = vmatpush1.bf16.msra.mxu0 0
      %925 = vmatprep.subr.bf16.mxu0 0
      %926 = vmatpush1.bf16.msra.mxu0 0
      %927 = vmatprep.subr.bf16.mxu0 0
      %928 = vmatpush1.bf16.msra.mxu0 0
      %929 = vmatprep.subr.bf16.mxu0 0
      %930 = vmatpush1.bf16.msra.mxu0 0
      %931 = vmatprep.subr.bf16.mxu0 0
      %932 = vmatpush1.bf16.msra.mxu0 0
      %933 = vmatprep.subr.bf16.mxu0 0
      %934 = vmatpush1.bf16.msra.mxu0 0
      %935 = vmatprep.subr.bf16.mxu0 0
      %936 = vmatpush1.bf16.msra.mxu0 0
      %937 = vmatprep.subr.bf16.mxu0 0
      %938 = vmatpush1.bf16.msra.mxu0 0
      %939 = vmatprep.subr.bf16.mxu0 0
      %940 = vmatpush1.bf16.msra.mxu0 0
      %941 = vmatprep.subr.bf16.mxu0 0
      %942 = vmatpush1.bf16.msra.mxu0 0
      %943 = vmatprep.subr.bf16.mxu0 0
      %944 = vmatpush1.bf16.msra.mxu0 0
      %945 = vmatprep.subr.bf16.mxu0 0
      %946 = vmatpush1.bf16.msra.mxu0 0
      %947 = vmatprep.mubr.bf16.mxu0 0
      %948 = vmatmul.mubr.bf16.gmra.mrb[0].mxu0 %v865
      %v949 = vpop.f32.mrb[0].mxu0
      %v950 = vadd.f32 %v585, %v949
      %v951 = vpop.f32.mrb[0].mxu0
      %v952 = vpop.f32.mrb[0].mxu0
      %v953 = vadd.f32 %v588, %v952
      %v954 = vpop.f32.mrb[0].mxu0
      %955 = vmatprep.mubr.bf16.mxu0 0
      %956 = vmatmul.mubr.bf16.gmra.mrb[0].mxu0 %v868
      %v957 = vpop.f32.mrb[0].mxu0
      %v958 = vadd.f32 %v593, %v957
      %v959 = vpop.f32.mrb[0].mxu0
      %v960 = vpop.f32.mrb[0].mxu0
      %v961 = vadd.f32 %v596, %v960
      %v962 = vpop.f32.mrb[0].mxu0
      %963 = vmatprep.mubr.bf16.mxu0 0
      %964 = vmatmul.mubr.bf16.gmra.mrb[0].mxu0 %v871
      %v965 = vpop.f32.mrb[0].mxu0
      %v966 = vadd.f32 %v601, %v965
      %v967 = vpop.f32.mrb[0].mxu0
      %v968 = vpop.f32.mrb[0].mxu0
      %v969 = vadd.f32 %v604, %v968
      %v970 = vpop.f32.mrb[0].mxu0
      %971 = vmatprep.mubr.bf16.mxu0 0
      %972 = vmatmul.mubr.bf16.gmra.mrb[0].mxu0 %v874
      %v973 = vpop.f32.mrb[0].mxu0
      %v974 = vadd.f32 %v609, %v973
      %v975 = vpop.f32.mrb[0].mxu0
      %v976 = vpop.f32.mrb[0].mxu0
      %v977 = vadd.f32 %v612, %v976
      %v978 = vpop.f32.mrb[0].mxu0
      %979 = vmatprep.mubr.bf16.mxu0 0
      %980 = vmatmul.mubr.bf16.gmra.mrb[0].mxu0 %v877
      %v981 = vpop.f32.mrb[0].mxu0
      %v982 = vadd.f32 %v617, %v981
      %v983 = vpop.f32.mrb[0].mxu0
      %v984 = vpop.f32.mrb[0].mxu0
      %v985 = vadd.f32 %v620, %v984
      %v986 = vpop.f32.mrb[0].mxu0
      %987 = vmatprep.mubr.bf16.mxu0 0
      %988 = vmatmul.mubr.bf16.gmra.mrb[0].mxu0 %v880
      %v989 = vpop.f32.mrb[0].mxu0
      %v990 = vadd.f32 %v625, %v989
      %v991 = vpop.f32.mrb[0].mxu0
      %v992 = vpop.f32.mrb[0].mxu0
      %v993 = vadd.f32 %v628, %v992
      %v994 = vpop.f32.mrb[0].mxu0
      %995 = vmatprep.mubr.bf16.mxu0 0
      %996 = vmatmul.mubr.bf16.gmra.mrb[0].mxu0 %v883
      %v997 = vpop.f32.mrb[0].mxu0
      %v998 = vadd.f32 %v633, %v997
      %v999 = vpop.f32.mrb[0].mxu0
      %v1000 = vpop.f32.mrb[0].mxu0
      %v1001 = vadd.f32 %v636, %v1000
      %v1002 = vpop.f32.mrb[0].mxu0
      %1003 = vmatprep.mubr.bf16.mxu0 0
      %1004 = vmatmul.mubr.bf16.gmra.mrb[0].mxu0 %v886
      %v1005 = vpop.f32.mrb[0].mxu0
      %v1006 = vadd.f32 %v641, %v1005
      %v1007 = vpop.f32.mrb[0].mxu0
      %v1008 = vpop.f32.mrb[0].mxu0
      %v1009 = vadd.f32 %v644, %v1008
      %v1010 = vpop.f32.mrb[0].mxu0
      %1011 = vmatprep.mubr.bf16.mxu0 0
      %1012 = vmatmul.mubr.bf16.gmra.mrb[0].mxu0 %v889
      %v1013 = vpop.f32.mrb[0].mxu0
      %v1014 = vadd.f32 %v649, %v1013
      %v1015 = vpop.f32.mrb[0].mxu0
      %v1016 = vpop.f32.mrb[0].mxu0
      %v1017 = vadd.f32 %v652, %v1016
      %v1018 = vpop.f32.mrb[0].mxu0
      %1019 = vmatprep.mubr.bf16.mxu0 0
      %1020 = vmatmul.mubr.bf16.gmra.mrb[0].mxu0 %v892
      %v1021 = vpop.f32.mrb[0].mxu0
      %v1022 = vadd.f32 %v657, %v1021
      %v1023 = vpop.f32.mrb[0].mxu0
      %v1024 = vpop.f32.mrb[0].mxu0
      %v1025 = vadd.f32 %v660, %v1024
      %v1026 = vpop.f32.mrb[0].mxu0
      %1027 = vmatprep.mubr.bf16.mxu0 0
      %1028 = vmatmul.mubr.bf16.gmra.mrb[0].mxu0 %v895
      %v1029 = vpop.f32.mrb[0].mxu0
      %v1030 = vadd.f32 %v665, %v1029
      %v1031 = vpop.f32.mrb[0].mxu0
      %v1032 = vpop.f32.mrb[0].mxu0
      %v1033 = vadd.f32 %v668, %v1032
      %v1034 = vpop.f32.mrb[0].mxu0
      %1035 = vmatprep.mubr.bf16.mxu0 0
      %1036 = vmatmul.mubr.bf16.gmra.mrb[0].mxu0 %v898
      %v1037 = vpop.f32.mrb[0].mxu0
      %v1038 = vadd.f32 %v673, %v1037
      %v1039 = vpop.f32.mrb[0].mxu0
      %v1040 = vpop.f32.mrb[0].mxu0
      %v1041 = vadd.f32 %v676, %v1040
      %v1042 = vpop.f32.mrb[0].mxu0
      %1043 = vmatprep.mubr.bf16.mxu0 0
      %1044 = vmatmul.mubr.bf16.gmra.mrb[0].mxu0 %v901
      %v1045 = vpop.f32.mrb[0].mxu0
      %v1046 = vadd.f32 %v681, %v1045
      %v1047 = vpop.f32.mrb[0].mxu0
      %v1048 = vpop.f32.mrb[0].mxu0
      %v1049 = vadd.f32 %v684, %v1048
      %v1050 = vpop.f32.mrb[0].mxu0
      %1051 = vmatprep.mubr.bf16.mxu0 0
      %1052 = vmatmul.mubr.bf16.gmra.mrb[0].mxu0 %v904
      %v1053 = vpop.f32.mrb[0].mxu0
      %v1054 = vadd.f32 %v689, %v1053
      %v1055 = vpop.f32.mrb[0].mxu0
      %v1056 = vpop.f32.mrb[0].mxu0
      %v1057 = vadd.f32 %v692, %v1056
      %v1058 = vpop.f32.mrb[0].mxu0
      %1059 = vmatprep.mubr.bf16.mxu0 0
      %1060 = vmatmul.mubr.bf16.gmra.mrb[0].mxu0 %v907
      %v1061 = vpop.f32.mrb[0].mxu0
      %v1062 = vadd.f32 %v697, %v1061
      %v1063 = vpop.f32.mrb[0].mxu0
      %v1064 = vpop.f32.mrb[0].mxu0
      %v1065 = vadd.f32 %v700, %v1064
      %v1066 = vpop.f32.mrb[0].mxu0
      %1067 = vmatprep.mubr.bf16.mxu0 0
      %1068 = vmatmul.mubr.bf16.gmra.mrb[0].mxu0 %v910
      %v1069 = vpop.f32.mrb[0].mxu0
      %v1070 = vadd.f32 %v705, %v1069
      %v1071 = vpop.f32.mrb[0].mxu0
      %v1072 = vpop.f32.mrb[0].mxu0
      %v1073 = vadd.f32 %v708, %v1072
      %v1074 = vpop.f32.mrb[0].mxu0
      %1075 = vdwg.mxu0
      %vm1078 = vcmask 1040384
      %v1079 = vrot.slane %v418, 7
      %v1080 = vrot.slane %v419, 7
      %v1081 = vsel %vm1078, %v1079, %v1080
      %v1082 = vsel %vm1078, %v1080, %v1079
      %v1087 = vmul.f32 %v1079, 0.0
      %v1088 = vmul.f32 %v1081, 0.0
      %v1089 = vmul.f32 %v355, %v1082
      %v1090 = vmul.f32 %v356, %v1081
      %v1091 = vmul.f32 %v357, %v1082
      %v1092 = vmul.f32 %v358, %v1081
      %v1093 = vmul.f32 %v359, %v1082
      %v1094 = vmul.f32 %v360, %v1081
      %v1095 = vmul.f32 %v361, %v1082
      %v1096 = vmul.f32 %v362, %v1081
      %v1097 = vmul.f32 %v363, %v1082
      %v1098 = vmul.f32 %v364, %v1081
      %v1099 = vmul.f32 %v365, %v1082
      %v1100 = vmul.f32 %v366, %v1081
      %v1101 = vmul.f32 %v367, %v1082
      %v1102 = vmul.f32 %v368, %v1081
      %v1103 = vmul.f32 %v369, %v1082
      %v1104 = vmul.f32 %v370, %v1081
      %v1105 = vmul.f32 %v371, %v1082
      %v1106 = vmul.f32 %v372, %v1081
      %v1107 = vmul.f32 %v373, %v1082
      %v1108 = vmul.f32 %v374, %v1081
      %v1109 = vmul.f32 %v375, %v1082
      %v1110 = vmul.f32 %v376, %v1081
      %v1111 = vmul.f32 %v377, %v1082
      %v1112 = vmul.f32 %v378, %v1081
      %v1113 = vmul.f32 %v379, %v1082
      %v1114 = vmul.f32 %v380, %v1081
      %v1115 = vmul.f32 %v381, %v1082
      %v1116 = vmul.f32 %v382, %v1081
      %v1117 = vmul.f32 %v383, %v1082
      %v1118 = vmul.f32 %v384, %v1081
      %v1119 = vmul.f32 %v385, %v1080
      %v1120 = vpack.c.bf16 %v1088, %v1087
      %v1121 = vpack.c.bf16 %v1090, %v1089
      %v1122 = vpack.c.bf16 %v1092, %v1091
      %v1123 = vpack.c.bf16 %v1094, %v1093
      %v1124 = vpack.c.bf16 %v1096, %v1095
      %v1125 = vpack.c.bf16 %v1098, %v1097
      %v1126 = vpack.c.bf16 %v1100, %v1099
      %v1127 = vpack.c.bf16 %v1102, %v1101
      %v1128 = vpack.c.bf16 %v1104, %v1103
      %v1129 = vpack.c.bf16 %v1106, %v1105
      %v1130 = vpack.c.bf16 %v1108, %v1107
      %v1131 = vpack.c.bf16 %v1110, %v1109
      %v1132 = vpack.c.bf16 %v1112, %v1111
      %v1133 = vpack.c.bf16 %v1114, %v1113
      %v1134 = vpack.c.bf16 %v1116, %v1115
      %v1135 = vpack.c.bf16 %v1118, %v1117
      %v1136 = vpack.c.bf16 %v1119, %v1119
      %vm1137 = vsmask.f32 7424
      %v1139 = vshrl.u32 %v1120, 16
      %v1141 = vshll.u32 %v1120, 16
      %v1143 = vrot.slane %v1141, 1
      %v1144 = vor.u32 %v1139, %v1143
      %v1146 = vshll.u32 %v1121, 16
      %v1148 = vrot.slane %v1146, 1
      %v1149 = vsel %vm1137, %v1144, %v1148
      %v1150 = vshrl.u32 %v1121, 16
      %v1152 = vor.u32 %v1150, %v1148
      %v1154 = vshll.u32 %v1122, 16
      %v1156 = vrot.slane %v1154, 1
      %v1157 = vsel %vm1137, %v1152, %v1156
      %v1158 = vshrl.u32 %v1122, 16
      %v1160 = vor.u32 %v1158, %v1156
      %v1162 = vshll.u32 %v1123, 16
      %v1164 = vrot.slane %v1162, 1
      %v1165 = vsel %vm1137, %v1160, %v1164
      %v1166 = vshrl.u32 %v1123, 16
      %v1168 = vor.u32 %v1166, %v1164
      %v1170 = vshll.u32 %v1124, 16
      %v1172 = vrot.slane %v1170, 1
      %v1173 = vsel %vm1137, %v1168, %v1172
      %v1174 = vshrl.u32 %v1124, 16
      %v1176 = vor.u32 %v1174, %v1172
      %v1178 = vshll.u32 %v1125, 16
      %v1180 = vrot.slane %v1178, 1
      %v1181 = vsel %vm1137, %v1176, %v1180
      %v1182 = vshrl.u32 %v1125, 16
      %v1184 = vor.u32 %v1182, %v1180
      %v1186 = vshll.u32 %v1126, 16
      %v1188 = vrot.slane %v1186, 1
      %v1189 = vsel %vm1137, %v1184, %v1188
      %v1190 = vshrl.u32 %v1126, 16
      %v1192 = vor.u32 %v1190, %v1188
      %v1194 = vshll.u32 %v1127, 16
      %v1196 = vrot.slane %v1194, 1
      %v1197 = vsel %vm1137, %v1192, %v1196
      %v1198 = vshrl.u32 %v1127, 16
      %v1200 = vor.u32 %v1198, %v1196
      %v1202 = vshll.u32 %v1128, 16
      %v1204 = vrot.slane %v1202, 1
      %v1205 = vsel %vm1137, %v1200, %v1204
      %v1206 = vshrl.u32 %v1128, 16
      %v1208 = vor.u32 %v1206, %v1204
      %v1210 = vshll.u32 %v1129, 16
      %v1212 = vrot.slane %v1210, 1
      %v1213 = vsel %vm1137, %v1208, %v1212
      %v1214 = vshrl.u32 %v1129, 16
      %v1216 = vor.u32 %v1214, %v1212
      %v1218 = vshll.u32 %v1130, 16
      %v1220 = vrot.slane %v1218, 1
      %v1221 = vsel %vm1137, %v1216, %v1220
      %v1222 = vshrl.u32 %v1130, 16
      %v1224 = vor.u32 %v1222, %v1220
      %v1226 = vshll.u32 %v1131, 16
      %v1228 = vrot.slane %v1226, 1
      %v1229 = vsel %vm1137, %v1224, %v1228
      %v1230 = vshrl.u32 %v1131, 16
      %v1232 = vor.u32 %v1230, %v1228
      %v1234 = vshll.u32 %v1132, 16
      %v1236 = vrot.slane %v1234, 1
      %v1237 = vsel %vm1137, %v1232, %v1236
      %v1238 = vshrl.u32 %v1132, 16
      %v1240 = vor.u32 %v1238, %v1236
      %v1242 = vshll.u32 %v1133, 16
      %v1244 = vrot.slane %v1242, 1
      %v1245 = vsel %vm1137, %v1240, %v1244
      %v1246 = vshrl.u32 %v1133, 16
      %v1248 = vor.u32 %v1246, %v1244
      %v1250 = vshll.u32 %v1134, 16
      %v1252 = vrot.slane %v1250, 1
      %v1253 = vsel %vm1137, %v1248, %v1252
      %v1254 = vshrl.u32 %v1134, 16
      %v1256 = vor.u32 %v1254, %v1252
      %v1258 = vshll.u32 %v1135, 16
      %v1260 = vrot.slane %v1258, 1
      %v1261 = vsel %vm1137, %v1256, %v1260
      %v1262 = vshrl.u32 %v1135, 16
      %v1264 = vor.u32 %v1262, %v1260
      %v1266 = vshll.u32 %v1136, 16
      %v1268 = vrot.slane %v1266, 1
      %v1269 = vsel %vm1137, %v1264, %v1268
      %v1271 = vsel %vm497, %v1149, 0
      %v1274 = vsel %vm497, %v1157, 0
      %v1277 = vsel %vm497, %v1165, 0
      %v1280 = vsel %vm497, %v1173, 0
      %v1283 = vsel %vm497, %v1181, 0
      %v1286 = vsel %vm497, %v1189, 0
      %v1289 = vsel %vm497, %v1197, 0
      %v1292 = vsel %vm497, %v1205, 0
      %v1295 = vsel %vm497, %v1213, 0
      %v1298 = vsel %vm497, %v1221, 0
      %v1301 = vsel %vm497, %v1229, 0
      %v1304 = vsel %vm497, %v1237, 0
      %v1307 = vsel %vm497, %v1245, 0
      %v1310 = vsel %vm497, %v1253, 0
      %v1313 = vsel %vm497, %v1261, 0
      %v1316 = vsel %vm497, %v1269, 0
      %v1319 = vsel %vm546, %v398, 0
      %1321 = vmatprep.subr.bf16.mxu0 0
      %1322 = vmatpush1.bf16.msra.mxu0 %v1319
      %1323 = vmatprep.subr.bf16.mxu0 0
      %1324 = vmatpush1.bf16.msra.mxu0 0
      %1325 = vmatprep.subr.bf16.mxu0 0
      %1326 = vmatpush1.bf16.msra.mxu0 0
      %1327 = vmatprep.subr.bf16.mxu0 0
      %1328 = vmatpush1.bf16.msra.mxu0 0
      %1329 = vmatprep.subr.bf16.mxu0 0
      %1330 = vmatpush1.bf16.msra.mxu0 0
      %1331 = vmatprep.subr.bf16.mxu0 0
      %1332 = vmatpush1.bf16.msra.mxu0 0
      %1333 = vmatprep.subr.bf16.mxu0 0
      %1334 = vmatpush1.bf16.msra.mxu0 0
      %1335 = vmatprep.subr.bf16.mxu0 0
      %1336 = vmatpush1.bf16.msra.mxu0 0
      %1337 = vmatprep.subr.bf16.mxu0 0
      %1338 = vmatpush1.bf16.msra.mxu0 0
      %1339 = vmatprep.subr.bf16.mxu0 0
      %1340 = vmatpush1.bf16.msra.mxu0 0
      %1341 = vmatprep.subr.bf16.mxu0 0
      %1342 = vmatpush1.bf16.msra.mxu0 0
      %1343 = vmatprep.subr.bf16.mxu0 0
      %1344 = vmatpush1.bf16.msra.mxu0 0
      %1345 = vmatprep.subr.bf16.mxu0 0
      %1346 = vmatpush1.bf16.msra.mxu0 0
      %1347 = vmatprep.subr.bf16.mxu0 0
      %1348 = vmatpush1.bf16.msra.mxu0 0
      %1349 = vmatprep.subr.bf16.mxu0 0
      %1350 = vmatpush1.bf16.msra.mxu0 0
      %1351 = vmatprep.subr.bf16.mxu0 0
      %1352 = vmatpush1.bf16.msra.mxu0 0
      %1353 = vmatprep.mubr.bf16.mxu0 0
      %1354 = vmatmul.mubr.bf16.gmra.mrb[0].mxu0 %v1271
      %v1355 = vpop.f32.mrb[0].mxu0
      %v1356 = vadd.f32 0.0, %v1355
      %v1357 = vpop.f32.mrb[0].mxu0
      %v1358 = vpop.f32.mrb[0].mxu0
      %v1359 = vadd.f32 0.0, %v1358
      %v1360 = vpop.f32.mrb[0].mxu0
      %1361 = vmatprep.mubr.bf16.mxu0 0
      %1362 = vmatmul.mubr.bf16.gmra.mrb[0].mxu0 %v1274
      %v1363 = vpop.f32.mrb[0].mxu0
      %v1364 = vadd.f32 0.0, %v1363
      %v1365 = vpop.f32.mrb[0].mxu0
      %v1366 = vpop.f32.mrb[0].mxu0
      %v1367 = vadd.f32 0.0, %v1366
      %v1368 = vpop.f32.mrb[0].mxu0
      %1369 = vmatprep.mubr.bf16.mxu0 0
      %1370 = vmatmul.mubr.bf16.gmra.mrb[0].mxu0 %v1277
      %v1371 = vpop.f32.mrb[0].mxu0
      %v1372 = vadd.f32 0.0, %v1371
      %v1373 = vpop.f32.mrb[0].mxu0
      %v1374 = vpop.f32.mrb[0].mxu0
      %v1375 = vadd.f32 0.0, %v1374
      %v1376 = vpop.f32.mrb[0].mxu0
      %1377 = vmatprep.mubr.bf16.mxu0 0
      %1378 = vmatmul.mubr.bf16.gmra.mrb[0].mxu0 %v1280
      %v1379 = vpop.f32.mrb[0].mxu0
      %v1380 = vadd.f32 0.0, %v1379
      %v1381 = vpop.f32.mrb[0].mxu0
      %v1382 = vpop.f32.mrb[0].mxu0
      %v1383 = vadd.f32 0.0, %v1382
      %v1384 = vpop.f32.mrb[0].mxu0
      %1385 = vmatprep.mubr.bf16.mxu0 0
      %1386 = vmatmul.mubr.bf16.gmra.mrb[0].mxu0 %v1283
      %v1387 = vpop.f32.mrb[0].mxu0
      %v1388 = vadd.f32 0.0, %v1387
      %v1389 = vpop.f32.mrb[0].mxu0
      %v1390 = vpop.f32.mrb[0].mxu0
      %v1391 = vadd.f32 0.0, %v1390
      %v1392 = vpop.f32.mrb[0].mxu0
      %1393 = vmatprep.mubr.bf16.mxu0 0
      %1394 = vmatmul.mubr.bf16.gmra.mrb[0].mxu0 %v1286
      %v1395 = vpop.f32.mrb[0].mxu0
      %v1396 = vadd.f32 0.0, %v1395
      %v1397 = vpop.f32.mrb[0].mxu0
      %v1398 = vpop.f32.mrb[0].mxu0
      %v1399 = vadd.f32 0.0, %v1398
      %v1400 = vpop.f32.mrb[0].mxu0
      %1401 = vmatprep.mubr.bf16.mxu0 0
      %1402 = vmatmul.mubr.bf16.gmra.mrb[0].mxu0 %v1289
      %v1403 = vpop.f32.mrb[0].mxu0
      %v1404 = vadd.f32 0.0, %v1403
      %v1405 = vpop.f32.mrb[0].mxu0
      %v1406 = vpop.f32.mrb[0].mxu0
      %v1407 = vadd.f32 0.0, %v1406
      %v1408 = vpop.f32.mrb[0].mxu0
      %1409 = vmatprep.mubr.bf16.mxu0 0
      %1410 = vmatmul.mubr.bf16.gmra.mrb[0].mxu0 %v1292
      %v1411 = vpop.f32.mrb[0].mxu0
      %v1412 = vadd.f32 0.0, %v1411
      %v1413 = vpop.f32.mrb[0].mxu0
      %v1414 = vpop.f32.mrb[0].mxu0
      %v1415 = vadd.f32 0.0, %v1414
      %v1416 = vpop.f32.mrb[0].mxu0
      %1417 = vmatprep.mubr.bf16.mxu0 0
      %1418 = vmatmul.mubr.bf16.gmra.mrb[0].mxu0 %v1295
      %v1419 = vpop.f32.mrb[0].mxu0
      %v1420 = vadd.f32 0.0, %v1419
      %v1421 = vpop.f32.mrb[0].mxu0
      %v1422 = vpop.f32.mrb[0].mxu0
      %v1423 = vadd.f32 0.0, %v1422
      %v1424 = vpop.f32.mrb[0].mxu0
      %1425 = vmatprep.mubr.bf16.mxu0 0
      %1426 = vmatmul.mubr.bf16.gmra.mrb[0].mxu0 %v1298
      %v1427 = vpop.f32.mrb[0].mxu0
      %v1428 = vadd.f32 0.0, %v1427
      %v1429 = vpop.f32.mrb[0].mxu0
      %v1430 = vpop.f32.mrb[0].mxu0
      %v1431 = vadd.f32 0.0, %v1430
      %v1432 = vpop.f32.mrb[0].mxu0
      %1433 = vmatprep.mubr.bf16.mxu0 0
      %1434 = vmatmul.mubr.bf16.gmra.mrb[0].mxu0 %v1301
      %v1435 = vpop.f32.mrb[0].mxu0
      %v1436 = vadd.f32 0.0, %v1435
      %v1437 = vpop.f32.mrb[0].mxu0
      %v1438 = vpop.f32.mrb[0].mxu0
      %v1439 = vadd.f32 0.0, %v1438
      %v1440 = vpop.f32.mrb[0].mxu0
      %1441 = vmatprep.mubr.bf16.mxu0 0
      %1442 = vmatmul.mubr.bf16.gmra.mrb[0].mxu0 %v1304
      %v1443 = vpop.f32.mrb[0].mxu0
      %v1444 = vadd.f32 0.0, %v1443
      %v1445 = vpop.f32.mrb[0].mxu0
      %v1446 = vpop.f32.mrb[0].mxu0
      %v1447 = vadd.f32 0.0, %v1446
      %v1448 = vpop.f32.mrb[0].mxu0
      %1449 = vmatprep.mubr.bf16.mxu0 0
      %1450 = vmatmul.mubr.bf16.gmra.mrb[0].mxu0 %v1307
      %v1451 = vpop.f32.mrb[0].mxu0
      %v1452 = vadd.f32 0.0, %v1451
      %v1453 = vpop.f32.mrb[0].mxu0
      %v1454 = vpop.f32.mrb[0].mxu0
      %v1455 = vadd.f32 0.0, %v1454
      %v1456 = vpop.f32.mrb[0].mxu0
      %1457 = vmatprep.mubr.bf16.mxu0 0
      %1458 = vmatmul.mubr.bf16.gmra.mrb[0].mxu0 %v1310
      %v1459 = vpop.f32.mrb[0].mxu0
      %v1460 = vadd.f32 0.0, %v1459
      %v1461 = vpop.f32.mrb[0].mxu0
      %v1462 = vpop.f32.mrb[0].mxu0
      %v1463 = vadd.f32 0.0, %v1462
      %v1464 = vpop.f32.mrb[0].mxu0
      %1465 = vmatprep.mubr.bf16.mxu0 0
      %1466 = vmatmul.mubr.bf16.gmra.mrb[0].mxu0 %v1313
      %v1467 = vpop.f32.mrb[0].mxu0
      %v1468 = vadd.f32 0.0, %v1467
      %v1469 = vpop.f32.mrb[0].mxu0
      %v1470 = vpop.f32.mrb[0].mxu0
      %v1471 = vadd.f32 0.0, %v1470
      %v1472 = vpop.f32.mrb[0].mxu0
      %1473 = vmatprep.mubr.bf16.mxu0 0
      %1474 = vmatmul.mubr.bf16.gmra.mrb[0].mxu0 %v1316
      %v1475 = vpop.f32.mrb[0].mxu0
      %v1476 = vadd.f32 0.0, %v1475
      %v1477 = vpop.f32.mrb[0].mxu0
      %v1478 = vpop.f32.mrb[0].mxu0
      %v1479 = vadd.f32 0.0, %v1478
      %v1480 = vpop.f32.mrb[0].mxu0
      %1481 = vdwg.mxu0
      %v1482 = vadd.f32 %v950, %v1356
      %v1483 = vadd.f32 %v953, %v1359
      %v1484 = vadd.f32 %v958, %v1364
      %v1485 = vadd.f32 %v961, %v1367
      %v1486 = vadd.f32 %v966, %v1372
      %v1487 = vadd.f32 %v969, %v1375
      %v1488 = vadd.f32 %v974, %v1380
      %v1489 = vadd.f32 %v977, %v1383
      %v1490 = vadd.f32 %v982, %v1388
      %v1491 = vadd.f32 %v985, %v1391
      %v1492 = vadd.f32 %v990, %v1396
      %v1493 = vadd.f32 %v993, %v1399
      %v1494 = vadd.f32 %v998, %v1404
      %v1495 = vadd.f32 %v1001, %v1407
      %v1496 = vadd.f32 %v1006, %v1412
      %v1497 = vadd.f32 %v1009, %v1415
      %v1498 = vadd.f32 %v1014, %v1420
      %v1499 = vadd.f32 %v1017, %v1423
      %v1500 = vadd.f32 %v1022, %v1428
      %v1501 = vadd.f32 %v1025, %v1431
      %v1502 = vadd.f32 %v1030, %v1436
      %v1503 = vadd.f32 %v1033, %v1439
      %v1504 = vadd.f32 %v1038, %v1444
      %v1505 = vadd.f32 %v1041, %v1447
      %v1506 = vadd.f32 %v1046, %v1452
      %v1507 = vadd.f32 %v1049, %v1455
      %v1508 = vadd.f32 %v1054, %v1460
      %v1509 = vadd.f32 %v1057, %v1463
      %v1510 = vadd.f32 %v1062, %v1468
      %v1511 = vadd.f32 %v1065, %v1471
      %v1512 = vadd.f32 %v1070, %v1476
      %v1513 = vadd.f32 %v1073, %v1479
      %v1514 = vmul.f32 %v384, %v426
      %v1515 = vmul.f32 %v385, %v425
      %v1516 = vmul.f32 %v386, %v424
      %v1517 = vpack.c.bf16 %v434, %v431
      %v1518 = vpack.c.bf16 %v1515, %v1514
      %v1519 = vpack.c.bf16 %v1516, %v1516
      %v1521 = vshrl.u32 %v1517, 16
      %v1523 = vrot.slane %v1521, 3
      %v1524 = vshll.u32 %v1517, 16
      %v1526 = vrot.slane %v1524, 4
      %v1527 = vor.u32 %v1523, %v1526
      %v1528 = vsel %vm711, %v1527, %v736
      %v1530 = vshrl.u32 %v1518, 16
      %v1532 = vrot.slane %v1530, 3
      %v1533 = vshll.u32 %v1518, 16
      %v1535 = vrot.slane %v1533, 4
      %v1536 = vor.u32 %v1532, %v1535
      %v1537 = vsel %vm711, %v853, %v1536
      %v1539 = vshrl.u32 %v1519, 16
      %v1541 = vrot.slane %v1539, 3
      %v1542 = vshll.u32 %v1519, 16
      %v1544 = vrot.slane %v1542, 4
      %v1545 = vor.u32 %v1541, %v1544
      %v1546 = vsel %vm711, %v1536, %v1545
      %v1548 = vsel %vm497, %v1528, 0
      %v1551 = vsel %vm497, %v1537, 0
      %v1554 = vsel %vm497, %v1546, 0
      %v1557 = vsel %vm546, %v399, 0
      %1559 = vmatprep.subr.bf16.mxu0 0
      %1560 = vmatpush1.bf16.msra.mxu0 %v1557
      %1561 = vmatprep.subr.bf16.mxu0 0
      %1562 = vmatpush1.bf16.msra.mxu0 0
      %1563 = vmatprep.subr.bf16.mxu0 0
      %1564 = vmatpush1.bf16.msra.mxu0 0
      %1565 = vmatprep.subr.bf16.mxu0 0
      %1566 = vmatpush1.bf16.msra.mxu0 0
      %1567 = vmatprep.subr.bf16.mxu0 0
      %1568 = vmatpush1.bf16.msra.mxu0 0
      %1569 = vmatprep.subr.bf16.mxu0 0
      %1570 = vmatpush1.bf16.msra.mxu0 0
      %1571 = vmatprep.subr.bf16.mxu0 0
      %1572 = vmatpush1.bf16.msra.mxu0 0
      %1573 = vmatprep.subr.bf16.mxu0 0
      %1574 = vmatpush1.bf16.msra.mxu0 0
      %1575 = vmatprep.subr.bf16.mxu0 0
      %1576 = vmatpush1.bf16.msra.mxu0 0
      %1577 = vmatprep.subr.bf16.mxu0 0
      %1578 = vmatpush1.bf16.msra.mxu0 0
      %1579 = vmatprep.subr.bf16.mxu0 0
      %1580 = vmatpush1.bf16.msra.mxu0 0
      %1581 = vmatprep.subr.bf16.mxu0 0
      %1582 = vmatpush1.bf16.msra.mxu0 0
      %1583 = vmatprep.subr.bf16.mxu0 0
      %1584 = vmatpush1.bf16.msra.mxu0 0
      %1585 = vmatprep.subr.bf16.mxu0 0
      %1586 = vmatpush1.bf16.msra.mxu0 0
      %1587 = vmatprep.subr.bf16.mxu0 0
      %1588 = vmatpush1.bf16.msra.mxu0 0
      %1589 = vmatprep.subr.bf16.mxu0 0
      %1590 = vmatpush1.bf16.msra.mxu0 0
      %1591 = vmatprep.mubr.bf16.mxu0 0
      %1592 = vmatmul.mubr.bf16.gmra.mrb[0].mxu0 %v1548
      %v1593 = vpop.f32.mrb[0].mxu0
      %v1594 = vadd.f32 0.0, %v1593
      %v1595 = vpop.f32.mrb[0].mxu0
      %v1596 = vpop.f32.mrb[0].mxu0
      %v1597 = vadd.f32 0.0, %v1596
      %v1598 = vpop.f32.mrb[0].mxu0
      %1599 = vmatprep.mubr.bf16.mxu0 0
      %1600 = vmatmul.mubr.bf16.gmra.mrb[0].mxu0 %v871
      %v1601 = vpop.f32.mrb[0].mxu0
      %v1602 = vadd.f32 0.0, %v1601
      %v1603 = vpop.f32.mrb[0].mxu0
      %v1604 = vpop.f32.mrb[0].mxu0
      %v1605 = vadd.f32 0.0, %v1604
      %v1606 = vpop.f32.mrb[0].mxu0
      %1607 = vmatprep.mubr.bf16.mxu0 0
      %1608 = vmatmul.mubr.bf16.gmra.mrb[0].mxu0 %v874
      %v1609 = vpop.f32.mrb[0].mxu0
      %v1610 = vadd.f32 0.0, %v1609
      %v1611 = vpop.f32.mrb[0].mxu0
      %v1612 = vpop.f32.mrb[0].mxu0
      %v1613 = vadd.f32 0.0, %v1612
      %v1614 = vpop.f32.mrb[0].mxu0
      %1615 = vmatprep.mubr.bf16.mxu0 0
      %1616 = vmatmul.mubr.bf16.gmra.mrb[0].mxu0 %v877
      %v1617 = vpop.f32.mrb[0].mxu0
      %v1618 = vadd.f32 0.0, %v1617
      %v1619 = vpop.f32.mrb[0].mxu0
      %v1620 = vpop.f32.mrb[0].mxu0
      %v1621 = vadd.f32 0.0, %v1620
      %v1622 = vpop.f32.mrb[0].mxu0
      %1623 = vmatprep.mubr.bf16.mxu0 0
      %1624 = vmatmul.mubr.bf16.gmra.mrb[0].mxu0 %v880
      %v1625 = vpop.f32.mrb[0].mxu0
      %v1626 = vadd.f32 0.0, %v1625
      %v1627 = vpop.f32.mrb[0].mxu0
      %v1628 = vpop.f32.mrb[0].mxu0
      %v1629 = vadd.f32 0.0, %v1628
      %v1630 = vpop.f32.mrb[0].mxu0
      %1631 = vmatprep.mubr.bf16.mxu0 0
      %1632 = vmatmul.mubr.bf16.gmra.mrb[0].mxu0 %v883
      %v1633 = vpop.f32.mrb[0].mxu0
      %v1634 = vadd.f32 0.0, %v1633
      %v1635 = vpop.f32.mrb[0].mxu0
      %v1636 = vpop.f32.mrb[0].mxu0
      %v1637 = vadd.f32 0.0, %v1636
      %v1638 = vpop.f32.mrb[0].mxu0
      %1639 = vmatprep.mubr.bf16.mxu0 0
      %1640 = vmatmul.mubr.bf16.gmra.mrb[0].mxu0 %v886
      %v1641 = vpop.f32.mrb[0].mxu0
      %v1642 = vadd.f32 0.0, %v1641
      %v1643 = vpop.f32.mrb[0].mxu0
      %v1644 = vpop.f32.mrb[0].mxu0
      %v1645 = vadd.f32 0.0, %v1644
      %v1646 = vpop.f32.mrb[0].mxu0
      %1647 = vmatprep.mubr.bf16.mxu0 0
      %1648 = vmatmul.mubr.bf16.gmra.mrb[0].mxu0 %v889
      %v1649 = vpop.f32.mrb[0].mxu0
      %v1650 = vadd.f32 0.0, %v1649
      %v1651 = vpop.f32.mrb[0].mxu0
      %v1652 = vpop.f32.mrb[0].mxu0
      %v1653 = vadd.f32 0.0, %v1652
      %v1654 = vpop.f32.mrb[0].mxu0
      %1655 = vmatprep.mubr.bf16.mxu0 0
      %1656 = vmatmul.mubr.bf16.gmra.mrb[0].mxu0 %v892
      %v1657 = vpop.f32.mrb[0].mxu0
      %v1658 = vadd.f32 0.0, %v1657
      %v1659 = vpop.f32.mrb[0].mxu0
      %v1660 = vpop.f32.mrb[0].mxu0
      %v1661 = vadd.f32 0.0, %v1660
      %v1662 = vpop.f32.mrb[0].mxu0
      %1663 = vmatprep.mubr.bf16.mxu0 0
      %1664 = vmatmul.mubr.bf16.gmra.mrb[0].mxu0 %v895
      %v1665 = vpop.f32.mrb[0].mxu0
      %v1666 = vadd.f32 0.0, %v1665
      %v1667 = vpop.f32.mrb[0].mxu0
      %v1668 = vpop.f32.mrb[0].mxu0
      %v1669 = vadd.f32 0.0, %v1668
      %v1670 = vpop.f32.mrb[0].mxu0
      %1671 = vmatprep.mubr.bf16.mxu0 0
      %1672 = vmatmul.mubr.bf16.gmra.mrb[0].mxu0 %v898
      %v1673 = vpop.f32.mrb[0].mxu0
      %v1674 = vadd.f32 0.0, %v1673
      %v1675 = vpop.f32.mrb[0].mxu0
      %v1676 = vpop.f32.mrb[0].mxu0
      %v1677 = vadd.f32 0.0, %v1676
      %v1678 = vpop.f32.mrb[0].mxu0
      %1679 = vmatprep.mubr.bf16.mxu0 0
      %1680 = vmatmul.mubr.bf16.gmra.mrb[0].mxu0 %v901
      %v1681 = vpop.f32.mrb[0].mxu0
      %v1682 = vadd.f32 0.0, %v1681
      %v1683 = vpop.f32.mrb[0].mxu0
      %v1684 = vpop.f32.mrb[0].mxu0
      %v1685 = vadd.f32 0.0, %v1684
      %v1686 = vpop.f32.mrb[0].mxu0
      %1687 = vmatprep.mubr.bf16.mxu0 0
      %1688 = vmatmul.mubr.bf16.gmra.mrb[0].mxu0 %v904
      %v1689 = vpop.f32.mrb[0].mxu0
      %v1690 = vadd.f32 0.0, %v1689
      %v1691 = vpop.f32.mrb[0].mxu0
      %v1692 = vpop.f32.mrb[0].mxu0
      %v1693 = vadd.f32 0.0, %v1692
      %v1694 = vpop.f32.mrb[0].mxu0
      %1695 = vmatprep.mubr.bf16.mxu0 0
      %1696 = vmatmul.mubr.bf16.gmra.mrb[0].mxu0 %v907
      %v1697 = vpop.f32.mrb[0].mxu0
      %v1698 = vadd.f32 0.0, %v1697
      %v1699 = vpop.f32.mrb[0].mxu0
      %v1700 = vpop.f32.mrb[0].mxu0
      %v1701 = vadd.f32 0.0, %v1700
      %v1702 = vpop.f32.mrb[0].mxu0
      %1703 = vmatprep.mubr.bf16.mxu0 0
      %1704 = vmatmul.mubr.bf16.gmra.mrb[0].mxu0 %v1551
      %v1705 = vpop.f32.mrb[0].mxu0
      %v1706 = vadd.f32 0.0, %v1705
      %v1707 = vpop.f32.mrb[0].mxu0
      %v1708 = vpop.f32.mrb[0].mxu0
      %v1709 = vadd.f32 0.0, %v1708
      %v1710 = vpop.f32.mrb[0].mxu0
      %1711 = vmatprep.mubr.bf16.mxu0 0
      %1712 = vmatmul.mubr.bf16.gmra.mrb[0].mxu0 %v1554
      %v1713 = vpop.f32.mrb[0].mxu0
      %v1714 = vadd.f32 0.0, %v1713
      %v1715 = vpop.f32.mrb[0].mxu0
      %v1716 = vpop.f32.mrb[0].mxu0
      %v1717 = vadd.f32 0.0, %v1716
      %v1718 = vpop.f32.mrb[0].mxu0
      %1719 = vdwg.mxu0
      %v1720 = vadd.f32 %v1482, %v1594
      %v1721 = vadd.f32 %v1483, %v1597
      %v1722 = vadd.f32 %v1484, %v1602
      %v1723 = vadd.f32 %v1485, %v1605
      %v1724 = vadd.f32 %v1486, %v1610
      %v1725 = vadd.f32 %v1487, %v1613
      %v1726 = vadd.f32 %v1488, %v1618
      %v1727 = vadd.f32 %v1489, %v1621
      %v1728 = vadd.f32 %v1490, %v1626
      %v1729 = vadd.f32 %v1491, %v1629
      %v1730 = vadd.f32 %v1492, %v1634
      %v1731 = vadd.f32 %v1493, %v1637
      %v1732 = vadd.f32 %v1494, %v1642
      %v1733 = vadd.f32 %v1495, %v1645
      %v1734 = vadd.f32 %v1496, %v1650
      %v1735 = vadd.f32 %v1497, %v1653
      %v1736 = vadd.f32 %v1498, %v1658
      %v1737 = vadd.f32 %v1499, %v1661
      %v1738 = vadd.f32 %v1500, %v1666
      %v1739 = vadd.f32 %v1501, %v1669
      %v1740 = vadd.f32 %v1502, %v1674
      %v1741 = vadd.f32 %v1503, %v1677
      %v1742 = vadd.f32 %v1504, %v1682
      %v1743 = vadd.f32 %v1505, %v1685
      %v1744 = vadd.f32 %v1506, %v1690
      %v1745 = vadd.f32 %v1507, %v1693
      %v1746 = vadd.f32 %v1508, %v1698
      %v1747 = vadd.f32 %v1509, %v1701
      %v1748 = vadd.f32 %v1510, %v1706
      %v1749 = vadd.f32 %v1511, %v1709
      %v1750 = vadd.f32 %v1512, %v1714
      %v1751 = vadd.f32 %v1513, %v1717
      %v1752 = vpack.c.bf16 %v386, %v385
      %v1754 = vsel %vm497, %v1752, 0
      %v1757 = vsel %vm546, %v400, 0
      %1759 = vmatprep.subr.bf16.mxu0 0
      %1760 = vmatpush1.bf16.msra.mxu0 %v1757
      %1761 = vmatprep.subr.bf16.mxu0 0
      %1762 = vmatpush1.bf16.msra.mxu0 0
      %1763 = vmatprep.subr.bf16.mxu0 0
      %1764 = vmatpush1.bf16.msra.mxu0 0
      %1765 = vmatprep.subr.bf16.mxu0 0
      %1766 = vmatpush1.bf16.msra.mxu0 0
      %1767 = vmatprep.subr.bf16.mxu0 0
      %1768 = vmatpush1.bf16.msra.mxu0 0
      %1769 = vmatprep.subr.bf16.mxu0 0
      %1770 = vmatpush1.bf16.msra.mxu0 0
      %1771 = vmatprep.subr.bf16.mxu0 0
      %1772 = vmatpush1.bf16.msra.mxu0 0
      %1773 = vmatprep.subr.bf16.mxu0 0
      %1774 = vmatpush1.bf16.msra.mxu0 0
      %1775 = vmatprep.subr.bf16.mxu0 0
      %1776 = vmatpush1.bf16.msra.mxu0 0
      %1777 = vmatprep.subr.bf16.mxu0 0
      %1778 = vmatpush1.bf16.msra.mxu0 0
      %1779 = vmatprep.subr.bf16.mxu0 0
      %1780 = vmatpush1.bf16.msra.mxu0 0
      %1781 = vmatprep.subr.bf16.mxu0 0
      %1782 = vmatpush1.bf16.msra.mxu0 0
      %1783 = vmatprep.subr.bf16.mxu0 0
      %1784 = vmatpush1.bf16.msra.mxu0 0
      %1785 = vmatprep.subr.bf16.mxu0 0
      %1786 = vmatpush1.bf16.msra.mxu0 0
      %1787 = vmatprep.subr.bf16.mxu0 0
      %1788 = vmatpush1.bf16.msra.mxu0 0
      %1789 = vmatprep.subr.bf16.mxu0 0
      %1790 = vmatpush1.bf16.msra.mxu0 0
      %1791 = vmatprep.mubr.bf16.mxu0 0
      %1792 = vmatmul.mubr.bf16.gmra.mrb[0].mxu0 %v502
      %v1793 = vpop.f32.mrb[0].mxu0
      %v1794 = vadd.f32 0.0, %v1793
      %v1795 = vpop.f32.mrb[0].mxu0
      %v1796 = vpop.f32.mrb[0].mxu0
      %v1797 = vadd.f32 0.0, %v1796
      %v1798 = vpop.f32.mrb[0].mxu0
      %1799 = vmatprep.mubr.bf16.mxu0 0
      %1800 = vmatmul.mubr.bf16.gmra.mrb[0].mxu0 %v505
      %v1801 = vpop.f32.mrb[0].mxu0
      %v1802 = vadd.f32 0.0, %v1801
      %v1803 = vpop.f32.mrb[0].mxu0
      %v1804 = vpop.f32.mrb[0].mxu0
      %v1805 = vadd.f32 0.0, %v1804
      %v1806 = vpop.f32.mrb[0].mxu0
      %1807 = vmatprep.mubr.bf16.mxu0 0
      %1808 = vmatmul.mubr.bf16.gmra.mrb[0].mxu0 %v508
      %v1809 = vpop.f32.mrb[0].mxu0
      %v1810 = vadd.f32 0.0, %v1809
      %v1811 = vpop.f32.mrb[0].mxu0
      %v1812 = vpop.f32.mrb[0].mxu0
      %v1813 = vadd.f32 0.0, %v1812
      %v1814 = vpop.f32.mrb[0].mxu0
      %1815 = vmatprep.mubr.bf16.mxu0 0
      %1816 = vmatmul.mubr.bf16.gmra.mrb[0].mxu0 %v511
      %v1817 = vpop.f32.mrb[0].mxu0
      %v1818 = vadd.f32 0.0, %v1817
      %v1819 = vpop.f32.mrb[0].mxu0
      %v1820 = vpop.f32.mrb[0].mxu0
      %v1821 = vadd.f32 0.0, %v1820
      %v1822 = vpop.f32.mrb[0].mxu0
      %1823 = vmatprep.mubr.bf16.mxu0 0
      %1824 = vmatmul.mubr.bf16.gmra.mrb[0].mxu0 %v514
      %v1825 = vpop.f32.mrb[0].mxu0
      %v1826 = vadd.f32 0.0, %v1825
      %v1827 = vpop.f32.mrb[0].mxu0
      %v1828 = vpop.f32.mrb[0].mxu0
      %v1829 = vadd.f32 0.0, %v1828
      %v1830 = vpop.f32.mrb[0].mxu0
      %1831 = vmatprep.mubr.bf16.mxu0 0
      %1832 = vmatmul.mubr.bf16.gmra.mrb[0].mxu0 %v517
      %v1833 = vpop.f32.mrb[0].mxu0
      %v1834 = vadd.f32 0.0, %v1833
      %v1835 = vpop.f32.mrb[0].mxu0
      %v1836 = vpop.f32.mrb[0].mxu0
      %v1837 = vadd.f32 0.0, %v1836
      %v1838 = vpop.f32.mrb[0].mxu0
      %1839 = vmatprep.mubr.bf16.mxu0 0
      %1840 = vmatmul.mubr.bf16.gmra.mrb[0].mxu0 %v520
      %v1841 = vpop.f32.mrb[0].mxu0
      %v1842 = vadd.f32 0.0, %v1841
      %v1843 = vpop.f32.mrb[0].mxu0
      %v1844 = vpop.f32.mrb[0].mxu0
      %v1845 = vadd.f32 0.0, %v1844
      %v1846 = vpop.f32.mrb[0].mxu0
      %1847 = vmatprep.mubr.bf16.mxu0 0
      %1848 = vmatmul.mubr.bf16.gmra.mrb[0].mxu0 %v523
      %v1849 = vpop.f32.mrb[0].mxu0
      %v1850 = vadd.f32 0.0, %v1849
      %v1851 = vpop.f32.mrb[0].mxu0
      %v1852 = vpop.f32.mrb[0].mxu0
      %v1853 = vadd.f32 0.0, %v1852
      %v1854 = vpop.f32.mrb[0].mxu0
      %1855 = vmatprep.mubr.bf16.mxu0 0
      %1856 = vmatmul.mubr.bf16.gmra.mrb[0].mxu0 %v526
      %v1857 = vpop.f32.mrb[0].mxu0
      %v1858 = vadd.f32 0.0, %v1857
      %v1859 = vpop.f32.mrb[0].mxu0
      %v1860 = vpop.f32.mrb[0].mxu0
      %v1861 = vadd.f32 0.0, %v1860
      %v1862 = vpop.f32.mrb[0].mxu0
      %1863 = vmatprep.mubr.bf16.mxu0 0
      %1864 = vmatmul.mubr.bf16.gmra.mrb[0].mxu0 %v529
      %v1865 = vpop.f32.mrb[0].mxu0
      %v1866 = vadd.f32 0.0, %v1865
      %v1867 = vpop.f32.mrb[0].mxu0
      %v1868 = vpop.f32.mrb[0].mxu0
      %v1869 = vadd.f32 0.0, %v1868
      %v1870 = vpop.f32.mrb[0].mxu0
      %1871 = vmatprep.mubr.bf16.mxu0 0
      %1872 = vmatmul.mubr.bf16.gmra.mrb[0].mxu0 %v532
      %v1873 = vpop.f32.mrb[0].mxu0
      %v1874 = vadd.f32 0.0, %v1873
      %v1875 = vpop.f32.mrb[0].mxu0
      %v1876 = vpop.f32.mrb[0].mxu0
      %v1877 = vadd.f32 0.0, %v1876
      %v1878 = vpop.f32.mrb[0].mxu0
      %1879 = vmatprep.mubr.bf16.mxu0 0
      %1880 = vmatmul.mubr.bf16.gmra.mrb[0].mxu0 %v535
      %v1881 = vpop.f32.mrb[0].mxu0
      %v1882 = vadd.f32 0.0, %v1881
      %v1883 = vpop.f32.mrb[0].mxu0
      %v1884 = vpop.f32.mrb[0].mxu0
      %v1885 = vadd.f32 0.0, %v1884
      %v1886 = vpop.f32.mrb[0].mxu0
      %1887 = vmatprep.mubr.bf16.mxu0 0
      %1888 = vmatmul.mubr.bf16.gmra.mrb[0].mxu0 %v538
      %v1889 = vpop.f32.mrb[0].mxu0
      %v1890 = vadd.f32 0.0, %v1889
      %v1891 = vpop.f32.mrb[0].mxu0
      %v1892 = vpop.f32.mrb[0].mxu0
      %v1893 = vadd.f32 0.0, %v1892
      %v1894 = vpop.f32.mrb[0].mxu0
      %1895 = vmatprep.mubr.bf16.mxu0 0
      %1896 = vmatmul.mubr.bf16.gmra.mrb[0].mxu0 %v541
      %v1897 = vpop.f32.mrb[0].mxu0
      %v1898 = vadd.f32 0.0, %v1897
      %v1899 = vpop.f32.mrb[0].mxu0
      %v1900 = vpop.f32.mrb[0].mxu0
      %v1901 = vadd.f32 0.0, %v1900
      %v1902 = vpop.f32.mrb[0].mxu0
      %1903 = vmatprep.mubr.bf16.mxu0 0
      %1904 = vmatmul.mubr.bf16.gmra.mrb[0].mxu0 %v544
      %v1905 = vpop.f32.mrb[0].mxu0
      %v1906 = vadd.f32 0.0, %v1905
      %v1907 = vpop.f32.mrb[0].mxu0
      %v1908 = vpop.f32.mrb[0].mxu0
      %v1909 = vadd.f32 0.0, %v1908
      %v1910 = vpop.f32.mrb[0].mxu0
      %1911 = vmatprep.mubr.bf16.mxu0 0
      %1912 = vmatmul.mubr.bf16.gmra.mrb[0].mxu0 %v1754
      %v1913 = vpop.f32.mrb[0].mxu0
      %v1914 = vadd.f32 0.0, %v1913
      %v1915 = vpop.f32.mrb[0].mxu0
      %v1916 = vpop.f32.mrb[0].mxu0
      %v1917 = vadd.f32 0.0, %v1916
      %v1918 = vpop.f32.mrb[0].mxu0
      %1919 = vdwg.mxu0
      %v1920 = vadd.f32 %v1720, %v1794
      %v1921 = vadd.f32 %v1721, %v1797
      %v1922 = vadd.f32 %v1722, %v1802
      %v1923 = vadd.f32 %v1723, %v1805
      %v1924 = vadd.f32 %v1724, %v1810
      %v1925 = vadd.f32 %v1725, %v1813
      %v1926 = vadd.f32 %v1726, %v1818
      %v1927 = vadd.f32 %v1727, %v1821
      %v1928 = vadd.f32 %v1728, %v1826
      %v1929 = vadd.f32 %v1729, %v1829
      %v1930 = vadd.f32 %v1730, %v1834
      %v1931 = vadd.f32 %v1731, %v1837
      %v1932 = vadd.f32 %v1732, %v1842
      %v1933 = vadd.f32 %v1733, %v1845
      %v1934 = vadd.f32 %v1734, %v1850
      %v1935 = vadd.f32 %v1735, %v1853
      %v1936 = vadd.f32 %v1736, %v1858
      %v1937 = vadd.f32 %v1737, %v1861
      %v1938 = vadd.f32 %v1738, %v1866
      %v1939 = vadd.f32 %v1739, %v1869
      %v1940 = vadd.f32 %v1740, %v1874
      %v1941 = vadd.f32 %v1741, %v1877
      %v1942 = vadd.f32 %v1742, %v1882
      %v1943 = vadd.f32 %v1743, %v1885
      %v1944 = vadd.f32 %v1744, %v1890
      %v1945 = vadd.f32 %v1745, %v1893
      %v1946 = vadd.f32 %v1746, %v1898
      %v1947 = vadd.f32 %v1747, %v1901
      %v1948 = vadd.f32 %v1748, %v1906
      %v1949 = vadd.f32 %v1749, %v1909
      %v1950 = vadd.f32 %v1750, %v1914
      %v1951 = vadd.f32 %v1751, %v1917
      %v1952 = vmul.f32 %v355, %v1079
      %v1953 = vmul.f32 %v385, %v1082
      %v1954 = vmul.f32 %v386, %v1081
      %v1955 = vmul.f32 %v1080, 0.0
      %v1956 = vpack.c.bf16 %v1090, %v1952
      %v1957 = vpack.c.bf16 %v1954, %v1953
      %v1958 = vpack.c.bf16 %v1955, %v1955
      %v1960 = vshrl.u32 %v1956, 16
      %v1962 = vshll.u32 %v1956, 16
      %v1964 = vrot.slane %v1962, 1
      %v1965 = vor.u32 %v1960, %v1964
      %v1966 = vsel %vm1137, %v1965, %v1156
      %v1968 = vshll.u32 %v1957, 16
      %v1970 = vrot.slane %v1968, 1
      %v1971 = vsel %vm1137, %v1264, %v1970
      %v1972 = vshrl.u32 %v1957, 16
      %v1974 = vor.u32 %v1972, %v1970
      %v1976 = vshll.u32 %v1958, 16
      %v1978 = vrot.slane %v1976, 1
      %v1979 = vsel %vm1137, %v1974, %v1978
      %v1981 = vsel %vm497, %v1966, 0
      %v1984 = vsel %vm497, %v1971, 0
      %v1987 = vsel %vm497, %v1979, 0
      %v1990 = vsel %vm546, %v401, 0
      %1992 = vmatprep.subr.bf16.mxu0 0
      %1993 = vmatpush1.bf16.msra.mxu0 %v1990
      %1994 = vmatprep.subr.bf16.mxu0 0
      %1995 = vmatpush1.bf16.msra.mxu0 0
      %1996 = vmatprep.subr.bf16.mxu0 0
      %1997 = vmatpush1.bf16.msra.mxu0 0
      %1998 = vmatprep.subr.bf16.mxu0 0
      %1999 = vmatpush1.bf16.msra.mxu0 0
      %2000 = vmatprep.subr.bf16.mxu0 0
      %2001 = vmatpush1.bf16.msra.mxu0 0
      %2002 = vmatprep.subr.bf16.mxu0 0
      %2003 = vmatpush1.bf16.msra.mxu0 0
      %2004 = vmatprep.subr.bf16.mxu0 0
      %2005 = vmatpush1.bf16.msra.mxu0 0
      %2006 = vmatprep.subr.bf16.mxu0 0
      %2007 = vmatpush1.bf16.msra.mxu0 0
      %2008 = vmatprep.subr.bf16.mxu0 0
      %2009 = vmatpush1.bf16.msra.mxu0 0
      %2010 = vmatprep.subr.bf16.mxu0 0
      %2011 = vmatpush1.bf16.msra.mxu0 0
      %2012 = vmatprep.subr.bf16.mxu0 0
      %2013 = vmatpush1.bf16.msra.mxu0 0
      %2014 = vmatprep.subr.bf16.mxu0 0
      %2015 = vmatpush1.bf16.msra.mxu0 0
      %2016 = vmatprep.subr.bf16.mxu0 0
      %2017 = vmatpush1.bf16.msra.mxu0 0
      %2018 = vmatprep.subr.bf16.mxu0 0
      %2019 = vmatpush1.bf16.msra.mxu0 0
      %2020 = vmatprep.subr.bf16.mxu0 0
      %2021 = vmatpush1.bf16.msra.mxu0 0
      %2022 = vmatprep.subr.bf16.mxu0 0
      %2023 = vmatpush1.bf16.msra.mxu0 0
      %2024 = vmatprep.mubr.bf16.mxu0 0
      %2025 = vmatmul.mubr.bf16.gmra.mrb[0].mxu0 %v1981
      %v2026 = vpop.f32.mrb[0].mxu0
      %v2027 = vadd.f32 0.0, %v2026
      %v2028 = vpop.f32.mrb[0].mxu0
      %v2029 = vpop.f32.mrb[0].mxu0
      %v2030 = vadd.f32 0.0, %v2029
      %v2031 = vpop.f32.mrb[0].mxu0
      %2032 = vmatprep.mubr.bf16.mxu0 0
      %2033 = vmatmul.mubr.bf16.gmra.mrb[0].mxu0 %v1277
      %v2034 = vpop.f32.mrb[0].mxu0
      %v2035 = vadd.f32 0.0, %v2034
      %v2036 = vpop.f32.mrb[0].mxu0
      %v2037 = vpop.f32.mrb[0].mxu0
      %v2038 = vadd.f32 0.0, %v2037
      %v2039 = vpop.f32.mrb[0].mxu0
      %2040 = vmatprep.mubr.bf16.mxu0 0
      %2041 = vmatmul.mubr.bf16.gmra.mrb[0].mxu0 %v1280
      %v2042 = vpop.f32.mrb[0].mxu0
      %v2043 = vadd.f32 0.0, %v2042
      %v2044 = vpop.f32.mrb[0].mxu0
      %v2045 = vpop.f32.mrb[0].mxu0
      %v2046 = vadd.f32 0.0, %v2045
      %v2047 = vpop.f32.mrb[0].mxu0
      %2048 = vmatprep.mubr.bf16.mxu0 0
      %2049 = vmatmul.mubr.bf16.gmra.mrb[0].mxu0 %v1283
      %v2050 = vpop.f32.mrb[0].mxu0
      %v2051 = vadd.f32 0.0, %v2050
      %v2052 = vpop.f32.mrb[0].mxu0
      %v2053 = vpop.f32.mrb[0].mxu0
      %v2054 = vadd.f32 0.0, %v2053
      %v2055 = vpop.f32.mrb[0].mxu0
      %2056 = vmatprep.mubr.bf16.mxu0 0
      %2057 = vmatmul.mubr.bf16.gmra.mrb[0].mxu0 %v1286
      %v2058 = vpop.f32.mrb[0].mxu0
      %v2059 = vadd.f32 0.0, %v2058
      %v2060 = vpop.f32.mrb[0].mxu0
      %v2061 = vpop.f32.mrb[0].mxu0
      %v2062 = vadd.f32 0.0, %v2061
      %v2063 = vpop.f32.mrb[0].mxu0
      %2064 = vmatprep.mubr.bf16.mxu0 0
      %2065 = vmatmul.mubr.bf16.gmra.mrb[0].mxu0 %v1289
      %v2066 = vpop.f32.mrb[0].mxu0
      %v2067 = vadd.f32 0.0, %v2066
      %v2068 = vpop.f32.mrb[0].mxu0
      %v2069 = vpop.f32.mrb[0].mxu0
      %v2070 = vadd.f32 0.0, %v2069
      %v2071 = vpop.f32.mrb[0].mxu0
      %2072 = vmatprep.mubr.bf16.mxu0 0
      %2073 = vmatmul.mubr.bf16.gmra.mrb[0].mxu0 %v1292
      %v2074 = vpop.f32.mrb[0].mxu0
      %v2075 = vadd.f32 0.0, %v2074
      %v2076 = vpop.f32.mrb[0].mxu0
      %v2077 = vpop.f32.mrb[0].mxu0
      %v2078 = vadd.f32 0.0, %v2077
      %v2079 = vpop.f32.mrb[0].mxu0
      %2080 = vmatprep.mubr.bf16.mxu0 0
      %2081 = vmatmul.mubr.bf16.gmra.mrb[0].mxu0 %v1295
      %v2082 = vpop.f32.mrb[0].mxu0
      %v2083 = vadd.f32 0.0, %v2082
      %v2084 = vpop.f32.mrb[0].mxu0
      %v2085 = vpop.f32.mrb[0].mxu0
      %v2086 = vadd.f32 0.0, %v2085
      %v2087 = vpop.f32.mrb[0].mxu0
      %2088 = vmatprep.mubr.bf16.mxu0 0
      %2089 = vmatmul.mubr.bf16.gmra.mrb[0].mxu0 %v1298
      %v2090 = vpop.f32.mrb[0].mxu0
      %v2091 = vadd.f32 0.0, %v2090
      %v2092 = vpop.f32.mrb[0].mxu0
      %v2093 = vpop.f32.mrb[0].mxu0
      %v2094 = vadd.f32 0.0, %v2093
      %v2095 = vpop.f32.mrb[0].mxu0
      %2096 = vmatprep.mubr.bf16.mxu0 0
      %2097 = vmatmul.mubr.bf16.gmra.mrb[0].mxu0 %v1301
      %v2098 = vpop.f32.mrb[0].mxu0
      %v2099 = vadd.f32 0.0, %v2098
      %v2100 = vpop.f32.mrb[0].mxu0
      %v2101 = vpop.f32.mrb[0].mxu0
      %v2102 = vadd.f32 0.0, %v2101
      %v2103 = vpop.f32.mrb[0].mxu0
      %2104 = vmatprep.mubr.bf16.mxu0 0
      %2105 = vmatmul.mubr.bf16.gmra.mrb[0].mxu0 %v1304
      %v2106 = vpop.f32.mrb[0].mxu0
      %v2107 = vadd.f32 0.0, %v2106
      %v2108 = vpop.f32.mrb[0].mxu0
      %v2109 = vpop.f32.mrb[0].mxu0
      %v2110 = vadd.f32 0.0, %v2109
      %v2111 = vpop.f32.mrb[0].mxu0
      %2112 = vmatprep.mubr.bf16.mxu0 0
      %2113 = vmatmul.mubr.bf16.gmra.mrb[0].mxu0 %v1307
      %v2114 = vpop.f32.mrb[0].mxu0
      %v2115 = vadd.f32 0.0, %v2114
      %v2116 = vpop.f32.mrb[0].mxu0
      %v2117 = vpop.f32.mrb[0].mxu0
      %v2118 = vadd.f32 0.0, %v2117
      %v2119 = vpop.f32.mrb[0].mxu0
      %2120 = vmatprep.mubr.bf16.mxu0 0
      %2121 = vmatmul.mubr.bf16.gmra.mrb[0].mxu0 %v1310
      %v2122 = vpop.f32.mrb[0].mxu0
      %v2123 = vadd.f32 0.0, %v2122
      %v2124 = vpop.f32.mrb[0].mxu0
      %v2125 = vpop.f32.mrb[0].mxu0
      %v2126 = vadd.f32 0.0, %v2125
      %v2127 = vpop.f32.mrb[0].mxu0
      %2128 = vmatprep.mubr.bf16.mxu0 0
      %2129 = vmatmul.mubr.bf16.gmra.mrb[0].mxu0 %v1313
      %v2130 = vpop.f32.mrb[0].mxu0
      %v2131 = vadd.f32 0.0, %v2130
      %v2132 = vpop.f32.mrb[0].mxu0
      %v2133 = vpop.f32.mrb[0].mxu0
      %v2134 = vadd.f32 0.0, %v2133
      %v2135 = vpop.f32.mrb[0].mxu0
      %2136 = vmatprep.mubr.bf16.mxu0 0
      %2137 = vmatmul.mubr.bf16.gmra.mrb[0].mxu0 %v1984
      %v2138 = vpop.f32.mrb[0].mxu0
      %v2139 = vadd.f32 0.0, %v2138
      %v2140 = vpop.f32.mrb[0].mxu0
      %v2141 = vpop.f32.mrb[0].mxu0
      %v2142 = vadd.f32 0.0, %v2141
      %v2143 = vpop.f32.mrb[0].mxu0
      %2144 = vmatprep.mubr.bf16.mxu0 0
      %2145 = vmatmul.mubr.bf16.gmra.mrb[0].mxu0 %v1987
      %v2146 = vpop.f32.mrb[0].mxu0
      %v2147 = vadd.f32 0.0, %v2146
      %v2148 = vpop.f32.mrb[0].mxu0
      %v2149 = vpop.f32.mrb[0].mxu0
      %v2150 = vadd.f32 0.0, %v2149
      %v2151 = vpop.f32.mrb[0].mxu0
      %2152 = vdwg.mxu0
      %v2153 = vadd.f32 %v1920, %v2027
      %v2154 = vadd.f32 %v1921, %v2030
      %v2155 = vadd.f32 %v1922, %v2035
      %v2156 = vadd.f32 %v1923, %v2038
      %v2157 = vadd.f32 %v1924, %v2043
      %v2158 = vadd.f32 %v1925, %v2046
      %v2159 = vadd.f32 %v1926, %v2051
      %v2160 = vadd.f32 %v1927, %v2054
      %v2161 = vadd.f32 %v1928, %v2059
      %v2162 = vadd.f32 %v1929, %v2062
      %v2163 = vadd.f32 %v1930, %v2067
      %v2164 = vadd.f32 %v1931, %v2070
      %v2165 = vadd.f32 %v1932, %v2075
      %v2166 = vadd.f32 %v1933, %v2078
      %v2167 = vadd.f32 %v1934, %v2083
      %v2168 = vadd.f32 %v1935, %v2086
      %v2169 = vadd.f32 %v1936, %v2091
      %v2170 = vadd.f32 %v1937, %v2094
      %v2171 = vadd.f32 %v1938, %v2099
      %v2172 = vadd.f32 %v1939, %v2102
      %v2173 = vadd.f32 %v1940, %v2107
      %v2174 = vadd.f32 %v1941, %v2110
      %v2175 = vadd.f32 %v1942, %v2115
      %v2176 = vadd.f32 %v1943, %v2118
      %v2177 = vadd.f32 %v1944, %v2123
      %v2178 = vadd.f32 %v1945, %v2126
      %v2179 = vadd.f32 %v1946, %v2131
      %v2180 = vadd.f32 %v1947, %v2134
      %v2181 = vadd.f32 %v1948, %v2139
      %v2182 = vadd.f32 %v1949, %v2142
      %v2183 = vadd.f32 %v1950, %v2147
      %v2184 = vadd.f32 %v1951, %v2150
      %v2185 = vmul.f32 %v356, %v423
      %v2186 = vmul.f32 %v386, %v426
      %v2187 = vmul.f32 %v424, 0.0
      %v2188 = vpack.c.bf16 %v436, %v2185
      %v2189 = vpack.c.bf16 %v432, %v2186
      %v2190 = vpack.c.bf16 %v2187, %v2187
      %v2192 = vshrl.u32 %v2188, 16
      %v2194 = vrot.slane %v2192, 3
      %v2195 = vshll.u32 %v2188, 16
      %v2197 = vrot.slane %v2195, 4
      %v2198 = vor.u32 %v2194, %v2197
      %v2199 = vsel %vm711, %v2198, %v745
      %v2201 = vshrl.u32 %v2189, 16
      %v2203 = vrot.slane %v2201, 3
      %v2204 = vshll.u32 %v2189, 16
      %v2206 = vrot.slane %v2204, 4
      %v2207 = vor.u32 %v2203, %v2206
      %v2208 = vsel %vm711, %v1536, %v2207
      %v2210 = vshrl.u32 %v2190, 16
      %v2212 = vrot.slane %v2210, 3
      %v2213 = vshll.u32 %v2190, 16
      %v2215 = vrot.slane %v2213, 4
      %v2216 = vor.u32 %v2212, %v2215
      %v2217 = vsel %vm711, %v2207, %v2216
      %v2219 = vsel %vm497, %v2199, 0
      %v2222 = vsel %vm497, %v2208, 0
      %v2225 = vsel %vm497, %v2217, 0
      %v2228 = vsel %vm546, %v402, 0
      %2230 = vmatprep.subr.bf16.mxu0 0
      %2231 = vmatpush1.bf16.msra.mxu0 %v2228
      %2232 = vmatprep.subr.bf16.mxu0 0
      %2233 = vmatpush1.bf16.msra.mxu0 0
      %2234 = vmatprep.subr.bf16.mxu0 0
      %2235 = vmatpush1.bf16.msra.mxu0 0
      %2236 = vmatprep.subr.bf16.mxu0 0
      %2237 = vmatpush1.bf16.msra.mxu0 0
      %2238 = vmatprep.subr.bf16.mxu0 0
      %2239 = vmatpush1.bf16.msra.mxu0 0
      %2240 = vmatprep.subr.bf16.mxu0 0
      %2241 = vmatpush1.bf16.msra.mxu0 0
      %2242 = vmatprep.subr.bf16.mxu0 0
      %2243 = vmatpush1.bf16.msra.mxu0 0
      %2244 = vmatprep.subr.bf16.mxu0 0
      %2245 = vmatpush1.bf16.msra.mxu0 0
      %2246 = vmatprep.subr.bf16.mxu0 0
      %2247 = vmatpush1.bf16.msra.mxu0 0
      %2248 = vmatprep.subr.bf16.mxu0 0
      %2249 = vmatpush1.bf16.msra.mxu0 0
      %2250 = vmatprep.subr.bf16.mxu0 0
      %2251 = vmatpush1.bf16.msra.mxu0 0
      %2252 = vmatprep.subr.bf16.mxu0 0
      %2253 = vmatpush1.bf16.msra.mxu0 0
      %2254 = vmatprep.subr.bf16.mxu0 0
      %2255 = vmatpush1.bf16.msra.mxu0 0
      %2256 = vmatprep.subr.bf16.mxu0 0
      %2257 = vmatpush1.bf16.msra.mxu0 0
      %2258 = vmatprep.subr.bf16.mxu0 0
      %2259 = vmatpush1.bf16.msra.mxu0 0
      %2260 = vmatprep.subr.bf16.mxu0 0
      %2261 = vmatpush1.bf16.msra.mxu0 0
      %2262 = vmatprep.mubr.bf16.mxu0 0
      %2263 = vmatmul.mubr.bf16.gmra.mrb[0].mxu0 %v2219
      %v2264 = vpop.f32.mrb[0].mxu0
      %v2265 = vadd.f32 0.0, %v2264
      %v2266 = vpop.f32.mrb[0].mxu0
      %v2267 = vpop.f32.mrb[0].mxu0
      %v2268 = vadd.f32 0.0, %v2267
      %v2269 = vpop.f32.mrb[0].mxu0
      %2270 = vmatprep.mubr.bf16.mxu0 0
      %2271 = vmatmul.mubr.bf16.gmra.mrb[0].mxu0 %v874
      %v2272 = vpop.f32.mrb[0].mxu0
      %v2273 = vadd.f32 0.0, %v2272
      %v2274 = vpop.f32.mrb[0].mxu0
      %v2275 = vpop.f32.mrb[0].mxu0
      %v2276 = vadd.f32 0.0, %v2275
      %v2277 = vpop.f32.mrb[0].mxu0
      %2278 = vmatprep.mubr.bf16.mxu0 0
      %2279 = vmatmul.mubr.bf16.gmra.mrb[0].mxu0 %v877
      %v2280 = vpop.f32.mrb[0].mxu0
      %v2281 = vadd.f32 0.0, %v2280
      %v2282 = vpop.f32.mrb[0].mxu0
      %v2283 = vpop.f32.mrb[0].mxu0
      %v2284 = vadd.f32 0.0, %v2283
      %v2285 = vpop.f32.mrb[0].mxu0
      %2286 = vmatprep.mubr.bf16.mxu0 0
      %2287 = vmatmul.mubr.bf16.gmra.mrb[0].mxu0 %v880
      %v2288 = vpop.f32.mrb[0].mxu0
      %v2289 = vadd.f32 0.0, %v2288
      %v2290 = vpop.f32.mrb[0].mxu0
      %v2291 = vpop.f32.mrb[0].mxu0
      %v2292 = vadd.f32 0.0, %v2291
      %v2293 = vpop.f32.mrb[0].mxu0
      %2294 = vmatprep.mubr.bf16.mxu0 0
      %2295 = vmatmul.mubr.bf16.gmra.mrb[0].mxu0 %v883
      %v2296 = vpop.f32.mrb[0].mxu0
      %v2297 = vadd.f32 0.0, %v2296
      %v2298 = vpop.f32.mrb[0].mxu0
      %v2299 = vpop.f32.mrb[0].mxu0
      %v2300 = vadd.f32 0.0, %v2299
      %v2301 = vpop.f32.mrb[0].mxu0
      %2302 = vmatprep.mubr.bf16.mxu0 0
      %2303 = vmatmul.mubr.bf16.gmra.mrb[0].mxu0 %v886
      %v2304 = vpop.f32.mrb[0].mxu0
      %v2305 = vadd.f32 0.0, %v2304
      %v2306 = vpop.f32.mrb[0].mxu0
      %v2307 = vpop.f32.mrb[0].mxu0
      %v2308 = vadd.f32 0.0, %v2307
      %v2309 = vpop.f32.mrb[0].mxu0
      %2310 = vmatprep.mubr.bf16.mxu0 0
      %2311 = vmatmul.mubr.bf16.gmra.mrb[0].mxu0 %v889
      %v2312 = vpop.f32.mrb[0].mxu0
      %v2313 = vadd.f32 0.0, %v2312
      %v2314 = vpop.f32.mrb[0].mxu0
      %v2315 = vpop.f32.mrb[0].mxu0
      %v2316 = vadd.f32 0.0, %v2315
      %v2317 = vpop.f32.mrb[0].mxu0
      %2318 = vmatprep.mubr.bf16.mxu0 0
      %2319 = vmatmul.mubr.bf16.gmra.mrb[0].mxu0 %v892
      %v2320 = vpop.f32.mrb[0].mxu0
      %v2321 = vadd.f32 0.0, %v2320
      %v2322 = vpop.f32.mrb[0].mxu0
      %v2323 = vpop.f32.mrb[0].mxu0
      %v2324 = vadd.f32 0.0, %v2323
      %v2325 = vpop.f32.mrb[0].mxu0
      %2326 = vmatprep.mubr.bf16.mxu0 0
      %2327 = vmatmul.mubr.bf16.gmra.mrb[0].mxu0 %v895
      %v2328 = vpop.f32.mrb[0].mxu0
      %v2329 = vadd.f32 0.0, %v2328
      %v2330 = vpop.f32.mrb[0].mxu0
      %v2331 = vpop.f32.mrb[0].mxu0
      %v2332 = vadd.f32 0.0, %v2331
      %v2333 = vpop.f32.mrb[0].mxu0
      %2334 = vmatprep.mubr.bf16.mxu0 0
      %2335 = vmatmul.mubr.bf16.gmra.mrb[0].mxu0 %v898
      %v2336 = vpop.f32.mrb[0].mxu0
      %v2337 = vadd.f32 0.0, %v2336
      %v2338 = vpop.f32.mrb[0].mxu0
      %v2339 = vpop.f32.mrb[0].mxu0
      %v2340 = vadd.f32 0.0, %v2339
      %v2341 = vpop.f32.mrb[0].mxu0
      %2342 = vmatprep.mubr.bf16.mxu0 0
      %2343 = vmatmul.mubr.bf16.gmra.mrb[0].mxu0 %v901
      %v2344 = vpop.f32.mrb[0].mxu0
      %v2345 = vadd.f32 0.0, %v2344
      %v2346 = vpop.f32.mrb[0].mxu0
      %v2347 = vpop.f32.mrb[0].mxu0
      %v2348 = vadd.f32 0.0, %v2347
      %v2349 = vpop.f32.mrb[0].mxu0
      %2350 = vmatprep.mubr.bf16.mxu0 0
      %2351 = vmatmul.mubr.bf16.gmra.mrb[0].mxu0 %v904
      %v2352 = vpop.f32.mrb[0].mxu0
      %v2353 = vadd.f32 0.0, %v2352
      %v2354 = vpop.f32.mrb[0].mxu0
      %v2355 = vpop.f32.mrb[0].mxu0
      %v2356 = vadd.f32 0.0, %v2355
      %v2357 = vpop.f32.mrb[0].mxu0
      %2358 = vmatprep.mubr.bf16.mxu0 0
      %2359 = vmatmul.mubr.bf16.gmra.mrb[0].mxu0 %v907
      %v2360 = vpop.f32.mrb[0].mxu0
      %v2361 = vadd.f32 0.0, %v2360
      %v2362 = vpop.f32.mrb[0].mxu0
      %v2363 = vpop.f32.mrb[0].mxu0
      %v2364 = vadd.f32 0.0, %v2363
      %v2365 = vpop.f32.mrb[0].mxu0
      %2366 = vmatprep.mubr.bf16.mxu0 0
      %2367 = vmatmul.mubr.bf16.gmra.mrb[0].mxu0 %v1551
      %v2368 = vpop.f32.mrb[0].mxu0
      %v2369 = vadd.f32 0.0, %v2368
      %v2370 = vpop.f32.mrb[0].mxu0
      %v2371 = vpop.f32.mrb[0].mxu0
      %v2372 = vadd.f32 0.0, %v2371
      %v2373 = vpop.f32.mrb[0].mxu0
      %2374 = vmatprep.mubr.bf16.mxu0 0
      %2375 = vmatmul.mubr.bf16.gmra.mrb[0].mxu0 %v2222
      %v2376 = vpop.f32.mrb[0].mxu0
      %v2377 = vadd.f32 0.0, %v2376
      %v2378 = vpop.f32.mrb[0].mxu0
      %v2379 = vpop.f32.mrb[0].mxu0
      %v2380 = vadd.f32 0.0, %v2379
      %v2381 = vpop.f32.mrb[0].mxu0
      %2382 = vmatprep.mubr.bf16.mxu0 0
      %2383 = vmatmul.mubr.bf16.gmra.mrb[0].mxu0 %v2225
      %v2384 = vpop.f32.mrb[0].mxu0
      %v2385 = vadd.f32 0.0, %v2384
      %v2386 = vpop.f32.mrb[0].mxu0
      %v2387 = vpop.f32.mrb[0].mxu0
      %v2388 = vadd.f32 0.0, %v2387
      %v2389 = vpop.f32.mrb[0].mxu0
      %2390 = vdwg.mxu0
      %v2391 = vadd.f32 %v2153, %v2265
      %v2392 = vadd.f32 %v2154, %v2268
      %v2393 = vadd.f32 %v2155, %v2273
      %v2394 = vadd.f32 %v2156, %v2276
      %v2395 = vadd.f32 %v2157, %v2281
      %v2396 = vadd.f32 %v2158, %v2284
      %v2397 = vadd.f32 %v2159, %v2289
      %v2398 = vadd.f32 %v2160, %v2292
      %v2399 = vadd.f32 %v2161, %v2297
      %v2400 = vadd.f32 %v2162, %v2300
      %v2401 = vadd.f32 %v2163, %v2305
      %v2402 = vadd.f32 %v2164, %v2308
      %v2403 = vadd.f32 %v2165, %v2313
      %v2404 = vadd.f32 %v2166, %v2316
      %v2405 = vadd.f32 %v2167, %v2321
      %v2406 = vadd.f32 %v2168, %v2324
      %v2407 = vadd.f32 %v2169, %v2329
      %v2408 = vadd.f32 %v2170, %v2332
      %v2409 = vadd.f32 %v2171, %v2337
      %v2410 = vadd.f32 %v2172, %v2340
      %v2411 = vadd.f32 %v2173, %v2345
      %v2412 = vadd.f32 %v2174, %v2348
      %v2413 = vadd.f32 %v2175, %v2353
      %v2414 = vadd.f32 %v2176, %v2356
      %v2415 = vadd.f32 %v2177, %v2361
      %v2416 = vadd.f32 %v2178, %v2364
      %v2417 = vadd.f32 %v2179, %v2369
      %v2418 = vadd.f32 %v2180, %v2372
      %v2419 = vadd.f32 %v2181, %v2377
      %v2420 = vadd.f32 %v2182, %v2380
      %v2421 = vadd.f32 %v2183, %v2385
      %v2422 = vadd.f32 %v2184, %v2388
      %v2424 = vsel %vm546, %v403, 0
      %2426 = vmatprep.subr.bf16.mxu0 0
      %2427 = vmatpush1.bf16.msra.mxu0 %v2424
      %2428 = vmatprep.subr.bf16.mxu0 0
      %2429 = vmatpush1.bf16.msra.mxu0 0
      %2430 = vmatprep.subr.bf16.mxu0 0
      %2431 = vmatpush1.bf16.msra.mxu0 0
      %2432 = vmatprep.subr.bf16.mxu0 0
      %2433 = vmatpush1.bf16.msra.mxu0 0
      %2434 = vmatprep.subr.bf16.mxu0 0
      %2435 = vmatpush1.bf16.msra.mxu0 0
      %2436 = vmatprep.subr.bf16.mxu0 0
      %2437 = vmatpush1.bf16.msra.mxu0 0
      %2438 = vmatprep.subr.bf16.mxu0 0
      %2439 = vmatpush1.bf16.msra.mxu0 0
      %2440 = vmatprep.subr.bf16.mxu0 0
      %2441 = vmatpush1.bf16.msra.mxu0 0
      %2442 = vmatprep.subr.bf16.mxu0 0
      %2443 = vmatpush1.bf16.msra.mxu0 0
      %2444 = vmatprep.subr.bf16.mxu0 0
      %2445 = vmatpush1.bf16.msra.mxu0 0
      %2446 = vmatprep.subr.bf16.mxu0 0
      %2447 = vmatpush1.bf16.msra.mxu0 0
      %2448 = vmatprep.subr.bf16.mxu0 0
      %2449 = vmatpush1.bf16.msra.mxu0 0
      %2450 = vmatprep.subr.bf16.mxu0 0
      %2451 = vmatpush1.bf16.msra.mxu0 0
      %2452 = vmatprep.subr.bf16.mxu0 0
      %2453 = vmatpush1.bf16.msra.mxu0 0
      %2454 = vmatprep.subr.bf16.mxu0 0
      %2455 = vmatpush1.bf16.msra.mxu0 0
      %2456 = vmatprep.subr.bf16.mxu0 0
      %2457 = vmatpush1.bf16.msra.mxu0 0
      %2458 = vmatprep.mubr.bf16.mxu0 0
      %2459 = vmatmul.mubr.bf16.gmra.mrb[0].mxu0 %v505
      %v2460 = vpop.f32.mrb[0].mxu0
      %v2461 = vadd.f32 0.0, %v2460
      %v2462 = vpop.f32.mrb[0].mxu0
      %v2463 = vpop.f32.mrb[0].mxu0
      %v2464 = vadd.f32 0.0, %v2463
      %v2465 = vpop.f32.mrb[0].mxu0
      %2466 = vmatprep.mubr.bf16.mxu0 0
      %2467 = vmatmul.mubr.bf16.gmra.mrb[0].mxu0 %v508
      %v2468 = vpop.f32.mrb[0].mxu0
      %v2469 = vadd.f32 0.0, %v2468
      %v2470 = vpop.f32.mrb[0].mxu0
      %v2471 = vpop.f32.mrb[0].mxu0
      %v2472 = vadd.f32 0.0, %v2471
      %v2473 = vpop.f32.mrb[0].mxu0
      %2474 = vmatprep.mubr.bf16.mxu0 0
      %2475 = vmatmul.mubr.bf16.gmra.mrb[0].mxu0 %v511
      %v2476 = vpop.f32.mrb[0].mxu0
      %v2477 = vadd.f32 0.0, %v2476
      %v2478 = vpop.f32.mrb[0].mxu0
      %v2479 = vpop.f32.mrb[0].mxu0
      %v2480 = vadd.f32 0.0, %v2479
      %v2481 = vpop.f32.mrb[0].mxu0
      %2482 = vmatprep.mubr.bf16.mxu0 0
      %2483 = vmatmul.mubr.bf16.gmra.mrb[0].mxu0 %v514
      %v2484 = vpop.f32.mrb[0].mxu0
      %v2485 = vadd.f32 0.0, %v2484
      %v2486 = vpop.f32.mrb[0].mxu0
      %v2487 = vpop.f32.mrb[0].mxu0
      %v2488 = vadd.f32 0.0, %v2487
      %v2489 = vpop.f32.mrb[0].mxu0
      %2490 = vmatprep.mubr.bf16.mxu0 0
      %2491 = vmatmul.mubr.bf16.gmra.mrb[0].mxu0 %v517
      %v2492 = vpop.f32.mrb[0].mxu0
      %v2493 = vadd.f32 0.0, %v2492
      %v2494 = vpop.f32.mrb[0].mxu0
      %v2495 = vpop.f32.mrb[0].mxu0
      %v2496 = vadd.f32 0.0, %v2495
      %v2497 = vpop.f32.mrb[0].mxu0
      %2498 = vmatprep.mubr.bf16.mxu0 0
      %2499 = vmatmul.mubr.bf16.gmra.mrb[0].mxu0 %v520
      %v2500 = vpop.f32.mrb[0].mxu0
      %v2501 = vadd.f32 0.0, %v2500
      %v2502 = vpop.f32.mrb[0].mxu0
      %v2503 = vpop.f32.mrb[0].mxu0
      %v2504 = vadd.f32 0.0, %v2503
      %v2505 = vpop.f32.mrb[0].mxu0
      %2506 = vmatprep.mubr.bf16.mxu0 0
      %2507 = vmatmul.mubr.bf16.gmra.mrb[0].mxu0 %v523
      %v2508 = vpop.f32.mrb[0].mxu0
      %v2509 = vadd.f32 0.0, %v2508
      %v2510 = vpop.f32.mrb[0].mxu0
      %v2511 = vpop.f32.mrb[0].mxu0
      %v2512 = vadd.f32 0.0, %v2511
      %v2513 = vpop.f32.mrb[0].mxu0
      %2514 = vmatprep.mubr.bf16.mxu0 0
      %2515 = vmatmul.mubr.bf16.gmra.mrb[0].mxu0 %v526
      %v2516 = vpop.f32.mrb[0].mxu0
      %v2517 = vadd.f32 0.0, %v2516
      %v2518 = vpop.f32.mrb[0].mxu0
      %v2519 = vpop.f32.mrb[0].mxu0
      %v2520 = vadd.f32 0.0, %v2519
      %v2521 = vpop.f32.mrb[0].mxu0
      %2522 = vmatprep.mubr.bf16.mxu0 0
      %2523 = vmatmul.mubr.bf16.gmra.mrb[0].mxu0 %v529
      %v2524 = vpop.f32.mrb[0].mxu0
      %v2525 = vadd.f32 0.0, %v2524
      %v2526 = vpop.f32.mrb[0].mxu0
      %v2527 = vpop.f32.mrb[0].mxu0
      %v2528 = vadd.f32 0.0, %v2527
      %v2529 = vpop.f32.mrb[0].mxu0
      %2530 = vmatprep.mubr.bf16.mxu0 0
      %2531 = vmatmul.mubr.bf16.gmra.mrb[0].mxu0 %v532
      %v2532 = vpop.f32.mrb[0].mxu0
      %v2533 = vadd.f32 0.0, %v2532
      %v2534 = vpop.f32.mrb[0].mxu0
      %v2535 = vpop.f32.mrb[0].mxu0
      %v2536 = vadd.f32 0.0, %v2535
      %v2537 = vpop.f32.mrb[0].mxu0
      %2538 = vmatprep.mubr.bf16.mxu0 0
      %2539 = vmatmul.mubr.bf16.gmra.mrb[0].mxu0 %v535
      %v2540 = vpop.f32.mrb[0].mxu0
      %v2541 = vadd.f32 0.0, %v2540
      %v2542 = vpop.f32.mrb[0].mxu0
      %v2543 = vpop.f32.mrb[0].mxu0
      %v2544 = vadd.f32 0.0, %v2543
      %v2545 = vpop.f32.mrb[0].mxu0
      %2546 = vmatprep.mubr.bf16.mxu0 0
      %2547 = vmatmul.mubr.bf16.gmra.mrb[0].mxu0 %v538
      %v2548 = vpop.f32.mrb[0].mxu0
      %v2549 = vadd.f32 0.0, %v2548
      %v2550 = vpop.f32.mrb[0].mxu0
      %v2551 = vpop.f32.mrb[0].mxu0
      %v2552 = vadd.f32 0.0, %v2551
      %v2553 = vpop.f32.mrb[0].mxu0
      %2554 = vmatprep.mubr.bf16.mxu0 0
      %2555 = vmatmul.mubr.bf16.gmra.mrb[0].mxu0 %v541
      %v2556 = vpop.f32.mrb[0].mxu0
      %v2557 = vadd.f32 0.0, %v2556
      %v2558 = vpop.f32.mrb[0].mxu0
      %v2559 = vpop.f32.mrb[0].mxu0
      %v2560 = vadd.f32 0.0, %v2559
      %v2561 = vpop.f32.mrb[0].mxu0
      %2562 = vmatprep.mubr.bf16.mxu0 0
      %2563 = vmatmul.mubr.bf16.gmra.mrb[0].mxu0 %v544
      %v2564 = vpop.f32.mrb[0].mxu0
      %v2565 = vadd.f32 0.0, %v2564
      %v2566 = vpop.f32.mrb[0].mxu0
      %v2567 = vpop.f32.mrb[0].mxu0
      %v2568 = vadd.f32 0.0, %v2567
      %v2569 = vpop.f32.mrb[0].mxu0
      %2570 = vmatprep.mubr.bf16.mxu0 0
      %2571 = vmatmul.mubr.bf16.gmra.mrb[0].mxu0 %v1754
      %v2572 = vpop.f32.mrb[0].mxu0
      %v2573 = vadd.f32 0.0, %v2572
      %v2574 = vpop.f32.mrb[0].mxu0
      %v2575 = vpop.f32.mrb[0].mxu0
      %v2576 = vadd.f32 0.0, %v2575
      %v2577 = vpop.f32.mrb[0].mxu0
      %2578 = vmatprep.mubr.bf16.mxu0 0
      %2579 = vmatmul.mubr.bf16.gmra.mrb[0].mxu0 %v499
      %v2580 = vpop.f32.mrb[0].mxu0
      %v2581 = vadd.f32 0.0, %v2580
      %v2582 = vpop.f32.mrb[0].mxu0
      %v2583 = vpop.f32.mrb[0].mxu0
      %v2584 = vadd.f32 0.0, %v2583
      %v2585 = vpop.f32.mrb[0].mxu0
      %2586 = vdwg.mxu0
      %v2587 = vadd.f32 %v2391, %v2461
      %v2588 = vadd.f32 %v2392, %v2464
      %v2589 = vadd.f32 %v2393, %v2469
      %v2590 = vadd.f32 %v2394, %v2472
      %v2591 = vadd.f32 %v2395, %v2477
      %v2592 = vadd.f32 %v2396, %v2480
      %v2593 = vadd.f32 %v2397, %v2485
      %v2594 = vadd.f32 %v2398, %v2488
      %v2595 = vadd.f32 %v2399, %v2493
      %v2596 = vadd.f32 %v2400, %v2496
      %v2597 = vadd.f32 %v2401, %v2501
      %v2598 = vadd.f32 %v2402, %v2504
      %v2599 = vadd.f32 %v2403, %v2509
      %v2600 = vadd.f32 %v2404, %v2512
      %v2601 = vadd.f32 %v2405, %v2517
      %v2602 = vadd.f32 %v2406, %v2520
      %v2603 = vadd.f32 %v2407, %v2525
      %v2604 = vadd.f32 %v2408, %v2528
      %v2605 = vadd.f32 %v2409, %v2533
      %v2606 = vadd.f32 %v2410, %v2536
      %v2607 = vadd.f32 %v2411, %v2541
      %v2608 = vadd.f32 %v2412, %v2544
      %v2609 = vadd.f32 %v2413, %v2549
      %v2610 = vadd.f32 %v2414, %v2552
      %v2611 = vadd.f32 %v2415, %v2557
      %v2612 = vadd.f32 %v2416, %v2560
      %v2613 = vadd.f32 %v2417, %v2565
      %v2614 = vadd.f32 %v2418, %v2568
      %v2615 = vadd.f32 %v2419, %v2573
      %v2616 = vadd.f32 %v2420, %v2576
      %v2617 = vadd.f32 %v2421, %v2581
      %v2618 = vadd.f32 %v2422, %v2584
      %v2619 = vmul.f32 %v357, %v1079
      %v2620 = vmul.f32 %v1082, 0.0
      %v2621 = vpack.c.bf16 %v1092, %v2619
      %v2622 = vpack.c.bf16 %v1088, %v2620
      %v2624 = vshrl.u32 %v2621, 16
      %v2626 = vshll.u32 %v2621, 16
      %v2628 = vrot.slane %v2626, 1
      %v2629 = vor.u32 %v2624, %v2628
      %v2630 = vsel %vm1137, %v2629, %v1164
      %v2632 = vshll.u32 %v2622, 16
      %v2634 = vrot.slane %v2632, 1
      %v2635 = vsel %vm1137, %v1974, %v2634
      %v2636 = vshrl.u32 %v2622, 16
      %v2638 = vor.u32 %v2636, %v2634
      %v2639 = vsel %vm1137, %v2638, %v1978
      %v2641 = vsel %vm497, %v2630, 0
      %v2644 = vsel %vm497, %v2635, 0
      %v2647 = vsel %vm497, %v2639, 0
      %v2650 = vsel %vm546, %v404, 0
      %2652 = vmatprep.subr.bf16.mxu0 0
      %2653 = vmatpush1.bf16.msra.mxu0 %v2650
      %2654 = vmatprep.subr.bf16.mxu0 0
      %2655 = vmatpush1.bf16.msra.mxu0 0
      %2656 = vmatprep.subr.bf16.mxu0 0
      %2657 = vmatpush1.bf16.msra.mxu0 0
      %2658 = vmatprep.subr.bf16.mxu0 0
      %2659 = vmatpush1.bf16.msra.mxu0 0
      %2660 = vmatprep.subr.bf16.mxu0 0
      %2661 = vmatpush1.bf16.msra.mxu0 0
      %2662 = vmatprep.subr.bf16.mxu0 0
      %2663 = vmatpush1.bf16.msra.mxu0 0
      %2664 = vmatprep.subr.bf16.mxu0 0
      %2665 = vmatpush1.bf16.msra.mxu0 0
      %2666 = vmatprep.subr.bf16.mxu0 0
      %2667 = vmatpush1.bf16.msra.mxu0 0
      %2668 = vmatprep.subr.bf16.mxu0 0
      %2669 = vmatpush1.bf16.msra.mxu0 0
      %2670 = vmatprep.subr.bf16.mxu0 0
      %2671 = vmatpush1.bf16.msra.mxu0 0
      %2672 = vmatprep.subr.bf16.mxu0 0
      %2673 = vmatpush1.bf16.msra.mxu0 0
      %2674 = vmatprep.subr.bf16.mxu0 0
      %2675 = vmatpush1.bf16.msra.mxu0 0
      %2676 = vmatprep.subr.bf16.mxu0 0
      %2677 = vmatpush1.bf16.msra.mxu0 0
      %2678 = vmatprep.subr.bf16.mxu0 0
      %2679 = vmatpush1.bf16.msra.mxu0 0
      %2680 = vmatprep.subr.bf16.mxu0 0
      %2681 = vmatpush1.bf16.msra.mxu0 0
      %2682 = vmatprep.subr.bf16.mxu0 0
      %2683 = vmatpush1.bf16.msra.mxu0 0
      %2684 = vmatprep.mubr.bf16.mxu0 0
      %2685 = vmatmul.mubr.bf16.gmra.mrb[0].mxu0 %v2641
      %v2686 = vpop.f32.mrb[0].mxu0
      %v2687 = vadd.f32 0.0, %v2686
      %v2688 = vpop.f32.mrb[0].mxu0
      %v2689 = vpop.f32.mrb[0].mxu0
      %v2690 = vadd.f32 0.0, %v2689
      %v2691 = vpop.f32.mrb[0].mxu0
      %2692 = vmatprep.mubr.bf16.mxu0 0
      %2693 = vmatmul.mubr.bf16.gmra.mrb[0].mxu0 %v1280
      %v2694 = vpop.f32.mrb[0].mxu0
      %v2695 = vadd.f32 0.0, %v2694
      %v2696 = vpop.f32.mrb[0].mxu0
      %v2697 = vpop.f32.mrb[0].mxu0
      %v2698 = vadd.f32 0.0, %v2697
      %v2699 = vpop.f32.mrb[0].mxu0
      %2700 = vmatprep.mubr.bf16.mxu0 0
      %2701 = vmatmul.mubr.bf16.gmra.mrb[0].mxu0 %v1283
      %v2702 = vpop.f32.mrb[0].mxu0
      %v2703 = vadd.f32 0.0, %v2702
      %v2704 = vpop.f32.mrb[0].mxu0
      %v2705 = vpop.f32.mrb[0].mxu0
      %v2706 = vadd.f32 0.0, %v2705
      %v2707 = vpop.f32.mrb[0].mxu0
      %2708 = vmatprep.mubr.bf16.mxu0 0
      %2709 = vmatmul.mubr.bf16.gmra.mrb[0].mxu0 %v1286
      %v2710 = vpop.f32.mrb[0].mxu0
      %v2711 = vadd.f32 0.0, %v2710
      %v2712 = vpop.f32.mrb[0].mxu0
      %v2713 = vpop.f32.mrb[0].mxu0
      %v2714 = vadd.f32 0.0, %v2713
      %v2715 = vpop.f32.mrb[0].mxu0
      %2716 = vmatprep.mubr.bf16.mxu0 0
      %2717 = vmatmul.mubr.bf16.gmra.mrb[0].mxu0 %v1289
      %v2718 = vpop.f32.mrb[0].mxu0
      %v2719 = vadd.f32 0.0, %v2718
      %v2720 = vpop.f32.mrb[0].mxu0
      %v2721 = vpop.f32.mrb[0].mxu0
      %v2722 = vadd.f32 0.0, %v2721
      %v2723 = vpop.f32.mrb[0].mxu0
      %2724 = vmatprep.mubr.bf16.mxu0 0
      %2725 = vmatmul.mubr.bf16.gmra.mrb[0].mxu0 %v1292
      %v2726 = vpop.f32.mrb[0].mxu0
      %v2727 = vadd.f32 0.0, %v2726
      %v2728 = vpop.f32.mrb[0].mxu0
      %v2729 = vpop.f32.mrb[0].mxu0
      %v2730 = vadd.f32 0.0, %v2729
      %v2731 = vpop.f32.mrb[0].mxu0
      %2732 = vmatprep.mubr.bf16.mxu0 0
      %2733 = vmatmul.mubr.bf16.gmra.mrb[0].mxu0 %v1295
      %v2734 = vpop.f32.mrb[0].mxu0
      %v2735 = vadd.f32 0.0, %v2734
      %v2736 = vpop.f32.mrb[0].mxu0
      %v2737 = vpop.f32.mrb[0].mxu0
      %v2738 = vadd.f32 0.0, %v2737
      %v2739 = vpop.f32.mrb[0].mxu0
      %2740 = vmatprep.mubr.bf16.mxu0 0
      %2741 = vmatmul.mubr.bf16.gmra.mrb[0].mxu0 %v1298
      %v2742 = vpop.f32.mrb[0].mxu0
      %v2743 = vadd.f32 0.0, %v2742
      %v2744 = vpop.f32.mrb[0].mxu0
      %v2745 = vpop.f32.mrb[0].mxu0
      %v2746 = vadd.f32 0.0, %v2745
      %v2747 = vpop.f32.mrb[0].mxu0
      %2748 = vmatprep.mubr.bf16.mxu0 0
      %2749 = vmatmul.mubr.bf16.gmra.mrb[0].mxu0 %v1301
      %v2750 = vpop.f32.mrb[0].mxu0
      %v2751 = vadd.f32 0.0, %v2750
      %v2752 = vpop.f32.mrb[0].mxu0
      %v2753 = vpop.f32.mrb[0].mxu0
      %v2754 = vadd.f32 0.0, %v2753
      %v2755 = vpop.f32.mrb[0].mxu0
      %2756 = vmatprep.mubr.bf16.mxu0 0
      %2757 = vmatmul.mubr.bf16.gmra.mrb[0].mxu0 %v1304
      %v2758 = vpop.f32.mrb[0].mxu0
      %v2759 = vadd.f32 0.0, %v2758
      %v2760 = vpop.f32.mrb[0].mxu0
      %v2761 = vpop.f32.mrb[0].mxu0
      %v2762 = vadd.f32 0.0, %v2761
      %v2763 = vpop.f32.mrb[0].mxu0
      %2764 = vmatprep.mubr.bf16.mxu0 0
      %2765 = vmatmul.mubr.bf16.gmra.mrb[0].mxu0 %v1307
      %v2766 = vpop.f32.mrb[0].mxu0
      %v2767 = vadd.f32 0.0, %v2766
      %v2768 = vpop.f32.mrb[0].mxu0
      %v2769 = vpop.f32.mrb[0].mxu0
      %v2770 = vadd.f32 0.0, %v2769
      %v2771 = vpop.f32.mrb[0].mxu0
      %2772 = vmatprep.mubr.bf16.mxu0 0
      %2773 = vmatmul.mubr.bf16.gmra.mrb[0].mxu0 %v1310
      %v2774 = vpop.f32.mrb[0].mxu0
      %v2775 = vadd.f32 0.0, %v2774
      %v2776 = vpop.f32.mrb[0].mxu0
      %v2777 = vpop.f32.mrb[0].mxu0
      %v2778 = vadd.f32 0.0, %v2777
      %v2779 = vpop.f32.mrb[0].mxu0
      %2780 = vmatprep.mubr.bf16.mxu0 0
      %2781 = vmatmul.mubr.bf16.gmra.mrb[0].mxu0 %v1313
      %v2782 = vpop.f32.mrb[0].mxu0
      %v2783 = vadd.f32 0.0, %v2782
      %v2784 = vpop.f32.mrb[0].mxu0
      %v2785 = vpop.f32.mrb[0].mxu0
      %v2786 = vadd.f32 0.0, %v2785
      %v2787 = vpop.f32.mrb[0].mxu0
      %2788 = vmatprep.mubr.bf16.mxu0 0
      %2789 = vmatmul.mubr.bf16.gmra.mrb[0].mxu0 %v1984
      %v2790 = vpop.f32.mrb[0].mxu0
      %v2791 = vadd.f32 0.0, %v2790
      %v2792 = vpop.f32.mrb[0].mxu0
      %v2793 = vpop.f32.mrb[0].mxu0
      %v2794 = vadd.f32 0.0, %v2793
      %v2795 = vpop.f32.mrb[0].mxu0
      %2796 = vmatprep.mubr.bf16.mxu0 0
      %2797 = vmatmul.mubr.bf16.gmra.mrb[0].mxu0 %v2644
      %v2798 = vpop.f32.mrb[0].mxu0
      %v2799 = vadd.f32 0.0, %v2798
      %v2800 = vpop.f32.mrb[0].mxu0
      %v2801 = vpop.f32.mrb[0].mxu0
      %v2802 = vadd.f32 0.0, %v2801
      %v2803 = vpop.f32.mrb[0].mxu0
      %2804 = vmatprep.mubr.bf16.mxu0 0
      %2805 = vmatmul.mubr.bf16.gmra.mrb[0].mxu0 %v2647
      %v2806 = vpop.f32.mrb[0].mxu0
      %v2807 = vadd.f32 0.0, %v2806
      %v2808 = vpop.f32.mrb[0].mxu0
      %v2809 = vpop.f32.mrb[0].mxu0
      %v2810 = vadd.f32 0.0, %v2809
      %v2811 = vpop.f32.mrb[0].mxu0
      %2812 = vdwg.mxu0
      %v2813 = vadd.f32 %v2587, %v2687
      %v2814 = vadd.f32 %v2588, %v2690
      %v2815 = vadd.f32 %v2589, %v2695
      %v2816 = vadd.f32 %v2590, %v2698
      %v2817 = vadd.f32 %v2591, %v2703
      %v2818 = vadd.f32 %v2592, %v2706
      %v2819 = vadd.f32 %v2593, %v2711
      %v2820 = vadd.f32 %v2594, %v2714
      %v2821 = vadd.f32 %v2595, %v2719
      %v2822 = vadd.f32 %v2596, %v2722
      %v2823 = vadd.f32 %v2597, %v2727
      %v2824 = vadd.f32 %v2598, %v2730
      %v2825 = vadd.f32 %v2599, %v2735
      %v2826 = vadd.f32 %v2600, %v2738
      %v2827 = vadd.f32 %v2601, %v2743
      %v2828 = vadd.f32 %v2602, %v2746
      %v2829 = vadd.f32 %v2603, %v2751
      %v2830 = vadd.f32 %v2604, %v2754
      %v2831 = vadd.f32 %v2605, %v2759
      %v2832 = vadd.f32 %v2606, %v2762
      %v2833 = vadd.f32 %v2607, %v2767
      %v2834 = vadd.f32 %v2608, %v2770
      %v2835 = vadd.f32 %v2609, %v2775
      %v2836 = vadd.f32 %v2610, %v2778
      %v2837 = vadd.f32 %v2611, %v2783
      %v2838 = vadd.f32 %v2612, %v2786
      %v2839 = vadd.f32 %v2613, %v2791
      %v2840 = vadd.f32 %v2614, %v2794
      %v2841 = vadd.f32 %v2615, %v2799
      %v2842 = vadd.f32 %v2616, %v2802
      %v2843 = vadd.f32 %v2617, %v2807
      %v2844 = vadd.f32 %v2618, %v2810
      %v2845 = vmul.f32 %v291, %v425
      %v2846 = vmul.f32 %v292, %v426
      %v2847 = vmul.f32 %v293, %v425
      %v2848 = vmul.f32 %v294, %v426
      %v2849 = vmul.f32 %v295, %v425
      %v2850 = vmul.f32 %v296, %v426
      %v2851 = vmul.f32 %v297, %v425
      %v2852 = vmul.f32 %v298, %v426
      %v2853 = vmul.f32 %v299, %v425
      %v2854 = vmul.f32 %v300, %v426
      %v2855 = vmul.f32 %v301, %v425
      %v2856 = vmul.f32 %v302, %v426
      %v2857 = vmul.f32 %v303, %v425
      %v2858 = vmul.f32 %v304, %v426
      %v2859 = vmul.f32 %v305, %v425
      %v2860 = vmul.f32 %v306, %v426
      %v2861 = vmul.f32 %v307, %v425
      %v2862 = vmul.f32 %v308, %v426
      %v2863 = vmul.f32 %v309, %v425
      %v2864 = vmul.f32 %v310, %v426
      %v2865 = vmul.f32 %v311, %v425
      %v2866 = vmul.f32 %v312, %v426
      %v2867 = vmul.f32 %v313, %v425
      %v2868 = vmul.f32 %v314, %v426
      %v2869 = vmul.f32 %v315, %v425
      %v2870 = vmul.f32 %v316, %v426
      %v2871 = vmul.f32 %v317, %v425
      %v2872 = vmul.f32 %v318, %v426
      %v2873 = vmul.f32 %v319, %v425
      %v2874 = vmul.f32 %v320, %v424
      %v2875 = vpack.c.bf16 %v2845, %v433
      %v2876 = vpack.c.bf16 %v2847, %v2846
      %v2877 = vpack.c.bf16 %v2849, %v2848
      %v2878 = vpack.c.bf16 %v2851, %v2850
      %v2879 = vpack.c.bf16 %v2853, %v2852
      %v2880 = vpack.c.bf16 %v2855, %v2854
      %v2881 = vpack.c.bf16 %v2857, %v2856
      %v2882 = vpack.c.bf16 %v2859, %v2858
      %v2883 = vpack.c.bf16 %v2861, %v2860
      %v2884 = vpack.c.bf16 %v2863, %v2862
      %v2885 = vpack.c.bf16 %v2865, %v2864
      %v2886 = vpack.c.bf16 %v2867, %v2866
      %v2887 = vpack.c.bf16 %v2869, %v2868
      %v2888 = vpack.c.bf16 %v2871, %v2870
      %v2889 = vpack.c.bf16 %v2873, %v2872
      %v2890 = vpack.c.bf16 %v2874, %v2874
      %v2891 = vpack.c.bf16 %v292, %v291
      %v2892 = vpack.c.bf16 %v294, %v293
      %v2893 = vpack.c.bf16 %v296, %v295
      %v2894 = vpack.c.bf16 %v298, %v297
      %v2895 = vpack.c.bf16 %v300, %v299
      %v2896 = vpack.c.bf16 %v302, %v301
      %v2897 = vpack.c.bf16 %v304, %v303
      %v2898 = vpack.c.bf16 %v306, %v305
      %v2899 = vpack.c.bf16 %v308, %v307
      %v2900 = vpack.c.bf16 %v310, %v309
      %v2901 = vpack.c.bf16 %v312, %v311
      %v2902 = vpack.c.bf16 %v314, %v313
      %v2903 = vpack.c.bf16 %v316, %v315
      %v2904 = vpack.c.bf16 %v318, %v317
      %v2905 = vpack.c.bf16 %v320, %v319
      %v2907 = vsel %vm497, %v2891, 0
      %v2910 = vsel %vm497, %v2892, 0
      %v2913 = vsel %vm497, %v2893, 0
      %v2916 = vsel %vm497, %v2894, 0
      %v2919 = vsel %vm497, %v2895, 0
      %v2922 = vsel %vm497, %v2896, 0
      %v2925 = vsel %vm497, %v2897, 0
      %v2928 = vsel %vm497, %v2898, 0
      %v2931 = vsel %vm497, %v2899, 0
      %v2934 = vsel %vm497, %v2900, 0
      %v2937 = vsel %vm497, %v2901, 0
      %v2940 = vsel %vm497, %v2902, 0
      %v2943 = vsel %vm497, %v2903, 0
      %v2946 = vsel %vm497, %v2904, 0
      %v2949 = vsel %vm497, %v2905, 0
      %v2952 = vsel %vm546, %v388, 0
      %2954 = vmatprep.subr.bf16.mxu0 0
      %2955 = vmatpush1.bf16.msra.mxu0 %v2952
      %2956 = vmatprep.subr.bf16.mxu0 0
      %2957 = vmatpush1.bf16.msra.mxu0 0
      %2958 = vmatprep.subr.bf16.mxu0 0
      %2959 = vmatpush1.bf16.msra.mxu0 0
      %2960 = vmatprep.subr.bf16.mxu0 0
      %2961 = vmatpush1.bf16.msra.mxu0 0
      %2962 = vmatprep.subr.bf16.mxu0 0
      %2963 = vmatpush1.bf16.msra.mxu0 0
      %2964 = vmatprep.subr.bf16.mxu0 0
      %2965 = vmatpush1.bf16.msra.mxu0 0
      %2966 = vmatprep.subr.bf16.mxu0 0
      %2967 = vmatpush1.bf16.msra.mxu0 0
      %2968 = vmatprep.subr.bf16.mxu0 0
      %2969 = vmatpush1.bf16.msra.mxu0 0
      %2970 = vmatprep.subr.bf16.mxu0 0
      %2971 = vmatpush1.bf16.msra.mxu0 0
      %2972 = vmatprep.subr.bf16.mxu0 0
      %2973 = vmatpush1.bf16.msra.mxu0 0
      %2974 = vmatprep.subr.bf16.mxu0 0
      %2975 = vmatpush1.bf16.msra.mxu0 0
      %2976 = vmatprep.subr.bf16.mxu0 0
      %2977 = vmatpush1.bf16.msra.mxu0 0
      %2978 = vmatprep.subr.bf16.mxu0 0
      %2979 = vmatpush1.bf16.msra.mxu0 0
      %2980 = vmatprep.subr.bf16.mxu0 0
      %2981 = vmatpush1.bf16.msra.mxu0 0
      %2982 = vmatprep.subr.bf16.mxu0 0
      %2983 = vmatpush1.bf16.msra.mxu0 0
      %2984 = vmatprep.subr.bf16.mxu0 0
      %2985 = vmatpush1.bf16.msra.mxu0 0
      %2986 = vmatprep.mubr.bf16.mxu0 0
      %2987 = vmatmul.mubr.bf16.gmra.mrb[0].mxu0 %v499
      %v2988 = vpop.f32.mrb[0].mxu0
      %v2989 = vadd.f32 0.0, %v2988
      %v2990 = vpop.f32.mrb[0].mxu0
      %v2991 = vpop.f32.mrb[0].mxu0
      %v2992 = vadd.f32 0.0, %v2991
      %v2993 = vpop.f32.mrb[0].mxu0
      %2994 = vmatprep.mubr.bf16.mxu0 0
      %2995 = vmatmul.mubr.bf16.gmra.mrb[0].mxu0 %v2907
      %v2996 = vpop.f32.mrb[0].mxu0
      %v2997 = vadd.f32 0.0, %v2996
      %v2998 = vpop.f32.mrb[0].mxu0
      %v2999 = vpop.f32.mrb[0].mxu0
      %v3000 = vadd.f32 0.0, %v2999
      %v3001 = vpop.f32.mrb[0].mxu0
      %3002 = vmatprep.mubr.bf16.mxu0 0
      %3003 = vmatmul.mubr.bf16.gmra.mrb[0].mxu0 %v2910
      %v3004 = vpop.f32.mrb[0].mxu0
      %v3005 = vadd.f32 0.0, %v3004
      %v3006 = vpop.f32.mrb[0].mxu0
      %v3007 = vpop.f32.mrb[0].mxu0
      %v3008 = vadd.f32 0.0, %v3007
      %v3009 = vpop.f32.mrb[0].mxu0
      %3010 = vmatprep.mubr.bf16.mxu0 0
      %3011 = vmatmul.mubr.bf16.gmra.mrb[0].mxu0 %v2913
      %v3012 = vpop.f32.mrb[0].mxu0
      %v3013 = vadd.f32 0.0, %v3012
      %v3014 = vpop.f32.mrb[0].mxu0
      %v3015 = vpop.f32.mrb[0].mxu0
      %v3016 = vadd.f32 0.0, %v3015
      %v3017 = vpop.f32.mrb[0].mxu0
      %3018 = vmatprep.mubr.bf16.mxu0 0
      %3019 = vmatmul.mubr.bf16.gmra.mrb[0].mxu0 %v2916
      %v3020 = vpop.f32.mrb[0].mxu0
      %v3021 = vadd.f32 0.0, %v3020
      %v3022 = vpop.f32.mrb[0].mxu0
      %v3023 = vpop.f32.mrb[0].mxu0
      %v3024 = vadd.f32 0.0, %v3023
      %v3025 = vpop.f32.mrb[0].mxu0
      %3026 = vmatprep.mubr.bf16.mxu0 0
      %3027 = vmatmul.mubr.bf16.gmra.mrb[0].mxu0 %v2919
      %v3028 = vpop.f32.mrb[0].mxu0
      %v3029 = vadd.f32 0.0, %v3028
      %v3030 = vpop.f32.mrb[0].mxu0
      %v3031 = vpop.f32.mrb[0].mxu0
      %v3032 = vadd.f32 0.0, %v3031
      %v3033 = vpop.f32.mrb[0].mxu0
      %3034 = vmatprep.mubr.bf16.mxu0 0
      %3035 = vmatmul.mubr.bf16.gmra.mrb[0].mxu0 %v2922
      %v3036 = vpop.f32.mrb[0].mxu0
      %v3037 = vadd.f32 0.0, %v3036
      %v3038 = vpop.f32.mrb[0].mxu0
      %v3039 = vpop.f32.mrb[0].mxu0
      %v3040 = vadd.f32 0.0, %v3039
      %v3041 = vpop.f32.mrb[0].mxu0
      %3042 = vmatprep.mubr.bf16.mxu0 0
      %3043 = vmatmul.mubr.bf16.gmra.mrb[0].mxu0 %v2925
      %v3044 = vpop.f32.mrb[0].mxu0
      %v3045 = vadd.f32 0.0, %v3044
      %v3046 = vpop.f32.mrb[0].mxu0
      %v3047 = vpop.f32.mrb[0].mxu0
      %v3048 = vadd.f32 0.0, %v3047
      %v3049 = vpop.f32.mrb[0].mxu0
      %3050 = vmatprep.mubr.bf16.mxu0 0
      %3051 = vmatmul.mubr.bf16.gmra.mrb[0].mxu0 %v2928
      %v3052 = vpop.f32.mrb[0].mxu0
      %v3053 = vadd.f32 0.0, %v3052
      %v3054 = vpop.f32.mrb[0].mxu0
      %v3055 = vpop.f32.mrb[0].mxu0
      %v3056 = vadd.f32 0.0, %v3055
      %v3057 = vpop.f32.mrb[0].mxu0
      %3058 = vmatprep.mubr.bf16.mxu0 0
      %3059 = vmatmul.mubr.bf16.gmra.mrb[0].mxu0 %v2931
      %v3060 = vpop.f32.mrb[0].mxu0
      %v3061 = vadd.f32 0.0, %v3060
      %v3062 = vpop.f32.mrb[0].mxu0
      %v3063 = vpop.f32.mrb[0].mxu0
      %v3064 = vadd.f32 0.0, %v3063
      %v3065 = vpop.f32.mrb[0].mxu0
      %3066 = vmatprep.mubr.bf16.mxu0 0
      %3067 = vmatmul.mubr.bf16.gmra.mrb[0].mxu0 %v2934
      %v3068 = vpop.f32.mrb[0].mxu0
      %v3069 = vadd.f32 0.0, %v3068
      %v3070 = vpop.f32.mrb[0].mxu0
      %v3071 = vpop.f32.mrb[0].mxu0
      %v3072 = vadd.f32 0.0, %v3071
      %v3073 = vpop.f32.mrb[0].mxu0
      %3074 = vmatprep.mubr.bf16.mxu0 0
      %3075 = vmatmul.mubr.bf16.gmra.mrb[0].mxu0 %v2937
      %v3076 = vpop.f32.mrb[0].mxu0
      %v3077 = vadd.f32 0.0, %v3076
      %v3078 = vpop.f32.mrb[0].mxu0
      %v3079 = vpop.f32.mrb[0].mxu0
      %v3080 = vadd.f32 0.0, %v3079
      %v3081 = vpop.f32.mrb[0].mxu0
      %3082 = vmatprep.mubr.bf16.mxu0 0
      %3083 = vmatmul.mubr.bf16.gmra.mrb[0].mxu0 %v2940
      %v3084 = vpop.f32.mrb[0].mxu0
      %v3085 = vadd.f32 0.0, %v3084
      %v3086 = vpop.f32.mrb[0].mxu0
      %v3087 = vpop.f32.mrb[0].mxu0
      %v3088 = vadd.f32 0.0, %v3087
      %v3089 = vpop.f32.mrb[0].mxu0
      %3090 = vmatprep.mubr.bf16.mxu0 0
      %3091 = vmatmul.mubr.bf16.gmra.mrb[0].mxu0 %v2943
      %v3092 = vpop.f32.mrb[0].mxu0
      %v3093 = vadd.f32 0.0, %v3092
      %v3094 = vpop.f32.mrb[0].mxu0
      %v3095 = vpop.f32.mrb[0].mxu0
      %v3096 = vadd.f32 0.0, %v3095
      %v3097 = vpop.f32.mrb[0].mxu0
      %3098 = vmatprep.mubr.bf16.mxu0 0
      %3099 = vmatmul.mubr.bf16.gmra.mrb[0].mxu0 %v2946
      %v3100 = vpop.f32.mrb[0].mxu0
      %v3101 = vadd.f32 0.0, %v3100
      %v3102 = vpop.f32.mrb[0].mxu0
      %v3103 = vpop.f32.mrb[0].mxu0
      %v3104 = vadd.f32 0.0, %v3103
      %v3105 = vpop.f32.mrb[0].mxu0
      %3106 = vmatprep.mubr.bf16.mxu0 0
      %3107 = vmatmul.mubr.bf16.gmra.mrb[0].mxu0 %v2949
      %v3108 = vpop.f32.mrb[0].mxu0
      %v3109 = vadd.f32 0.0, %v3108
      %v3110 = vpop.f32.mrb[0].mxu0
      %v3111 = vpop.f32.mrb[0].mxu0
      %v3112 = vadd.f32 0.0, %v3111
      %v3113 = vpop.f32.mrb[0].mxu0
      %3114 = vdwg.mxu0
      %v3116 = vshrl.u32 %v2875, 16
      %v3118 = vrot.slane %v3116, 3
      %v3119 = vshll.u32 %v2875, 16
      %v3121 = vrot.slane %v3119, 4
      %v3122 = vor.u32 %v3118, %v3121
      %v3123 = vsel %vm711, %v719, %v3122
      %v3125 = vshrl.u32 %v2876, 16
      %v3127 = vrot.slane %v3125, 3
      %v3128 = vshll.u32 %v2876, 16
      %v3130 = vrot.slane %v3128, 4
      %v3131 = vor.u32 %v3127, %v3130
      %v3132 = vsel %vm711, %v3122, %v3131
      %v3134 = vshrl.u32 %v2877, 16
      %v3136 = vrot.slane %v3134, 3
      %v3137 = vshll.u32 %v2877, 16
      %v3139 = vrot.slane %v3137, 4
      %v3140 = vor.u32 %v3136, %v3139
      %v3141 = vsel %vm711, %v3131, %v3140
      %v3143 = vshrl.u32 %v2878, 16
      %v3145 = vrot.slane %v3143, 3
      %v3146 = vshll.u32 %v2878, 16
      %v3148 = vrot.slane %v3146, 4
      %v3149 = vor.u32 %v3145, %v3148
      %v3150 = vsel %vm711, %v3140, %v3149
      %v3152 = vshrl.u32 %v2879, 16
      %v3154 = vrot.slane %v3152, 3
      %v3155 = vshll.u32 %v2879, 16
      %v3157 = vrot.slane %v3155, 4
      %v3158 = vor.u32 %v3154, %v3157
      %v3159 = vsel %vm711, %v3149, %v3158
      %v3161 = vshrl.u32 %v2880, 16
      %v3163 = vrot.slane %v3161, 3
      %v3164 = vshll.u32 %v2880, 16
      %v3166 = vrot.slane %v3164, 4
      %v3167 = vor.u32 %v3163, %v3166
      %v3168 = vsel %vm711, %v3158, %v3167
      %v3170 = vshrl.u32 %v2881, 16
      %v3172 = vrot.slane %v3170, 3
      %v3173 = vshll.u32 %v2881, 16
      %v3175 = vrot.slane %v3173, 4
      %v3176 = vor.u32 %v3172, %v3175
      %v3177 = vsel %vm711, %v3167, %v3176
      %v3179 = vshrl.u32 %v2882, 16
      %v3181 = vrot.slane %v3179, 3
      %v3182 = vshll.u32 %v2882, 16
      %v3184 = vrot.slane %v3182, 4
      %v3185 = vor.u32 %v3181, %v3184
      %v3186 = vsel %vm711, %v3176, %v3185
      %v3188 = vshrl.u32 %v2883, 16
      %v3190 = vrot.slane %v3188, 3
      %v3191 = vshll.u32 %v2883, 16
      %v3193 = vrot.slane %v3191, 4
      %v3194 = vor.u32 %v3190, %v3193
      %v3195 = vsel %vm711, %v3185, %v3194
      %v3197 = vshrl.u32 %v2884, 16
      %v3199 = vrot.slane %v3197, 3
      %v3200 = vshll.u32 %v2884, 16
      %v3202 = vrot.slane %v3200, 4
      %v3203 = vor.u32 %v3199, %v3202
      %v3204 = vsel %vm711, %v3194, %v3203
      %v3206 = vshrl.u32 %v2885, 16
      %v3208 = vrot.slane %v3206, 3
      %v3209 = vshll.u32 %v2885, 16
      %v3211 = vrot.slane %v3209, 4
      %v3212 = vor.u32 %v3208, %v3211
      %v3213 = vsel %vm711, %v3203, %v3212
      %v3215 = vshrl.u32 %v2886, 16
      %v3217 = vrot.slane %v3215, 3
      %v3218 = vshll.u32 %v2886, 16
      %v3220 = vrot.slane %v3218, 4
      %v3221 = vor.u32 %v3217, %v3220
      %v3222 = vsel %vm711, %v3212, %v3221
      %v3224 = vshrl.u32 %v2887, 16
      %v3226 = vrot.slane %v3224, 3
      %v3227 = vshll.u32 %v2887, 16
      %v3229 = vrot.slane %v3227, 4
      %v3230 = vor.u32 %v3226, %v3229
      %v3231 = vsel %vm711, %v3221, %v3230
      %v3233 = vshrl.u32 %v2888, 16
      %v3235 = vrot.slane %v3233, 3
      %v3236 = vshll.u32 %v2888, 16
      %v3238 = vrot.slane %v3236, 4
      %v3239 = vor.u32 %v3235, %v3238
      %v3240 = vsel %vm711, %v3230, %v3239
      %v3242 = vshrl.u32 %v2889, 16
      %v3244 = vrot.slane %v3242, 3
      %v3245 = vshll.u32 %v2889, 16
      %v3247 = vrot.slane %v3245, 4
      %v3248 = vor.u32 %v3244, %v3247
      %v3249 = vsel %vm711, %v3239, %v3248
      %v3251 = vshrl.u32 %v2890, 16
      %v3253 = vrot.slane %v3251, 3
      %v3254 = vshll.u32 %v2890, 16
      %v3256 = vrot.slane %v3254, 4
      %v3257 = vor.u32 %v3253, %v3256
      %v3258 = vsel %vm711, %v3248, %v3257
      %v3260 = vsel %vm497, %v3123, 0
      %v3263 = vsel %vm497, %v3132, 0
      %v3266 = vsel %vm497, %v3141, 0
      %v3269 = vsel %vm497, %v3150, 0
      %v3272 = vsel %vm497, %v3159, 0
      %v3275 = vsel %vm497, %v3168, 0
      %v3278 = vsel %vm497, %v3177, 0
      %v3281 = vsel %vm497, %v3186, 0
      %v3284 = vsel %vm497, %v3195, 0
      %v3287 = vsel %vm497, %v3204, 0
      %v3290 = vsel %vm497, %v3213, 0
      %v3293 = vsel %vm497, %v3222, 0
      %v3296 = vsel %vm497, %v3231, 0
      %v3299 = vsel %vm497, %v3240, 0
      %v3302 = vsel %vm497, %v3249, 0
      %v3305 = vsel %vm497, %v3258, 0
      %v3308 = vsel %vm546, %v387, 0
      %3310 = vmatprep.subr.bf16.mxu0 0
      %3311 = vmatpush1.bf16.msra.mxu0 %v3308
      %3312 = vmatprep.subr.bf16.mxu0 0
      %3313 = vmatpush1.bf16.msra.mxu0 0
      %3314 = vmatprep.subr.bf16.mxu0 0
      %3315 = vmatpush1.bf16.msra.mxu0 0
      %3316 = vmatprep.subr.bf16.mxu0 0
      %3317 = vmatpush1.bf16.msra.mxu0 0
      %3318 = vmatprep.subr.bf16.mxu0 0
      %3319 = vmatpush1.bf16.msra.mxu0 0
      %3320 = vmatprep.subr.bf16.mxu0 0
      %3321 = vmatpush1.bf16.msra.mxu0 0
      %3322 = vmatprep.subr.bf16.mxu0 0
      %3323 = vmatpush1.bf16.msra.mxu0 0
      %3324 = vmatprep.subr.bf16.mxu0 0
      %3325 = vmatpush1.bf16.msra.mxu0 0
      %3326 = vmatprep.subr.bf16.mxu0 0
      %3327 = vmatpush1.bf16.msra.mxu0 0
      %3328 = vmatprep.subr.bf16.mxu0 0
      %3329 = vmatpush1.bf16.msra.mxu0 0
      %3330 = vmatprep.subr.bf16.mxu0 0
      %3331 = vmatpush1.bf16.msra.mxu0 0
      %3332 = vmatprep.subr.bf16.mxu0 0
      %3333 = vmatpush1.bf16.msra.mxu0 0
      %3334 = vmatprep.subr.bf16.mxu0 0
      %3335 = vmatpush1.bf16.msra.mxu0 0
      %3336 = vmatprep.subr.bf16.mxu0 0
      %3337 = vmatpush1.bf16.msra.mxu0 0
      %3338 = vmatprep.subr.bf16.mxu0 0
      %3339 = vmatpush1.bf16.msra.mxu0 0
      %3340 = vmatprep.subr.bf16.mxu0 0
      %3341 = vmatpush1.bf16.msra.mxu0 0
      %3342 = vmatprep.mubr.bf16.mxu0 0
      %3343 = vmatmul.mubr.bf16.gmra.mrb[0].mxu0 %v3260
      %v3344 = vpop.f32.mrb[0].mxu0
      %v3345 = vadd.f32 %v2989, %v3344
      %v3346 = vpop.f32.mrb[0].mxu0
      %v3347 = vpop.f32.mrb[0].mxu0
      %v3348 = vadd.f32 %v2992, %v3347
      %v3349 = vpop.f32.mrb[0].mxu0
      %3350 = vmatprep.mubr.bf16.mxu0 0
      %3351 = vmatmul.mubr.bf16.gmra.mrb[0].mxu0 %v3263
      %v3352 = vpop.f32.mrb[0].mxu0
      %v3353 = vadd.f32 %v2997, %v3352
      %v3354 = vpop.f32.mrb[0].mxu0
      %v3355 = vpop.f32.mrb[0].mxu0
      %v3356 = vadd.f32 %v3000, %v3355
      %v3357 = vpop.f32.mrb[0].mxu0
      %3358 = vmatprep.mubr.bf16.mxu0 0
      %3359 = vmatmul.mubr.bf16.gmra.mrb[0].mxu0 %v3266
      %v3360 = vpop.f32.mrb[0].mxu0
      %v3361 = vadd.f32 %v3005, %v3360
      %v3362 = vpop.f32.mrb[0].mxu0
      %v3363 = vpop.f32.mrb[0].mxu0
      %v3364 = vadd.f32 %v3008, %v3363
      %v3365 = vpop.f32.mrb[0].mxu0
      %3366 = vmatprep.mubr.bf16.mxu0 0
      %3367 = vmatmul.mubr.bf16.gmra.mrb[0].mxu0 %v3269
      %v3368 = vpop.f32.mrb[0].mxu0
      %v3369 = vadd.f32 %v3013, %v3368
      %v3370 = vpop.f32.mrb[0].mxu0
      %v3371 = vpop.f32.mrb[0].mxu0
      %v3372 = vadd.f32 %v3016, %v3371
      %v3373 = vpop.f32.mrb[0].mxu0
      %3374 = vmatprep.mubr.bf16.mxu0 0
      %3375 = vmatmul.mubr.bf16.gmra.mrb[0].mxu0 %v3272
      %v3376 = vpop.f32.mrb[0].mxu0
      %v3377 = vadd.f32 %v3021, %v3376
      %v3378 = vpop.f32.mrb[0].mxu0
      %v3379 = vpop.f32.mrb[0].mxu0
      %v3380 = vadd.f32 %v3024, %v3379
      %v3381 = vpop.f32.mrb[0].mxu0
      %3382 = vmatprep.mubr.bf16.mxu0 0
      %3383 = vmatmul.mubr.bf16.gmra.mrb[0].mxu0 %v3275
      %v3384 = vpop.f32.mrb[0].mxu0
      %v3385 = vadd.f32 %v3029, %v3384
      %v3386 = vpop.f32.mrb[0].mxu0
      %v3387 = vpop.f32.mrb[0].mxu0
      %v3388 = vadd.f32 %v3032, %v3387
      %v3389 = vpop.f32.mrb[0].mxu0
      %3390 = vmatprep.mubr.bf16.mxu0 0
      %3391 = vmatmul.mubr.bf16.gmra.mrb[0].mxu0 %v3278
      %v3392 = vpop.f32.mrb[0].mxu0
      %v3393 = vadd.f32 %v3037, %v3392
      %v3394 = vpop.f32.mrb[0].mxu0
      %v3395 = vpop.f32.mrb[0].mxu0
      %v3396 = vadd.f32 %v3040, %v3395
      %v3397 = vpop.f32.mrb[0].mxu0
      %3398 = vmatprep.mubr.bf16.mxu0 0
      %3399 = vmatmul.mubr.bf16.gmra.mrb[0].mxu0 %v3281
      %v3400 = vpop.f32.mrb[0].mxu0
      %v3401 = vadd.f32 %v3045, %v3400
      %v3402 = vpop.f32.mrb[0].mxu0
      %v3403 = vpop.f32.mrb[0].mxu0
      %v3404 = vadd.f32 %v3048, %v3403
      %v3405 = vpop.f32.mrb[0].mxu0
      %3406 = vmatprep.mubr.bf16.mxu0 0
      %3407 = vmatmul.mubr.bf16.gmra.mrb[0].mxu0 %v3284
      %v3408 = vpop.f32.mrb[0].mxu0
      %v3409 = vadd.f32 %v3053, %v3408
      %v3410 = vpop.f32.mrb[0].mxu0
      %v3411 = vpop.f32.mrb[0].mxu0
      %v3412 = vadd.f32 %v3056, %v3411
      %v3413 = vpop.f32.mrb[0].mxu0
      %3414 = vmatprep.mubr.bf16.mxu0 0
      %3415 = vmatmul.mubr.bf16.gmra.mrb[0].mxu0 %v3287
      %v3416 = vpop.f32.mrb[0].mxu0
      %v3417 = vadd.f32 %v3061, %v3416
      %v3418 = vpop.f32.mrb[0].mxu0
      %v3419 = vpop.f32.mrb[0].mxu0
      %v3420 = vadd.f32 %v3064, %v3419
      %v3421 = vpop.f32.mrb[0].mxu0
      %3422 = vmatprep.mubr.bf16.mxu0 0
      %3423 = vmatmul.mubr.bf16.gmra.mrb[0].mxu0 %v3290
      %v3424 = vpop.f32.mrb[0].mxu0
      %v3425 = vadd.f32 %v3069, %v3424
      %v3426 = vpop.f32.mrb[0].mxu0
      %v3427 = vpop.f32.mrb[0].mxu0
      %v3428 = vadd.f32 %v3072, %v3427
      %v3429 = vpop.f32.mrb[0].mxu0
      %3430 = vmatprep.mubr.bf16.mxu0 0
      %3431 = vmatmul.mubr.bf16.gmra.mrb[0].mxu0 %v3293
      %v3432 = vpop.f32.mrb[0].mxu0
      %v3433 = vadd.f32 %v3077, %v3432
      %v3434 = vpop.f32.mrb[0].mxu0
      %v3435 = vpop.f32.mrb[0].mxu0
      %v3436 = vadd.f32 %v3080, %v3435
      %v3437 = vpop.f32.mrb[0].mxu0
      %3438 = vmatprep.mubr.bf16.mxu0 0
      %3439 = vmatmul.mubr.bf16.gmra.mrb[0].mxu0 %v3296
      %v3440 = vpop.f32.mrb[0].mxu0
      %v3441 = vadd.f32 %v3085, %v3440
      %v3442 = vpop.f32.mrb[0].mxu0
      %v3443 = vpop.f32.mrb[0].mxu0
      %v3444 = vadd.f32 %v3088, %v3443
      %v3445 = vpop.f32.mrb[0].mxu0
      %3446 = vmatprep.mubr.bf16.mxu0 0
      %3447 = vmatmul.mubr.bf16.gmra.mrb[0].mxu0 %v3299
      %v3448 = vpop.f32.mrb[0].mxu0
      %v3449 = vadd.f32 %v3093, %v3448
      %v3450 = vpop.f32.mrb[0].mxu0
      %v3451 = vpop.f32.mrb[0].mxu0
      %v3452 = vadd.f32 %v3096, %v3451
      %v3453 = vpop.f32.mrb[0].mxu0
      %3454 = vmatprep.mubr.bf16.mxu0 0
      %3455 = vmatmul.mubr.bf16.gmra.mrb[0].mxu0 %v3302
      %v3456 = vpop.f32.mrb[0].mxu0
      %v3457 = vadd.f32 %v3101, %v3456
      %v3458 = vpop.f32.mrb[0].mxu0
      %v3459 = vpop.f32.mrb[0].mxu0
      %v3460 = vadd.f32 %v3104, %v3459
      %v3461 = vpop.f32.mrb[0].mxu0
      %3462 = vmatprep.mubr.bf16.mxu0 0
      %3463 = vmatmul.mubr.bf16.gmra.mrb[0].mxu0 %v3305
      %v3464 = vpop.f32.mrb[0].mxu0
      %v3465 = vadd.f32 %v3109, %v3464
      %v3466 = vpop.f32.mrb[0].mxu0
      %v3467 = vpop.f32.mrb[0].mxu0
      %v3468 = vadd.f32 %v3112, %v3467
      %v3469 = vpop.f32.mrb[0].mxu0
      %3470 = vdwg.mxu0
      %v3471 = vmul.f32 %v291, %v1082
      %v3472 = vmul.f32 %v292, %v1081
      %v3473 = vmul.f32 %v293, %v1082
      %v3474 = vmul.f32 %v294, %v1081
      %v3475 = vmul.f32 %v295, %v1082
      %v3476 = vmul.f32 %v296, %v1081
      %v3477 = vmul.f32 %v297, %v1082
      %v3478 = vmul.f32 %v298, %v1081
      %v3479 = vmul.f32 %v299, %v1082
      %v3480 = vmul.f32 %v300, %v1081
      %v3481 = vmul.f32 %v301, %v1082
      %v3482 = vmul.f32 %v302, %v1081
      %v3483 = vmul.f32 %v303, %v1082
      %v3484 = vmul.f32 %v304, %v1081
      %v3485 = vmul.f32 %v305, %v1082
      %v3486 = vmul.f32 %v306, %v1081
      %v3487 = vmul.f32 %v307, %v1082
      %v3488 = vmul.f32 %v308, %v1081
      %v3489 = vmul.f32 %v309, %v1082
      %v3490 = vmul.f32 %v310, %v1081
      %v3491 = vmul.f32 %v311, %v1082
      %v3492 = vmul.f32 %v312, %v1081
      %v3493 = vmul.f32 %v313, %v1082
      %v3494 = vmul.f32 %v314, %v1081
      %v3495 = vmul.f32 %v315, %v1082
      %v3496 = vmul.f32 %v316, %v1081
      %v3497 = vmul.f32 %v317, %v1082
      %v3498 = vmul.f32 %v318, %v1081
      %v3499 = vmul.f32 %v319, %v1082
      %v3500 = vmul.f32 %v320, %v1081
      %v3501 = vmul.f32 %v321, %v1080
      %v3502 = vpack.c.bf16 %v3472, %v3471
      %v3503 = vpack.c.bf16 %v3474, %v3473
      %v3504 = vpack.c.bf16 %v3476, %v3475
      %v3505 = vpack.c.bf16 %v3478, %v3477
      %v3506 = vpack.c.bf16 %v3480, %v3479
      %v3507 = vpack.c.bf16 %v3482, %v3481
      %v3508 = vpack.c.bf16 %v3484, %v3483
      %v3509 = vpack.c.bf16 %v3486, %v3485
      %v3510 = vpack.c.bf16 %v3488, %v3487
      %v3511 = vpack.c.bf16 %v3490, %v3489
      %v3512 = vpack.c.bf16 %v3492, %v3491
      %v3513 = vpack.c.bf16 %v3494, %v3493
      %v3514 = vpack.c.bf16 %v3496, %v3495
      %v3515 = vpack.c.bf16 %v3498, %v3497
      %v3516 = vpack.c.bf16 %v3500, %v3499
      %v3517 = vpack.c.bf16 %v3501, %v3501
      %v3519 = vshll.u32 %v3502, 16
      %v3521 = vrot.slane %v3519, 1
      %v3522 = vsel %vm1137, %v1144, %v3521
      %v3523 = vshrl.u32 %v3502, 16
      %v3525 = vor.u32 %v3523, %v3521
      %v3527 = vshll.u32 %v3503, 16
      %v3529 = vrot.slane %v3527, 1
      %v3530 = vsel %vm1137, %v3525, %v3529
      %v3531 = vshrl.u32 %v3503, 16
      %v3533 = vor.u32 %v3531, %v3529
      %v3535 = vshll.u32 %v3504, 16
      %v3537 = vrot.slane %v3535, 1
      %v3538 = vsel %vm1137, %v3533, %v3537
      %v3539 = vshrl.u32 %v3504, 16
      %v3541 = vor.u32 %v3539, %v3537
      %v3543 = vshll.u32 %v3505, 16
      %v3545 = vrot.slane %v3543, 1
      %v3546 = vsel %vm1137, %v3541, %v3545
      %v3547 = vshrl.u32 %v3505, 16
      %v3549 = vor.u32 %v3547, %v3545
      %v3551 = vshll.u32 %v3506, 16
      %v3553 = vrot.slane %v3551, 1
      %v3554 = vsel %vm1137, %v3549, %v3553
      %v3555 = vshrl.u32 %v3506, 16
      %v3557 = vor.u32 %v3555, %v3553
      %v3559 = vshll.u32 %v3507, 16
      %v3561 = vrot.slane %v3559, 1
      %v3562 = vsel %vm1137, %v3557, %v3561
      %v3563 = vshrl.u32 %v3507, 16
      %v3565 = vor.u32 %v3563, %v3561
      %v3567 = vshll.u32 %v3508, 16
      %v3569 = vrot.slane %v3567, 1
      %v3570 = vsel %vm1137, %v3565, %v3569
      %v3571 = vshrl.u32 %v3508, 16
      %v3573 = vor.u32 %v3571, %v3569
      %v3575 = vshll.u32 %v3509, 16
      %v3577 = vrot.slane %v3575, 1
      %v3578 = vsel %vm1137, %v3573, %v3577
      %v3579 = vshrl.u32 %v3509, 16
      %v3581 = vor.u32 %v3579, %v3577
      %v3583 = vshll.u32 %v3510, 16
      %v3585 = vrot.slane %v3583, 1
      %v3586 = vsel %vm1137, %v3581, %v3585
      %v3587 = vshrl.u32 %v3510, 16
      %v3589 = vor.u32 %v3587, %v3585
      %v3591 = vshll.u32 %v3511, 16
      %v3593 = vrot.slane %v3591, 1
      %v3594 = vsel %vm1137, %v3589, %v3593
      %v3595 = vshrl.u32 %v3511, 16
      %v3597 = vor.u32 %v3595, %v3593
      %v3599 = vshll.u32 %v3512, 16
      %v3601 = vrot.slane %v3599, 1
      %v3602 = vsel %vm1137, %v3597, %v3601
      %v3603 = vshrl.u32 %v3512, 16
      %v3605 = vor.u32 %v3603, %v3601
      %v3607 = vshll.u32 %v3513, 16
      %v3609 = vrot.slane %v3607, 1
      %v3610 = vsel %vm1137, %v3605, %v3609
      %v3611 = vshrl.u32 %v3513, 16
      %v3613 = vor.u32 %v3611, %v3609
      %v3615 = vshll.u32 %v3514, 16
      %v3617 = vrot.slane %v3615, 1
      %v3618 = vsel %vm1137, %v3613, %v3617
      %v3619 = vshrl.u32 %v3514, 16
      %v3621 = vor.u32 %v3619, %v3617
      %v3623 = vshll.u32 %v3515, 16
      %v3625 = vrot.slane %v3623, 1
      %v3626 = vsel %vm1137, %v3621, %v3625
      %v3627 = vshrl.u32 %v3515, 16
      %v3629 = vor.u32 %v3627, %v3625
      %v3631 = vshll.u32 %v3516, 16
      %v3633 = vrot.slane %v3631, 1
      %v3634 = vsel %vm1137, %v3629, %v3633
      %v3635 = vshrl.u32 %v3516, 16
      %v3637 = vor.u32 %v3635, %v3633
      %v3639 = vshll.u32 %v3517, 16
      %v3641 = vrot.slane %v3639, 1
      %v3642 = vsel %vm1137, %v3637, %v3641
      %v3644 = vsel %vm497, %v3522, 0
      %v3647 = vsel %vm497, %v3530, 0
      %v3650 = vsel %vm497, %v3538, 0
      %v3653 = vsel %vm497, %v3546, 0
      %v3656 = vsel %vm497, %v3554, 0
      %v3659 = vsel %vm497, %v3562, 0
      %v3662 = vsel %vm497, %v3570, 0
      %v3665 = vsel %vm497, %v3578, 0
      %v3668 = vsel %vm497, %v3586, 0
      %v3671 = vsel %vm497, %v3594, 0
      %v3674 = vsel %vm497, %v3602, 0
      %v3677 = vsel %vm497, %v3610, 0
      %v3680 = vsel %vm497, %v3618, 0
      %v3683 = vsel %vm497, %v3626, 0
      %v3686 = vsel %vm497, %v3634, 0
      %v3689 = vsel %vm497, %v3642, 0
      %v3692 = vsel %vm546, %v389, 0
      %3694 = vmatprep.subr.bf16.mxu0 0
      %3695 = vmatpush1.bf16.msra.mxu0 %v3692
      %3696 = vmatprep.subr.bf16.mxu0 0
      %3697 = vmatpush1.bf16.msra.mxu0 0
      %3698 = vmatprep.subr.bf16.mxu0 0
      %3699 = vmatpush1.bf16.msra.mxu0 0
      %3700 = vmatprep.subr.bf16.mxu0 0
      %3701 = vmatpush1.bf16.msra.mxu0 0
      %3702 = vmatprep.subr.bf16.mxu0 0
      %3703 = vmatpush1.bf16.msra.mxu0 0
      %3704 = vmatprep.subr.bf16.mxu0 0
      %3705 = vmatpush1.bf16.msra.mxu0 0
      %3706 = vmatprep.subr.bf16.mxu0 0
      %3707 = vmatpush1.bf16.msra.mxu0 0
      %3708 = vmatprep.subr.bf16.mxu0 0
      %3709 = vmatpush1.bf16.msra.mxu0 0
      %3710 = vmatprep.subr.bf16.mxu0 0
      %3711 = vmatpush1.bf16.msra.mxu0 0
      %3712 = vmatprep.subr.bf16.mxu0 0
      %3713 = vmatpush1.bf16.msra.mxu0 0
      %3714 = vmatprep.subr.bf16.mxu0 0
      %3715 = vmatpush1.bf16.msra.mxu0 0
      %3716 = vmatprep.subr.bf16.mxu0 0
      %3717 = vmatpush1.bf16.msra.mxu0 0
      %3718 = vmatprep.subr.bf16.mxu0 0
      %3719 = vmatpush1.bf16.msra.mxu0 0
      %3720 = vmatprep.subr.bf16.mxu0 0
      %3721 = vmatpush1.bf16.msra.mxu0 0
      %3722 = vmatprep.subr.bf16.mxu0 0
      %3723 = vmatpush1.bf16.msra.mxu0 0
      %3724 = vmatprep.subr.bf16.mxu0 0
      %3725 = vmatpush1.bf16.msra.mxu0 0
      %3726 = vmatprep.mubr.bf16.mxu0 0
      %3727 = vmatmul.mubr.bf16.gmra.mrb[0].mxu0 %v3644
      %v3728 = vpop.f32.mrb[0].mxu0
      %v3729 = vadd.f32 0.0, %v3728
      %v3730 = vpop.f32.mrb[0].mxu0
      %v3731 = vpop.f32.mrb[0].mxu0
      %v3732 = vadd.f32 0.0, %v3731
      %v3733 = vpop.f32.mrb[0].mxu0
      %3734 = vmatprep.mubr.bf16.mxu0 0
      %3735 = vmatmul.mubr.bf16.gmra.mrb[0].mxu0 %v3647
      %v3736 = vpop.f32.mrb[0].mxu0
      %v3737 = vadd.f32 0.0, %v3736
      %v3738 = vpop.f32.mrb[0].mxu0
      %v3739 = vpop.f32.mrb[0].mxu0
      %v3740 = vadd.f32 0.0, %v3739
      %v3741 = vpop.f32.mrb[0].mxu0
      %3742 = vmatprep.mubr.bf16.mxu0 0
      %3743 = vmatmul.mubr.bf16.gmra.mrb[0].mxu0 %v3650
      %v3744 = vpop.f32.mrb[0].mxu0
      %v3745 = vadd.f32 0.0, %v3744
      %v3746 = vpop.f32.mrb[0].mxu0
      %v3747 = vpop.f32.mrb[0].mxu0
      %v3748 = vadd.f32 0.0, %v3747
      %v3749 = vpop.f32.mrb[0].mxu0
      %3750 = vmatprep.mubr.bf16.mxu0 0
      %3751 = vmatmul.mubr.bf16.gmra.mrb[0].mxu0 %v3653
      %v3752 = vpop.f32.mrb[0].mxu0
      %v3753 = vadd.f32 0.0, %v3752
      %v3754 = vpop.f32.mrb[0].mxu0
      %v3755 = vpop.f32.mrb[0].mxu0
      %v3756 = vadd.f32 0.0, %v3755
      %v3757 = vpop.f32.mrb[0].mxu0
      %3758 = vmatprep.mubr.bf16.mxu0 0
      %3759 = vmatmul.mubr.bf16.gmra.mrb[0].mxu0 %v3656
      %v3760 = vpop.f32.mrb[0].mxu0
      %v3761 = vadd.f32 0.0, %v3760
      %v3762 = vpop.f32.mrb[0].mxu0
      %v3763 = vpop.f32.mrb[0].mxu0
      %v3764 = vadd.f32 0.0, %v3763
      %v3765 = vpop.f32.mrb[0].mxu0
      %3766 = vmatprep.mubr.bf16.mxu0 0
      %3767 = vmatmul.mubr.bf16.gmra.mrb[0].mxu0 %v3659
      %v3768 = vpop.f32.mrb[0].mxu0
      %v3769 = vadd.f32 0.0, %v3768
      %v3770 = vpop.f32.mrb[0].mxu0
      %v3771 = vpop.f32.mrb[0].mxu0
      %v3772 = vadd.f32 0.0, %v3771
      %v3773 = vpop.f32.mrb[0].mxu0
      %3774 = vmatprep.mubr.bf16.mxu0 0
      %3775 = vmatmul.mubr.bf16.gmra.mrb[0].mxu0 %v3662
      %v3776 = vpop.f32.mrb[0].mxu0
      %v3777 = vadd.f32 0.0, %v3776
      %v3778 = vpop.f32.mrb[0].mxu0
      %v3779 = vpop.f32.mrb[0].mxu0
      %v3780 = vadd.f32 0.0, %v3779
      %v3781 = vpop.f32.mrb[0].mxu0
      %3782 = vmatprep.mubr.bf16.mxu0 0
      %3783 = vmatmul.mubr.bf16.gmra.mrb[0].mxu0 %v3665
      %v3784 = vpop.f32.mrb[0].mxu0
      %v3785 = vadd.f32 0.0, %v3784
      %v3786 = vpop.f32.mrb[0].mxu0
      %v3787 = vpop.f32.mrb[0].mxu0
      %v3788 = vadd.f32 0.0, %v3787
      %v3789 = vpop.f32.mrb[0].mxu0
      %3790 = vmatprep.mubr.bf16.mxu0 0
      %3791 = vmatmul.mubr.bf16.gmra.mrb[0].mxu0 %v3668
      %v3792 = vpop.f32.mrb[0].mxu0
      %v3793 = vadd.f32 0.0, %v3792
      %v3794 = vpop.f32.mrb[0].mxu0
      %v3795 = vpop.f32.mrb[0].mxu0
      %v3796 = vadd.f32 0.0, %v3795
      %v3797 = vpop.f32.mrb[0].mxu0
      %3798 = vmatprep.mubr.bf16.mxu0 0
      %3799 = vmatmul.mubr.bf16.gmra.mrb[0].mxu0 %v3671
      %v3800 = vpop.f32.mrb[0].mxu0
      %v3801 = vadd.f32 0.0, %v3800
      %v3802 = vpop.f32.mrb[0].mxu0
      %v3803 = vpop.f32.mrb[0].mxu0
      %v3804 = vadd.f32 0.0, %v3803
      %v3805 = vpop.f32.mrb[0].mxu0
      %3806 = vmatprep.mubr.bf16.mxu0 0
      %3807 = vmatmul.mubr.bf16.gmra.mrb[0].mxu0 %v3674
      %v3808 = vpop.f32.mrb[0].mxu0
      %v3809 = vadd.f32 0.0, %v3808
      %v3810 = vpop.f32.mrb[0].mxu0
      %v3811 = vpop.f32.mrb[0].mxu0
      %v3812 = vadd.f32 0.0, %v3811
      %v3813 = vpop.f32.mrb[0].mxu0
      %3814 = vmatprep.mubr.bf16.mxu0 0
      %3815 = vmatmul.mubr.bf16.gmra.mrb[0].mxu0 %v3677
      %v3816 = vpop.f32.mrb[0].mxu0
      %v3817 = vadd.f32 0.0, %v3816
      %v3818 = vpop.f32.mrb[0].mxu0
      %v3819 = vpop.f32.mrb[0].mxu0
      %v3820 = vadd.f32 0.0, %v3819
      %v3821 = vpop.f32.mrb[0].mxu0
      %3822 = vmatprep.mubr.bf16.mxu0 0
      %3823 = vmatmul.mubr.bf16.gmra.mrb[0].mxu0 %v3680
      %v3824 = vpop.f32.mrb[0].mxu0
      %v3825 = vadd.f32 0.0, %v3824
      %v3826 = vpop.f32.mrb[0].mxu0
      %v3827 = vpop.f32.mrb[0].mxu0
      %v3828 = vadd.f32 0.0, %v3827
      %v3829 = vpop.f32.mrb[0].mxu0
      %3830 = vmatprep.mubr.bf16.mxu0 0
      %3831 = vmatmul.mubr.bf16.gmra.mrb[0].mxu0 %v3683
      %v3832 = vpop.f32.mrb[0].mxu0
      %v3833 = vadd.f32 0.0, %v3832
      %v3834 = vpop.f32.mrb[0].mxu0
      %v3835 = vpop.f32.mrb[0].mxu0
      %v3836 = vadd.f32 0.0, %v3835
      %v3837 = vpop.f32.mrb[0].mxu0
      %3838 = vmatprep.mubr.bf16.mxu0 0
      %3839 = vmatmul.mubr.bf16.gmra.mrb[0].mxu0 %v3686
      %v3840 = vpop.f32.mrb[0].mxu0
      %v3841 = vadd.f32 0.0, %v3840
      %v3842 = vpop.f32.mrb[0].mxu0
      %v3843 = vpop.f32.mrb[0].mxu0
      %v3844 = vadd.f32 0.0, %v3843
      %v3845 = vpop.f32.mrb[0].mxu0
      %3846 = vmatprep.mubr.bf16.mxu0 0
      %3847 = vmatmul.mubr.bf16.gmra.mrb[0].mxu0 %v3689
      %v3848 = vpop.f32.mrb[0].mxu0
      %v3849 = vadd.f32 0.0, %v3848
      %v3850 = vpop.f32.mrb[0].mxu0
      %v3851 = vpop.f32.mrb[0].mxu0
      %v3852 = vadd.f32 0.0, %v3851
      %v3853 = vpop.f32.mrb[0].mxu0
      %3854 = vdwg.mxu0
      %v3855 = vadd.f32 %v3345, %v3729
      %v3856 = vadd.f32 %v3348, %v3732
      %v3857 = vadd.f32 %v3353, %v3737
      %v3858 = vadd.f32 %v3356, %v3740
      %v3859 = vadd.f32 %v3361, %v3745
      %v3860 = vadd.f32 %v3364, %v3748
      %v3861 = vadd.f32 %v3369, %v3753
      %v3862 = vadd.f32 %v3372, %v3756
      %v3863 = vadd.f32 %v3377, %v3761
      %v3864 = vadd.f32 %v3380, %v3764
      %v3865 = vadd.f32 %v3385, %v3769
      %v3866 = vadd.f32 %v3388, %v3772
      %v3867 = vadd.f32 %v3393, %v3777
      %v3868 = vadd.f32 %v3396, %v3780
      %v3869 = vadd.f32 %v3401, %v3785
      %v3870 = vadd.f32 %v3404, %v3788
      %v3871 = vadd.f32 %v3409, %v3793
      %v3872 = vadd.f32 %v3412, %v3796
      %v3873 = vadd.f32 %v3417, %v3801
      %v3874 = vadd.f32 %v3420, %v3804
      %v3875 = vadd.f32 %v3425, %v3809
      %v3876 = vadd.f32 %v3428, %v3812
      %v3877 = vadd.f32 %v3433, %v3817
      %v3878 = vadd.f32 %v3436, %v3820
      %v3879 = vadd.f32 %v3441, %v3825
      %v3880 = vadd.f32 %v3444, %v3828
      %v3881 = vadd.f32 %v3449, %v3833
      %v3882 = vadd.f32 %v3452, %v3836
      %v3883 = vadd.f32 %v3457, %v3841
      %v3884 = vadd.f32 %v3460, %v3844
      %v3885 = vadd.f32 %v3465, %v3849
      %v3886 = vadd.f32 %v3468, %v3852
      %v3887 = vmul.f32 %v320, %v426
      %v3888 = vmul.f32 %v321, %v425
      %v3889 = vmul.f32 %v322, %v424
      %v3890 = vpack.c.bf16 %v2845, %v431
      %v3891 = vpack.c.bf16 %v3888, %v3887
      %v3892 = vpack.c.bf16 %v3889, %v3889
      %v3894 = vshrl.u32 %v3890, 16
      %v3896 = vrot.slane %v3894, 3
      %v3897 = vshll.u32 %v3890, 16
      %v3899 = vrot.slane %v3897, 4
      %v3900 = vor.u32 %v3896, %v3899
      %v3901 = vsel %vm711, %v3900, %v3131
      %v3903 = vshrl.u32 %v3891, 16
      %v3905 = vrot.slane %v3903, 3
      %v3906 = vshll.u32 %v3891, 16
      %v3908 = vrot.slane %v3906, 4
      %v3909 = vor.u32 %v3905, %v3908
      %v3910 = vsel %vm711, %v3248, %v3909
      %v3912 = vshrl.u32 %v3892, 16
      %v3914 = vrot.slane %v3912, 3
      %v3915 = vshll.u32 %v3892, 16
      %v3917 = vrot.slane %v3915, 4
      %v3918 = vor.u32 %v3914, %v3917
      %v3919 = vsel %vm711, %v3909, %v3918
      %v3921 = vsel %vm497, %v3901, 0
      %v3924 = vsel %vm497, %v3910, 0
      %v3927 = vsel %vm497, %v3919, 0
      %v3930 = vsel %vm546, %v390, 0
      %3932 = vmatprep.subr.bf16.mxu0 0
      %3933 = vmatpush1.bf16.msra.mxu0 %v3930
      %3934 = vmatprep.subr.bf16.mxu0 0
      %3935 = vmatpush1.bf16.msra.mxu0 0
      %3936 = vmatprep.subr.bf16.mxu0 0
      %3937 = vmatpush1.bf16.msra.mxu0 0
      %3938 = vmatprep.subr.bf16.mxu0 0
      %3939 = vmatpush1.bf16.msra.mxu0 0
      %3940 = vmatprep.subr.bf16.mxu0 0
      %3941 = vmatpush1.bf16.msra.mxu0 0
      %3942 = vmatprep.subr.bf16.mxu0 0
      %3943 = vmatpush1.bf16.msra.mxu0 0
      %3944 = vmatprep.subr.bf16.mxu0 0
      %3945 = vmatpush1.bf16.msra.mxu0 0
      %3946 = vmatprep.subr.bf16.mxu0 0
      %3947 = vmatpush1.bf16.msra.mxu0 0
      %3948 = vmatprep.subr.bf16.mxu0 0
      %3949 = vmatpush1.bf16.msra.mxu0 0
      %3950 = vmatprep.subr.bf16.mxu0 0
      %3951 = vmatpush1.bf16.msra.mxu0 0
      %3952 = vmatprep.subr.bf16.mxu0 0
      %3953 = vmatpush1.bf16.msra.mxu0 0
      %3954 = vmatprep.subr.bf16.mxu0 0
      %3955 = vmatpush1.bf16.msra.mxu0 0
      %3956 = vmatprep.subr.bf16.mxu0 0
      %3957 = vmatpush1.bf16.msra.mxu0 0
      %3958 = vmatprep.subr.bf16.mxu0 0
      %3959 = vmatpush1.bf16.msra.mxu0 0
      %3960 = vmatprep.subr.bf16.mxu0 0
      %3961 = vmatpush1.bf16.msra.mxu0 0
      %3962 = vmatprep.subr.bf16.mxu0 0
      %3963 = vmatpush1.bf16.msra.mxu0 0
      %3964 = vmatprep.mubr.bf16.mxu0 0
      %3965 = vmatmul.mubr.bf16.gmra.mrb[0].mxu0 %v3921
      %v3966 = vpop.f32.mrb[0].mxu0
      %v3967 = vadd.f32 0.0, %v3966
      %v3968 = vpop.f32.mrb[0].mxu0
      %v3969 = vpop.f32.mrb[0].mxu0
      %v3970 = vadd.f32 0.0, %v3969
      %v3971 = vpop.f32.mrb[0].mxu0
      %3972 = vmatprep.mubr.bf16.mxu0 0
      %3973 = vmatmul.mubr.bf16.gmra.mrb[0].mxu0 %v3266
      %v3974 = vpop.f32.mrb[0].mxu0
      %v3975 = vadd.f32 0.0, %v3974
      %v3976 = vpop.f32.mrb[0].mxu0
      %v3977 = vpop.f32.mrb[0].mxu0
      %v3978 = vadd.f32 0.0, %v3977
      %v3979 = vpop.f32.mrb[0].mxu0
      %3980 = vmatprep.mubr.bf16.mxu0 0
      %3981 = vmatmul.mubr.bf16.gmra.mrb[0].mxu0 %v3269
      %v3982 = vpop.f32.mrb[0].mxu0
      %v3983 = vadd.f32 0.0, %v3982
      %v3984 = vpop.f32.mrb[0].mxu0
      %v3985 = vpop.f32.mrb[0].mxu0
      %v3986 = vadd.f32 0.0, %v3985
      %v3987 = vpop.f32.mrb[0].mxu0
      %3988 = vmatprep.mubr.bf16.mxu0 0
      %3989 = vmatmul.mubr.bf16.gmra.mrb[0].mxu0 %v3272
      %v3990 = vpop.f32.mrb[0].mxu0
      %v3991 = vadd.f32 0.0, %v3990
      %v3992 = vpop.f32.mrb[0].mxu0
      %v3993 = vpop.f32.mrb[0].mxu0
      %v3994 = vadd.f32 0.0, %v3993
      %v3995 = vpop.f32.mrb[0].mxu0
      %3996 = vmatprep.mubr.bf16.mxu0 0
      %3997 = vmatmul.mubr.bf16.gmra.mrb[0].mxu0 %v3275
      %v3998 = vpop.f32.mrb[0].mxu0
      %v3999 = vadd.f32 0.0, %v3998
      %v4000 = vpop.f32.mrb[0].mxu0
      %v4001 = vpop.f32.mrb[0].mxu0
      %v4002 = vadd.f32 0.0, %v4001
      %v4003 = vpop.f32.mrb[0].mxu0
      %4004 = vmatprep.mubr.bf16.mxu0 0
      %4005 = vmatmul.mubr.bf16.gmra.mrb[0].mxu0 %v3278
      %v4006 = vpop.f32.mrb[0].mxu0
      %v4007 = vadd.f32 0.0, %v4006
      %v4008 = vpop.f32.mrb[0].mxu0
      %v4009 = vpop.f32.mrb[0].mxu0
      %v4010 = vadd.f32 0.0, %v4009
      %v4011 = vpop.f32.mrb[0].mxu0
      %4012 = vmatprep.mubr.bf16.mxu0 0
      %4013 = vmatmul.mubr.bf16.gmra.mrb[0].mxu0 %v3281
      %v4014 = vpop.f32.mrb[0].mxu0
      %v4015 = vadd.f32 0.0, %v4014
      %v4016 = vpop.f32.mrb[0].mxu0
      %v4017 = vpop.f32.mrb[0].mxu0
      %v4018 = vadd.f32 0.0, %v4017
      %v4019 = vpop.f32.mrb[0].mxu0
      %4020 = vmatprep.mubr.bf16.mxu0 0
      %4021 = vmatmul.mubr.bf16.gmra.mrb[0].mxu0 %v3284
      %v4022 = vpop.f32.mrb[0].mxu0
      %v4023 = vadd.f32 0.0, %v4022
      %v4024 = vpop.f32.mrb[0].mxu0
      %v4025 = vpop.f32.mrb[0].mxu0
      %v4026 = vadd.f32 0.0, %v4025
      %v4027 = vpop.f32.mrb[0].mxu0
      %4028 = vmatprep.mubr.bf16.mxu0 0
      %4029 = vmatmul.mubr.bf16.gmra.mrb[0].mxu0 %v3287
      %v4030 = vpop.f32.mrb[0].mxu0
      %v4031 = vadd.f32 0.0, %v4030
      %v4032 = vpop.f32.mrb[0].mxu0
      %v4033 = vpop.f32.mrb[0].mxu0
      %v4034 = vadd.f32 0.0, %v4033
      %v4035 = vpop.f32.mrb[0].mxu0
      %4036 = vmatprep.mubr.bf16.mxu0 0
      %4037 = vmatmul.mubr.bf16.gmra.mrb[0].mxu0 %v3290
      %v4038 = vpop.f32.mrb[0].mxu0
      %v4039 = vadd.f32 0.0, %v4038
      %v4040 = vpop.f32.mrb[0].mxu0
      %v4041 = vpop.f32.mrb[0].mxu0
      %v4042 = vadd.f32 0.0, %v4041
      %v4043 = vpop.f32.mrb[0].mxu0
      %4044 = vmatprep.mubr.bf16.mxu0 0
      %4045 = vmatmul.mubr.bf16.gmra.mrb[0].mxu0 %v3293
      %v4046 = vpop.f32.mrb[0].mxu0
      %v4047 = vadd.f32 0.0, %v4046
      %v4048 = vpop.f32.mrb[0].mxu0
      %v4049 = vpop.f32.mrb[0].mxu0
      %v4050 = vadd.f32 0.0, %v4049
      %v4051 = vpop.f32.mrb[0].mxu0
      %4052 = vmatprep.mubr.bf16.mxu0 0
      %4053 = vmatmul.mubr.bf16.gmra.mrb[0].mxu0 %v3296
      %v4054 = vpop.f32.mrb[0].mxu0
      %v4055 = vadd.f32 0.0, %v4054
      %v4056 = vpop.f32.mrb[0].mxu0
      %v4057 = vpop.f32.mrb[0].mxu0
      %v4058 = vadd.f32 0.0, %v4057
      %v4059 = vpop.f32.mrb[0].mxu0
      %4060 = vmatprep.mubr.bf16.mxu0 0
      %4061 = vmatmul.mubr.bf16.gmra.mrb[0].mxu0 %v3299
      %v4062 = vpop.f32.mrb[0].mxu0
      %v4063 = vadd.f32 0.0, %v4062
      %v4064 = vpop.f32.mrb[0].mxu0
      %v4065 = vpop.f32.mrb[0].mxu0
      %v4066 = vadd.f32 0.0, %v4065
      %v4067 = vpop.f32.mrb[0].mxu0
      %4068 = vmatprep.mubr.bf16.mxu0 0
      %4069 = vmatmul.mubr.bf16.gmra.mrb[0].mxu0 %v3302
      %v4070 = vpop.f32.mrb[0].mxu0
      %v4071 = vadd.f32 0.0, %v4070
      %v4072 = vpop.f32.mrb[0].mxu0
      %v4073 = vpop.f32.mrb[0].mxu0
      %v4074 = vadd.f32 0.0, %v4073
      %v4075 = vpop.f32.mrb[0].mxu0
      %4076 = vmatprep.mubr.bf16.mxu0 0
      %4077 = vmatmul.mubr.bf16.gmra.mrb[0].mxu0 %v3924
      %v4078 = vpop.f32.mrb[0].mxu0
      %v4079 = vadd.f32 0.0, %v4078
      %v4080 = vpop.f32.mrb[0].mxu0
      %v4081 = vpop.f32.mrb[0].mxu0
      %v4082 = vadd.f32 0.0, %v4081
      %v4083 = vpop.f32.mrb[0].mxu0
      %4084 = vmatprep.mubr.bf16.mxu0 0
      %4085 = vmatmul.mubr.bf16.gmra.mrb[0].mxu0 %v3927
      %v4086 = vpop.f32.mrb[0].mxu0
      %v4087 = vadd.f32 0.0, %v4086
      %v4088 = vpop.f32.mrb[0].mxu0
      %v4089 = vpop.f32.mrb[0].mxu0
      %v4090 = vadd.f32 0.0, %v4089
      %v4091 = vpop.f32.mrb[0].mxu0
      %4092 = vdwg.mxu0
      %v4093 = vadd.f32 %v3855, %v3967
      %v4094 = vadd.f32 %v3856, %v3970
      %v4095 = vadd.f32 %v3857, %v3975
      %v4096 = vadd.f32 %v3858, %v3978
      %v4097 = vadd.f32 %v3859, %v3983
      %v4098 = vadd.f32 %v3860, %v3986
      %v4099 = vadd.f32 %v3861, %v3991
      %v4100 = vadd.f32 %v3862, %v3994
      %v4101 = vadd.f32 %v3863, %v3999
      %v4102 = vadd.f32 %v3864, %v4002
      %v4103 = vadd.f32 %v3865, %v4007
      %v4104 = vadd.f32 %v3866, %v4010
      %v4105 = vadd.f32 %v3867, %v4015
      %v4106 = vadd.f32 %v3868, %v4018
      %v4107 = vadd.f32 %v3869, %v4023
      %v4108 = vadd.f32 %v3870, %v4026
      %v4109 = vadd.f32 %v3871, %v4031
      %v4110 = vadd.f32 %v3872, %v4034
      %v4111 = vadd.f32 %v3873, %v4039
      %v4112 = vadd.f32 %v3874, %v4042
      %v4113 = vadd.f32 %v3875, %v4047
      %v4114 = vadd.f32 %v3876, %v4050
      %v4115 = vadd.f32 %v3877, %v4055
      %v4116 = vadd.f32 %v3878, %v4058
      %v4117 = vadd.f32 %v3879, %v4063
      %v4118 = vadd.f32 %v3880, %v4066
      %v4119 = vadd.f32 %v3881, %v4071
      %v4120 = vadd.f32 %v3882, %v4074
      %v4121 = vadd.f32 %v3883, %v4079
      %v4122 = vadd.f32 %v3884, %v4082
      %v4123 = vadd.f32 %v3885, %v4087
      %v4124 = vadd.f32 %v3886, %v4090
      %v4125 = vpack.c.bf16 %v322, %v321
      %v4127 = vsel %vm497, %v4125, 0
      %v4130 = vsel %vm546, %v391, 0
      %4132 = vmatprep.subr.bf16.mxu0 0
      %4133 = vmatpush1.bf16.msra.mxu0 %v4130
      %4134 = vmatprep.subr.bf16.mxu0 0
      %4135 = vmatpush1.bf16.msra.mxu0 0
      %4136 = vmatprep.subr.bf16.mxu0 0
      %4137 = vmatpush1.bf16.msra.mxu0 0
      %4138 = vmatprep.subr.bf16.mxu0 0
      %4139 = vmatpush1.bf16.msra.mxu0 0
      %4140 = vmatprep.subr.bf16.mxu0 0
      %4141 = vmatpush1.bf16.msra.mxu0 0
      %4142 = vmatprep.subr.bf16.mxu0 0
      %4143 = vmatpush1.bf16.msra.mxu0 0
      %4144 = vmatprep.subr.bf16.mxu0 0
      %4145 = vmatpush1.bf16.msra.mxu0 0
      %4146 = vmatprep.subr.bf16.mxu0 0
      %4147 = vmatpush1.bf16.msra.mxu0 0
      %4148 = vmatprep.subr.bf16.mxu0 0
      %4149 = vmatpush1.bf16.msra.mxu0 0
      %4150 = vmatprep.subr.bf16.mxu0 0
      %4151 = vmatpush1.bf16.msra.mxu0 0
      %4152 = vmatprep.subr.bf16.mxu0 0
      %4153 = vmatpush1.bf16.msra.mxu0 0
      %4154 = vmatprep.subr.bf16.mxu0 0
      %4155 = vmatpush1.bf16.msra.mxu0 0
      %4156 = vmatprep.subr.bf16.mxu0 0
      %4157 = vmatpush1.bf16.msra.mxu0 0
      %4158 = vmatprep.subr.bf16.mxu0 0
      %4159 = vmatpush1.bf16.msra.mxu0 0
      %4160 = vmatprep.subr.bf16.mxu0 0
      %4161 = vmatpush1.bf16.msra.mxu0 0
      %4162 = vmatprep.subr.bf16.mxu0 0
      %4163 = vmatpush1.bf16.msra.mxu0 0
      %4164 = vmatprep.mubr.bf16.mxu0 0
      %4165 = vmatmul.mubr.bf16.gmra.mrb[0].mxu0 %v2907
      %v4166 = vpop.f32.mrb[0].mxu0
      %v4167 = vadd.f32 0.0, %v4166
      %v4168 = vpop.f32.mrb[0].mxu0
      %v4169 = vpop.f32.mrb[0].mxu0
      %v4170 = vadd.f32 0.0, %v4169
      %v4171 = vpop.f32.mrb[0].mxu0
      %4172 = vmatprep.mubr.bf16.mxu0 0
      %4173 = vmatmul.mubr.bf16.gmra.mrb[0].mxu0 %v2910
      %v4174 = vpop.f32.mrb[0].mxu0
      %v4175 = vadd.f32 0.0, %v4174
      %v4176 = vpop.f32.mrb[0].mxu0
      %v4177 = vpop.f32.mrb[0].mxu0
      %v4178 = vadd.f32 0.0, %v4177
      %v4179 = vpop.f32.mrb[0].mxu0
      %4180 = vmatprep.mubr.bf16.mxu0 0
      %4181 = vmatmul.mubr.bf16.gmra.mrb[0].mxu0 %v2913
      %v4182 = vpop.f32.mrb[0].mxu0
      %v4183 = vadd.f32 0.0, %v4182
      %v4184 = vpop.f32.mrb[0].mxu0
      %v4185 = vpop.f32.mrb[0].mxu0
      %v4186 = vadd.f32 0.0, %v4185
      %v4187 = vpop.f32.mrb[0].mxu0
      %4188 = vmatprep.mubr.bf16.mxu0 0
      %4189 = vmatmul.mubr.bf16.gmra.mrb[0].mxu0 %v2916
      %v4190 = vpop.f32.mrb[0].mxu0
      %v4191 = vadd.f32 0.0, %v4190
      %v4192 = vpop.f32.mrb[0].mxu0
      %v4193 = vpop.f32.mrb[0].mxu0
      %v4194 = vadd.f32 0.0, %v4193
      %v4195 = vpop.f32.mrb[0].mxu0
      %4196 = vmatprep.mubr.bf16.mxu0 0
      %4197 = vmatmul.mubr.bf16.gmra.mrb[0].mxu0 %v2919
      %v4198 = vpop.f32.mrb[0].mxu0
      %v4199 = vadd.f32 0.0, %v4198
      %v4200 = vpop.f32.mrb[0].mxu0
      %v4201 = vpop.f32.mrb[0].mxu0
      %v4202 = vadd.f32 0.0, %v4201
      %v4203 = vpop.f32.mrb[0].mxu0
      %4204 = vmatprep.mubr.bf16.mxu0 0
      %4205 = vmatmul.mubr.bf16.gmra.mrb[0].mxu0 %v2922
      %v4206 = vpop.f32.mrb[0].mxu0
      %v4207 = vadd.f32 0.0, %v4206
      %v4208 = vpop.f32.mrb[0].mxu0
      %v4209 = vpop.f32.mrb[0].mxu0
      %v4210 = vadd.f32 0.0, %v4209
      %v4211 = vpop.f32.mrb[0].mxu0
      %4212 = vmatprep.mubr.bf16.mxu0 0
      %4213 = vmatmul.mubr.bf16.gmra.mrb[0].mxu0 %v2925
      %v4214 = vpop.f32.mrb[0].mxu0
      %v4215 = vadd.f32 0.0, %v4214
      %v4216 = vpop.f32.mrb[0].mxu0
      %v4217 = vpop.f32.mrb[0].mxu0
      %v4218 = vadd.f32 0.0, %v4217
      %v4219 = vpop.f32.mrb[0].mxu0
      %4220 = vmatprep.mubr.bf16.mxu0 0
      %4221 = vmatmul.mubr.bf16.gmra.mrb[0].mxu0 %v2928
      %v4222 = vpop.f32.mrb[0].mxu0
      %v4223 = vadd.f32 0.0, %v4222
      %v4224 = vpop.f32.mrb[0].mxu0
      %v4225 = vpop.f32.mrb[0].mxu0
      %v4226 = vadd.f32 0.0, %v4225
      %v4227 = vpop.f32.mrb[0].mxu0
      %4228 = vmatprep.mubr.bf16.mxu0 0
      %4229 = vmatmul.mubr.bf16.gmra.mrb[0].mxu0 %v2931
      %v4230 = vpop.f32.mrb[0].mxu0
      %v4231 = vadd.f32 0.0, %v4230
      %v4232 = vpop.f32.mrb[0].mxu0
      %v4233 = vpop.f32.mrb[0].mxu0
      %v4234 = vadd.f32 0.0, %v4233
      %v4235 = vpop.f32.mrb[0].mxu0
      %4236 = vmatprep.mubr.bf16.mxu0 0
      %4237 = vmatmul.mubr.bf16.gmra.mrb[0].mxu0 %v2934
      %v4238 = vpop.f32.mrb[0].mxu0
      %v4239 = vadd.f32 0.0, %v4238
      %v4240 = vpop.f32.mrb[0].mxu0
      %v4241 = vpop.f32.mrb[0].mxu0
      %v4242 = vadd.f32 0.0, %v4241
      %v4243 = vpop.f32.mrb[0].mxu0
      %4244 = vmatprep.mubr.bf16.mxu0 0
      %4245 = vmatmul.mubr.bf16.gmra.mrb[0].mxu0 %v2937
      %v4246 = vpop.f32.mrb[0].mxu0
      %v4247 = vadd.f32 0.0, %v4246
      %v4248 = vpop.f32.mrb[0].mxu0
      %v4249 = vpop.f32.mrb[0].mxu0
      %v4250 = vadd.f32 0.0, %v4249
      %v4251 = vpop.f32.mrb[0].mxu0
      %4252 = vmatprep.mubr.bf16.mxu0 0
      %4253 = vmatmul.mubr.bf16.gmra.mrb[0].mxu0 %v2940
      %v4254 = vpop.f32.mrb[0].mxu0
      %v4255 = vadd.f32 0.0, %v4254
      %v4256 = vpop.f32.mrb[0].mxu0
      %v4257 = vpop.f32.mrb[0].mxu0
      %v4258 = vadd.f32 0.0, %v4257
      %v4259 = vpop.f32.mrb[0].mxu0
      %4260 = vmatprep.mubr.bf16.mxu0 0
      %4261 = vmatmul.mubr.bf16.gmra.mrb[0].mxu0 %v2943
      %v4262 = vpop.f32.mrb[0].mxu0
      %v4263 = vadd.f32 0.0, %v4262
      %v4264 = vpop.f32.mrb[0].mxu0
      %v4265 = vpop.f32.mrb[0].mxu0
      %v4266 = vadd.f32 0.0, %v4265
      %v4267 = vpop.f32.mrb[0].mxu0
      %4268 = vmatprep.mubr.bf16.mxu0 0
      %4269 = vmatmul.mubr.bf16.gmra.mrb[0].mxu0 %v2946
      %v4270 = vpop.f32.mrb[0].mxu0
      %v4271 = vadd.f32 0.0, %v4270
      %v4272 = vpop.f32.mrb[0].mxu0
      %v4273 = vpop.f32.mrb[0].mxu0
      %v4274 = vadd.f32 0.0, %v4273
      %v4275 = vpop.f32.mrb[0].mxu0
      %4276 = vmatprep.mubr.bf16.mxu0 0
      %4277 = vmatmul.mubr.bf16.gmra.mrb[0].mxu0 %v2949
      %v4278 = vpop.f32.mrb[0].mxu0
      %v4279 = vadd.f32 0.0, %v4278
      %v4280 = vpop.f32.mrb[0].mxu0
      %v4281 = vpop.f32.mrb[0].mxu0
      %v4282 = vadd.f32 0.0, %v4281
      %v4283 = vpop.f32.mrb[0].mxu0
      %4284 = vmatprep.mubr.bf16.mxu0 0
      %4285 = vmatmul.mubr.bf16.gmra.mrb[0].mxu0 %v4127
      %v4286 = vpop.f32.mrb[0].mxu0
      %v4287 = vadd.f32 0.0, %v4286
      %v4288 = vpop.f32.mrb[0].mxu0
      %v4289 = vpop.f32.mrb[0].mxu0
      %v4290 = vadd.f32 0.0, %v4289
      %v4291 = vpop.f32.mrb[0].mxu0
      %4292 = vdwg.mxu0
      %v4293 = vadd.f32 %v4093, %v4167
      %v4294 = vadd.f32 %v4094, %v4170
      %v4295 = vadd.f32 %v4095, %v4175
      %v4296 = vadd.f32 %v4096, %v4178
      %v4297 = vadd.f32 %v4097, %v4183
      %v4298 = vadd.f32 %v4098, %v4186
      %v4299 = vadd.f32 %v4099, %v4191
      %v4300 = vadd.f32 %v4100, %v4194
      %v4301 = vadd.f32 %v4101, %v4199
      %v4302 = vadd.f32 %v4102, %v4202
      %v4303 = vadd.f32 %v4103, %v4207
      %v4304 = vadd.f32 %v4104, %v4210
      %v4305 = vadd.f32 %v4105, %v4215
      %v4306 = vadd.f32 %v4106, %v4218
      %v4307 = vadd.f32 %v4107, %v4223
      %v4308 = vadd.f32 %v4108, %v4226
      %v4309 = vadd.f32 %v4109, %v4231
      %v4310 = vadd.f32 %v4110, %v4234
      %v4311 = vadd.f32 %v4111, %v4239
      %v4312 = vadd.f32 %v4112, %v4242
      %v4313 = vadd.f32 %v4113, %v4247
      %v4314 = vadd.f32 %v4114, %v4250
      %v4315 = vadd.f32 %v4115, %v4255
      %v4316 = vadd.f32 %v4116, %v4258
      %v4317 = vadd.f32 %v4117, %v4263
      %v4318 = vadd.f32 %v4118, %v4266
      %v4319 = vadd.f32 %v4119, %v4271
      %v4320 = vadd.f32 %v4120, %v4274
      %v4321 = vadd.f32 %v4121, %v4279
      %v4322 = vadd.f32 %v4122, %v4282
      %v4323 = vadd.f32 %v4123, %v4287
      %v4324 = vadd.f32 %v4124, %v4290
      %v4325 = vmul.f32 %v291, %v1079
      %v4326 = vmul.f32 %v321, %v1082
      %v4327 = vmul.f32 %v322, %v1081
      %v4328 = vpack.c.bf16 %v3472, %v4325
      %v4329 = vpack.c.bf16 %v4327, %v4326
      %v4331 = vshrl.u32 %v4328, 16
      %v4333 = vshll.u32 %v4328, 16
      %v4335 = vrot.slane %v4333, 1
      %v4336 = vor.u32 %v4331, %v4335
      %v4337 = vsel %vm1137, %v4336, %v3529
      %v4339 = vshll.u32 %v4329, 16
      %v4341 = vrot.slane %v4339, 1
      %v4342 = vsel %vm1137, %v3637, %v4341
      %v4343 = vshrl.u32 %v4329, 16
      %v4345 = vor.u32 %v4343, %v4341
      %v4346 = vsel %vm1137, %v4345, %v1978
      %v4348 = vsel %vm497, %v4337, 0
      %v4351 = vsel %vm497, %v4342, 0
      %v4354 = vsel %vm497, %v4346, 0
      %v4357 = vsel %vm546, %v392, 0
      %4359 = vmatprep.subr.bf16.mxu0 0
      %4360 = vmatpush1.bf16.msra.mxu0 %v4357
      %4361 = vmatprep.subr.bf16.mxu0 0
      %4362 = vmatpush1.bf16.msra.mxu0 0
      %4363 = vmatprep.subr.bf16.mxu0 0
      %4364 = vmatpush1.bf16.msra.mxu0 0
      %4365 = vmatprep.subr.bf16.mxu0 0
      %4366 = vmatpush1.bf16.msra.mxu0 0
      %4367 = vmatprep.subr.bf16.mxu0 0
      %4368 = vmatpush1.bf16.msra.mxu0 0
      %4369 = vmatprep.subr.bf16.mxu0 0
      %4370 = vmatpush1.bf16.msra.mxu0 0
      %4371 = vmatprep.subr.bf16.mxu0 0
      %4372 = vmatpush1.bf16.msra.mxu0 0
      %4373 = vmatprep.subr.bf16.mxu0 0
      %4374 = vmatpush1.bf16.msra.mxu0 0
      %4375 = vmatprep.subr.bf16.mxu0 0
      %4376 = vmatpush1.bf16.msra.mxu0 0
      %4377 = vmatprep.subr.bf16.mxu0 0
      %4378 = vmatpush1.bf16.msra.mxu0 0
      %4379 = vmatprep.subr.bf16.mxu0 0
      %4380 = vmatpush1.bf16.msra.mxu0 0
      %4381 = vmatprep.subr.bf16.mxu0 0
      %4382 = vmatpush1.bf16.msra.mxu0 0
      %4383 = vmatprep.subr.bf16.mxu0 0
      %4384 = vmatpush1.bf16.msra.mxu0 0
      %4385 = vmatprep.subr.bf16.mxu0 0
      %4386 = vmatpush1.bf16.msra.mxu0 0
      %4387 = vmatprep.subr.bf16.mxu0 0
      %4388 = vmatpush1.bf16.msra.mxu0 0
      %4389 = vmatprep.subr.bf16.mxu0 0
      %4390 = vmatpush1.bf16.msra.mxu0 0
      %4391 = vmatprep.mubr.bf16.mxu0 0
      %4392 = vmatmul.mubr.bf16.gmra.mrb[0].mxu0 %v4348
      %v4393 = vpop.f32.mrb[0].mxu0
      %v4394 = vadd.f32 0.0, %v4393
      %v4395 = vpop.f32.mrb[0].mxu0
      %v4396 = vpop.f32.mrb[0].mxu0
      %v4397 = vadd.f32 0.0, %v4396
      %v4398 = vpop.f32.mrb[0].mxu0
      %4399 = vmatprep.mubr.bf16.mxu0 0
      %4400 = vmatmul.mubr.bf16.gmra.mrb[0].mxu0 %v3650
      %v4401 = vpop.f32.mrb[0].mxu0
      %v4402 = vadd.f32 0.0, %v4401
      %v4403 = vpop.f32.mrb[0].mxu0
      %v4404 = vpop.f32.mrb[0].mxu0
      %v4405 = vadd.f32 0.0, %v4404
      %v4406 = vpop.f32.mrb[0].mxu0
      %4407 = vmatprep.mubr.bf16.mxu0 0
      %4408 = vmatmul.mubr.bf16.gmra.mrb[0].mxu0 %v3653
      %v4409 = vpop.f32.mrb[0].mxu0
      %v4410 = vadd.f32 0.0, %v4409
      %v4411 = vpop.f32.mrb[0].mxu0
      %v4412 = vpop.f32.mrb[0].mxu0
      %v4413 = vadd.f32 0.0, %v4412
      %v4414 = vpop.f32.mrb[0].mxu0
      %4415 = vmatprep.mubr.bf16.mxu0 0
      %4416 = vmatmul.mubr.bf16.gmra.mrb[0].mxu0 %v3656
      %v4417 = vpop.f32.mrb[0].mxu0
      %v4418 = vadd.f32 0.0, %v4417
      %v4419 = vpop.f32.mrb[0].mxu0
      %v4420 = vpop.f32.mrb[0].mxu0
      %v4421 = vadd.f32 0.0, %v4420
      %v4422 = vpop.f32.mrb[0].mxu0
      %4423 = vmatprep.mubr.bf16.mxu0 0
      %4424 = vmatmul.mubr.bf16.gmra.mrb[0].mxu0 %v3659
      %v4425 = vpop.f32.mrb[0].mxu0
      %v4426 = vadd.f32 0.0, %v4425
      %v4427 = vpop.f32.mrb[0].mxu0
      %v4428 = vpop.f32.mrb[0].mxu0
      %v4429 = vadd.f32 0.0, %v4428
      %v4430 = vpop.f32.mrb[0].mxu0
      %4431 = vmatprep.mubr.bf16.mxu0 0
      %4432 = vmatmul.mubr.bf16.gmra.mrb[0].mxu0 %v3662
      %v4433 = vpop.f32.mrb[0].mxu0
      %v4434 = vadd.f32 0.0, %v4433
      %v4435 = vpop.f32.mrb[0].mxu0
      %v4436 = vpop.f32.mrb[0].mxu0
      %v4437 = vadd.f32 0.0, %v4436
      %v4438 = vpop.f32.mrb[0].mxu0
      %4439 = vmatprep.mubr.bf16.mxu0 0
      %4440 = vmatmul.mubr.bf16.gmra.mrb[0].mxu0 %v3665
      %v4441 = vpop.f32.mrb[0].mxu0
      %v4442 = vadd.f32 0.0, %v4441
      %v4443 = vpop.f32.mrb[0].mxu0
      %v4444 = vpop.f32.mrb[0].mxu0
      %v4445 = vadd.f32 0.0, %v4444
      %v4446 = vpop.f32.mrb[0].mxu0
      %4447 = vmatprep.mubr.bf16.mxu0 0
      %4448 = vmatmul.mubr.bf16.gmra.mrb[0].mxu0 %v3668
      %v4449 = vpop.f32.mrb[0].mxu0
      %v4450 = vadd.f32 0.0, %v4449
      %v4451 = vpop.f32.mrb[0].mxu0
      %v4452 = vpop.f32.mrb[0].mxu0
      %v4453 = vadd.f32 0.0, %v4452
      %v4454 = vpop.f32.mrb[0].mxu0
      %4455 = vmatprep.mubr.bf16.mxu0 0
      %4456 = vmatmul.mubr.bf16.gmra.mrb[0].mxu0 %v3671
      %v4457 = vpop.f32.mrb[0].mxu0
      %v4458 = vadd.f32 0.0, %v4457
      %v4459 = vpop.f32.mrb[0].mxu0
      %v4460 = vpop.f32.mrb[0].mxu0
      %v4461 = vadd.f32 0.0, %v4460
      %v4462 = vpop.f32.mrb[0].mxu0
      %4463 = vmatprep.mubr.bf16.mxu0 0
      %4464 = vmatmul.mubr.bf16.gmra.mrb[0].mxu0 %v3674
      %v4465 = vpop.f32.mrb[0].mxu0
      %v4466 = vadd.f32 0.0, %v4465
      %v4467 = vpop.f32.mrb[0].mxu0
      %v4468 = vpop.f32.mrb[0].mxu0
      %v4469 = vadd.f32 0.0, %v4468
      %v4470 = vpop.f32.mrb[0].mxu0
      %4471 = vmatprep.mubr.bf16.mxu0 0
      %4472 = vmatmul.mubr.bf16.gmra.mrb[0].mxu0 %v3677
      %v4473 = vpop.f32.mrb[0].mxu0
      %v4474 = vadd.f32 0.0, %v4473
      %v4475 = vpop.f32.mrb[0].mxu0
      %v4476 = vpop.f32.mrb[0].mxu0
      %v4477 = vadd.f32 0.0, %v4476
      %v4478 = vpop.f32.mrb[0].mxu0
      %4479 = vmatprep.mubr.bf16.mxu0 0
      %4480 = vmatmul.mubr.bf16.gmra.mrb[0].mxu0 %v3680
      %v4481 = vpop.f32.mrb[0].mxu0
      %v4482 = vadd.f32 0.0, %v4481
      %v4483 = vpop.f32.mrb[0].mxu0
      %v4484 = vpop.f32.mrb[0].mxu0
      %v4485 = vadd.f32 0.0, %v4484
      %v4486 = vpop.f32.mrb[0].mxu0
      %4487 = vmatprep.mubr.bf16.mxu0 0
      %4488 = vmatmul.mubr.bf16.gmra.mrb[0].mxu0 %v3683
      %v4489 = vpop.f32.mrb[0].mxu0
      %v4490 = vadd.f32 0.0, %v4489
      %v4491 = vpop.f32.mrb[0].mxu0
      %v4492 = vpop.f32.mrb[0].mxu0
      %v4493 = vadd.f32 0.0, %v4492
      %v4494 = vpop.f32.mrb[0].mxu0
      %4495 = vmatprep.mubr.bf16.mxu0 0
      %4496 = vmatmul.mubr.bf16.gmra.mrb[0].mxu0 %v3686
      %v4497 = vpop.f32.mrb[0].mxu0
      %v4498 = vadd.f32 0.0, %v4497
      %v4499 = vpop.f32.mrb[0].mxu0
      %v4500 = vpop.f32.mrb[0].mxu0
      %v4501 = vadd.f32 0.0, %v4500
      %v4502 = vpop.f32.mrb[0].mxu0
      %4503 = vmatprep.mubr.bf16.mxu0 0
      %4504 = vmatmul.mubr.bf16.gmra.mrb[0].mxu0 %v4351
      %v4505 = vpop.f32.mrb[0].mxu0
      %v4506 = vadd.f32 0.0, %v4505
      %v4507 = vpop.f32.mrb[0].mxu0
      %v4508 = vpop.f32.mrb[0].mxu0
      %v4509 = vadd.f32 0.0, %v4508
      %v4510 = vpop.f32.mrb[0].mxu0
      %4511 = vmatprep.mubr.bf16.mxu0 0
      %4512 = vmatmul.mubr.bf16.gmra.mrb[0].mxu0 %v4354
      %v4513 = vpop.f32.mrb[0].mxu0
      %v4514 = vadd.f32 0.0, %v4513
      %v4515 = vpop.f32.mrb[0].mxu0
      %v4516 = vpop.f32.mrb[0].mxu0
      %v4517 = vadd.f32 0.0, %v4516
      %v4518 = vpop.f32.mrb[0].mxu0
      %4519 = vdwg.mxu0
      %v4520 = vadd.f32 %v4293, %v4394
      %v4521 = vadd.f32 %v4294, %v4397
      %v4522 = vadd.f32 %v4295, %v4402
      %v4523 = vadd.f32 %v4296, %v4405
      %v4524 = vadd.f32 %v4297, %v4410
      %v4525 = vadd.f32 %v4298, %v4413
      %v4526 = vadd.f32 %v4299, %v4418
      %v4527 = vadd.f32 %v4300, %v4421
      %v4528 = vadd.f32 %v4301, %v4426
      %v4529 = vadd.f32 %v4302, %v4429
      %v4530 = vadd.f32 %v4303, %v4434
      %v4531 = vadd.f32 %v4304, %v4437
      %v4532 = vadd.f32 %v4305, %v4442
      %v4533 = vadd.f32 %v4306, %v4445
      %v4534 = vadd.f32 %v4307, %v4450
      %v4535 = vadd.f32 %v4308, %v4453
      %v4536 = vadd.f32 %v4309, %v4458
      %v4537 = vadd.f32 %v4310, %v4461
      %v4538 = vadd.f32 %v4311, %v4466
      %v4539 = vadd.f32 %v4312, %v4469
      %v4540 = vadd.f32 %v4313, %v4474
      %v4541 = vadd.f32 %v4314, %v4477
      %v4542 = vadd.f32 %v4315, %v4482
      %v4543 = vadd.f32 %v4316, %v4485
      %v4544 = vadd.f32 %v4317, %v4490
      %v4545 = vadd.f32 %v4318, %v4493
      %v4546 = vadd.f32 %v4319, %v4498
      %v4547 = vadd.f32 %v4320, %v4501
      %v4548 = vadd.f32 %v4321, %v4506
      %v4549 = vadd.f32 %v4322, %v4509
      %v4550 = vadd.f32 %v4323, %v4514
      %v4551 = vadd.f32 %v4324, %v4517
      %v4552 = vmul.f32 %v292, %v423
      %v4553 = vmul.f32 %v322, %v426
      %v4554 = vpack.c.bf16 %v2847, %v4552
      %v4555 = vpack.c.bf16 %v432, %v4553
      %v4557 = vshrl.u32 %v4554, 16
      %v4559 = vrot.slane %v4557, 3
      %v4560 = vshll.u32 %v4554, 16
      %v4562 = vrot.slane %v4560, 4
      %v4563 = vor.u32 %v4559, %v4562
      %v4564 = vsel %vm711, %v4563, %v3140
      %v4566 = vshrl.u32 %v4555, 16
      %v4568 = vrot.slane %v4566, 3
      %v4569 = vshll.u32 %v4555, 16
      %v4571 = vrot.slane %v4569, 4
      %v4572 = vor.u32 %v4568, %v4571
      %v4573 = vsel %vm711, %v3909, %v4572
      %v4574 = vsel %vm711, %v4572, %v2216
      %v4576 = vsel %vm497, %v4564, 0
      %v4579 = vsel %vm497, %v4573, 0
      %v4582 = vsel %vm497, %v4574, 0
      %v4585 = vsel %vm546, %v393, 0
      %4587 = vmatprep.subr.bf16.mxu0 0
      %4588 = vmatpush1.bf16.msra.mxu0 %v4585
      %4589 = vmatprep.subr.bf16.mxu0 0
      %4590 = vmatpush1.bf16.msra.mxu0 0
      %4591 = vmatprep.subr.bf16.mxu0 0
      %4592 = vmatpush1.bf16.msra.mxu0 0
      %4593 = vmatprep.subr.bf16.mxu0 0
      %4594 = vmatpush1.bf16.msra.mxu0 0
      %4595 = vmatprep.subr.bf16.mxu0 0
      %4596 = vmatpush1.bf16.msra.mxu0 0
      %4597 = vmatprep.subr.bf16.mxu0 0
      %4598 = vmatpush1.bf16.msra.mxu0 0
      %4599 = vmatprep.subr.bf16.mxu0 0
      %4600 = vmatpush1.bf16.msra.mxu0 0
      %4601 = vmatprep.subr.bf16.mxu0 0
      %4602 = vmatpush1.bf16.msra.mxu0 0
      %4603 = vmatprep.subr.bf16.mxu0 0
      %4604 = vmatpush1.bf16.msra.mxu0 0
      %4605 = vmatprep.subr.bf16.mxu0 0
      %4606 = vmatpush1.bf16.msra.mxu0 0
      %4607 = vmatprep.subr.bf16.mxu0 0
      %4608 = vmatpush1.bf16.msra.mxu0 0
      %4609 = vmatprep.subr.bf16.mxu0 0
      %4610 = vmatpush1.bf16.msra.mxu0 0
      %4611 = vmatprep.subr.bf16.mxu0 0
      %4612 = vmatpush1.bf16.msra.mxu0 0
      %4613 = vmatprep.subr.bf16.mxu0 0
      %4614 = vmatpush1.bf16.msra.mxu0 0
      %4615 = vmatprep.subr.bf16.mxu0 0
      %4616 = vmatpush1.bf16.msra.mxu0 0
      %4617 = vmatprep.subr.bf16.mxu0 0
      %4618 = vmatpush1.bf16.msra.mxu0 0
      %4619 = vmatprep.mubr.bf16.mxu0 0
      %4620 = vmatmul.mubr.bf16.gmra.mrb[0].mxu0 %v4576
      %v4621 = vpop.f32.mrb[0].mxu0
      %v4622 = vadd.f32 0.0, %v4621
      %v4623 = vpop.f32.mrb[0].mxu0
      %v4624 = vpop.f32.mrb[0].mxu0
      %v4625 = vadd.f32 0.0, %v4624
      %v4626 = vpop.f32.mrb[0].mxu0
      %4627 = vmatprep.mubr.bf16.mxu0 0
      %4628 = vmatmul.mubr.bf16.gmra.mrb[0].mxu0 %v3269
      %v4629 = vpop.f32.mrb[0].mxu0
      %v4630 = vadd.f32 0.0, %v4629
      %v4631 = vpop.f32.mrb[0].mxu0
      %v4632 = vpop.f32.mrb[0].mxu0
      %v4633 = vadd.f32 0.0, %v4632
      %v4634 = vpop.f32.mrb[0].mxu0
      %4635 = vmatprep.mubr.bf16.mxu0 0
      %4636 = vmatmul.mubr.bf16.gmra.mrb[0].mxu0 %v3272
      %v4637 = vpop.f32.mrb[0].mxu0
      %v4638 = vadd.f32 0.0, %v4637
      %v4639 = vpop.f32.mrb[0].mxu0
      %v4640 = vpop.f32.mrb[0].mxu0
      %v4641 = vadd.f32 0.0, %v4640
      %v4642 = vpop.f32.mrb[0].mxu0
      %4643 = vmatprep.mubr.bf16.mxu0 0
      %4644 = vmatmul.mubr.bf16.gmra.mrb[0].mxu0 %v3275
      %v4645 = vpop.f32.mrb[0].mxu0
      %v4646 = vadd.f32 0.0, %v4645
      %v4647 = vpop.f32.mrb[0].mxu0
      %v4648 = vpop.f32.mrb[0].mxu0
      %v4649 = vadd.f32 0.0, %v4648
      %v4650 = vpop.f32.mrb[0].mxu0
      %4651 = vmatprep.mubr.bf16.mxu0 0
      %4652 = vmatmul.mubr.bf16.gmra.mrb[0].mxu0 %v3278
      %v4653 = vpop.f32.mrb[0].mxu0
      %v4654 = vadd.f32 0.0, %v4653
      %v4655 = vpop.f32.mrb[0].mxu0
      %v4656 = vpop.f32.mrb[0].mxu0
      %v4657 = vadd.f32 0.0, %v4656
      %v4658 = vpop.f32.mrb[0].mxu0
      %4659 = vmatprep.mubr.bf16.mxu0 0
      %4660 = vmatmul.mubr.bf16.gmra.mrb[0].mxu0 %v3281
      %v4661 = vpop.f32.mrb[0].mxu0
      %v4662 = vadd.f32 0.0, %v4661
      %v4663 = vpop.f32.mrb[0].mxu0
      %v4664 = vpop.f32.mrb[0].mxu0
      %v4665 = vadd.f32 0.0, %v4664
      %v4666 = vpop.f32.mrb[0].mxu0
      %4667 = vmatprep.mubr.bf16.mxu0 0
      %4668 = vmatmul.mubr.bf16.gmra.mrb[0].mxu0 %v3284
      %v4669 = vpop.f32.mrb[0].mxu0
      %v4670 = vadd.f32 0.0, %v4669
      %v4671 = vpop.f32.mrb[0].mxu0
      %v4672 = vpop.f32.mrb[0].mxu0
      %v4673 = vadd.f32 0.0, %v4672
      %v4674 = vpop.f32.mrb[0].mxu0
      %4675 = vmatprep.mubr.bf16.mxu0 0
      %4676 = vmatmul.mubr.bf16.gmra.mrb[0].mxu0 %v3287
      %v4677 = vpop.f32.mrb[0].mxu0
      %v4678 = vadd.f32 0.0, %v4677
      %v4679 = vpop.f32.mrb[0].mxu0
      %v4680 = vpop.f32.mrb[0].mxu0
      %v4681 = vadd.f32 0.0, %v4680
      %v4682 = vpop.f32.mrb[0].mxu0
      %4683 = vmatprep.mubr.bf16.mxu0 0
      %4684 = vmatmul.mubr.bf16.gmra.mrb[0].mxu0 %v3290
      %v4685 = vpop.f32.mrb[0].mxu0
      %v4686 = vadd.f32 0.0, %v4685
      %v4687 = vpop.f32.mrb[0].mxu0
      %v4688 = vpop.f32.mrb[0].mxu0
      %v4689 = vadd.f32 0.0, %v4688
      %v4690 = vpop.f32.mrb[0].mxu0
      %4691 = vmatprep.mubr.bf16.mxu0 0
      %4692 = vmatmul.mubr.bf16.gmra.mrb[0].mxu0 %v3293
      %v4693 = vpop.f32.mrb[0].mxu0
      %v4694 = vadd.f32 0.0, %v4693
      %v4695 = vpop.f32.mrb[0].mxu0
      %v4696 = vpop.f32.mrb[0].mxu0
      %v4697 = vadd.f32 0.0, %v4696
      %v4698 = vpop.f32.mrb[0].mxu0
      %4699 = vmatprep.mubr.bf16.mxu0 0
      %4700 = vmatmul.mubr.bf16.gmra.mrb[0].mxu0 %v3296
      %v4701 = vpop.f32.mrb[0].mxu0
      %v4702 = vadd.f32 0.0, %v4701
      %v4703 = vpop.f32.mrb[0].mxu0
      %v4704 = vpop.f32.mrb[0].mxu0
      %v4705 = vadd.f32 0.0, %v4704
      %v4706 = vpop.f32.mrb[0].mxu0
      %4707 = vmatprep.mubr.bf16.mxu0 0
      %4708 = vmatmul.mubr.bf16.gmra.mrb[0].mxu0 %v3299
      %v4709 = vpop.f32.mrb[0].mxu0
      %v4710 = vadd.f32 0.0, %v4709
      %v4711 = vpop.f32.mrb[0].mxu0
      %v4712 = vpop.f32.mrb[0].mxu0
      %v4713 = vadd.f32 0.0, %v4712
      %v4714 = vpop.f32.mrb[0].mxu0
      %4715 = vmatprep.mubr.bf16.mxu0 0
      %4716 = vmatmul.mubr.bf16.gmra.mrb[0].mxu0 %v3302
      %v4717 = vpop.f32.mrb[0].mxu0
      %v4718 = vadd.f32 0.0, %v4717
      %v4719 = vpop.f32.mrb[0].mxu0
      %v4720 = vpop.f32.mrb[0].mxu0
      %v4721 = vadd.f32 0.0, %v4720
      %v4722 = vpop.f32.mrb[0].mxu0
      %4723 = vmatprep.mubr.bf16.mxu0 0
      %4724 = vmatmul.mubr.bf16.gmra.mrb[0].mxu0 %v3924
      %v4725 = vpop.f32.mrb[0].mxu0
      %v4726 = vadd.f32 0.0, %v4725
      %v4727 = vpop.f32.mrb[0].mxu0
      %v4728 = vpop.f32.mrb[0].mxu0
      %v4729 = vadd.f32 0.0, %v4728
      %v4730 = vpop.f32.mrb[0].mxu0
      %4731 = vmatprep.mubr.bf16.mxu0 0
      %4732 = vmatmul.mubr.bf16.gmra.mrb[0].mxu0 %v4579
      %v4733 = vpop.f32.mrb[0].mxu0
      %v4734 = vadd.f32 0.0, %v4733
      %v4735 = vpop.f32.mrb[0].mxu0
      %v4736 = vpop.f32.mrb[0].mxu0
      %v4737 = vadd.f32 0.0, %v4736
      %v4738 = vpop.f32.mrb[0].mxu0
      %4739 = vmatprep.mubr.bf16.mxu0 0
      %4740 = vmatmul.mubr.bf16.gmra.mrb[0].mxu0 %v4582
      %v4741 = vpop.f32.mrb[0].mxu0
      %v4742 = vadd.f32 0.0, %v4741
      %v4743 = vpop.f32.mrb[0].mxu0
      %v4744 = vpop.f32.mrb[0].mxu0
      %v4745 = vadd.f32 0.0, %v4744
      %v4746 = vpop.f32.mrb[0].mxu0
      %4747 = vdwg.mxu0
      %v4748 = vadd.f32 %v4520, %v4622
      %v4749 = vadd.f32 %v4521, %v4625
      %v4750 = vadd.f32 %v4522, %v4630
      %v4751 = vadd.f32 %v4523, %v4633
      %v4752 = vadd.f32 %v4524, %v4638
      %v4753 = vadd.f32 %v4525, %v4641
      %v4754 = vadd.f32 %v4526, %v4646
      %v4755 = vadd.f32 %v4527, %v4649
      %v4756 = vadd.f32 %v4528, %v4654
      %v4757 = vadd.f32 %v4529, %v4657
      %v4758 = vadd.f32 %v4530, %v4662
      %v4759 = vadd.f32 %v4531, %v4665
      %v4760 = vadd.f32 %v4532, %v4670
      %v4761 = vadd.f32 %v4533, %v4673
      %v4762 = vadd.f32 %v4534, %v4678
      %v4763 = vadd.f32 %v4535, %v4681
      %v4764 = vadd.f32 %v4536, %v4686
      %v4765 = vadd.f32 %v4537, %v4689
      %v4766 = vadd.f32 %v4538, %v4694
      %v4767 = vadd.f32 %v4539, %v4697
      %v4768 = vadd.f32 %v4540, %v4702
      %v4769 = vadd.f32 %v4541, %v4705
      %v4770 = vadd.f32 %v4542, %v4710
      %v4771 = vadd.f32 %v4543, %v4713
      %v4772 = vadd.f32 %v4544, %v4718
      %v4773 = vadd.f32 %v4545, %v4721
      %v4774 = vadd.f32 %v4546, %v4726
      %v4775 = vadd.f32 %v4547, %v4729
      %v4776 = vadd.f32 %v4548, %v4734
      %v4777 = vadd.f32 %v4549, %v4737
      %v4778 = vadd.f32 %v4550, %v4742
      %v4779 = vadd.f32 %v4551, %v4745
      %v4781 = vsel %vm546, %v394, 0
      %4783 = vmatprep.subr.bf16.mxu0 0
      %4784 = vmatpush1.bf16.msra.mxu0 %v4781
      %4785 = vmatprep.subr.bf16.mxu0 0
      %4786 = vmatpush1.bf16.msra.mxu0 0
      %4787 = vmatprep.subr.bf16.mxu0 0
      %4788 = vmatpush1.bf16.msra.mxu0 0
      %4789 = vmatprep.subr.bf16.mxu0 0
      %4790 = vmatpush1.bf16.msra.mxu0 0
      %4791 = vmatprep.subr.bf16.mxu0 0
      %4792 = vmatpush1.bf16.msra.mxu0 0
      %4793 = vmatprep.subr.bf16.mxu0 0
      %4794 = vmatpush1.bf16.msra.mxu0 0
      %4795 = vmatprep.subr.bf16.mxu0 0
      %4796 = vmatpush1.bf16.msra.mxu0 0
      %4797 = vmatprep.subr.bf16.mxu0 0
      %4798 = vmatpush1.bf16.msra.mxu0 0
      %4799 = vmatprep.subr.bf16.mxu0 0
      %4800 = vmatpush1.bf16.msra.mxu0 0
      %4801 = vmatprep.subr.bf16.mxu0 0
      %4802 = vmatpush1.bf16.msra.mxu0 0
      %4803 = vmatprep.subr.bf16.mxu0 0
      %4804 = vmatpush1.bf16.msra.mxu0 0
      %4805 = vmatprep.subr.bf16.mxu0 0
      %4806 = vmatpush1.bf16.msra.mxu0 0
      %4807 = vmatprep.subr.bf16.mxu0 0
      %4808 = vmatpush1.bf16.msra.mxu0 0
      %4809 = vmatprep.subr.bf16.mxu0 0
      %4810 = vmatpush1.bf16.msra.mxu0 0
      %4811 = vmatprep.subr.bf16.mxu0 0
      %4812 = vmatpush1.bf16.msra.mxu0 0
      %4813 = vmatprep.subr.bf16.mxu0 0
      %4814 = vmatpush1.bf16.msra.mxu0 0
      %4815 = vmatprep.mubr.bf16.mxu0 0
      %4816 = vmatmul.mubr.bf16.gmra.mrb[0].mxu0 %v2910
      %v4817 = vpop.f32.mrb[0].mxu0
      %v4818 = vadd.f32 0.0, %v4817
      %v4819 = vpop.f32.mrb[0].mxu0
      %v4820 = vpop.f32.mrb[0].mxu0
      %v4821 = vadd.f32 0.0, %v4820
      %v4822 = vpop.f32.mrb[0].mxu0
      %4823 = vmatprep.mubr.bf16.mxu0 0
      %4824 = vmatmul.mubr.bf16.gmra.mrb[0].mxu0 %v2913
      %v4825 = vpop.f32.mrb[0].mxu0
      %v4826 = vadd.f32 0.0, %v4825
      %v4827 = vpop.f32.mrb[0].mxu0
      %v4828 = vpop.f32.mrb[0].mxu0
      %v4829 = vadd.f32 0.0, %v4828
      %v4830 = vpop.f32.mrb[0].mxu0
      %4831 = vmatprep.mubr.bf16.mxu0 0
      %4832 = vmatmul.mubr.bf16.gmra.mrb[0].mxu0 %v2916
      %v4833 = vpop.f32.mrb[0].mxu0
      %v4834 = vadd.f32 0.0, %v4833
      %v4835 = vpop.f32.mrb[0].mxu0
      %v4836 = vpop.f32.mrb[0].mxu0
      %v4837 = vadd.f32 0.0, %v4836
      %v4838 = vpop.f32.mrb[0].mxu0
      %4839 = vmatprep.mubr.bf16.mxu0 0
      %4840 = vmatmul.mubr.bf16.gmra.mrb[0].mxu0 %v2919
      %v4841 = vpop.f32.mrb[0].mxu0
      %v4842 = vadd.f32 0.0, %v4841
      %v4843 = vpop.f32.mrb[0].mxu0
      %v4844 = vpop.f32.mrb[0].mxu0
      %v4845 = vadd.f32 0.0, %v4844
      %v4846 = vpop.f32.mrb[0].mxu0
      %4847 = vmatprep.mubr.bf16.mxu0 0
      %4848 = vmatmul.mubr.bf16.gmra.mrb[0].mxu0 %v2922
      %v4849 = vpop.f32.mrb[0].mxu0
      %v4850 = vadd.f32 0.0, %v4849
      %v4851 = vpop.f32.mrb[0].mxu0
      %v4852 = vpop.f32.mrb[0].mxu0
      %v4853 = vadd.f32 0.0, %v4852
      %v4854 = vpop.f32.mrb[0].mxu0
      %4855 = vmatprep.mubr.bf16.mxu0 0
      %4856 = vmatmul.mubr.bf16.gmra.mrb[0].mxu0 %v2925
      %v4857 = vpop.f32.mrb[0].mxu0
      %v4858 = vadd.f32 0.0, %v4857
      %v4859 = vpop.f32.mrb[0].mxu0
      %v4860 = vpop.f32.mrb[0].mxu0
      %v4861 = vadd.f32 0.0, %v4860
      %v4862 = vpop.f32.mrb[0].mxu0
      %4863 = vmatprep.mubr.bf16.mxu0 0
      %4864 = vmatmul.mubr.bf16.gmra.mrb[0].mxu0 %v2928
      %v4865 = vpop.f32.mrb[0].mxu0
      %v4866 = vadd.f32 0.0, %v4865
      %v4867 = vpop.f32.mrb[0].mxu0
      %v4868 = vpop.f32.mrb[0].mxu0
      %v4869 = vadd.f32 0.0, %v4868
      %v4870 = vpop.f32.mrb[0].mxu0
      %4871 = vmatprep.mubr.bf16.mxu0 0
      %4872 = vmatmul.mubr.bf16.gmra.mrb[0].mxu0 %v2931
      %v4873 = vpop.f32.mrb[0].mxu0
      %v4874 = vadd.f32 0.0, %v4873
      %v4875 = vpop.f32.mrb[0].mxu0
      %v4876 = vpop.f32.mrb[0].mxu0
      %v4877 = vadd.f32 0.0, %v4876
      %v4878 = vpop.f32.mrb[0].mxu0
      %4879 = vmatprep.mubr.bf16.mxu0 0
      %4880 = vmatmul.mubr.bf16.gmra.mrb[0].mxu0 %v2934
      %v4881 = vpop.f32.mrb[0].mxu0
      %v4882 = vadd.f32 0.0, %v4881
      %v4883 = vpop.f32.mrb[0].mxu0
      %v4884 = vpop.f32.mrb[0].mxu0
      %v4885 = vadd.f32 0.0, %v4884
      %v4886 = vpop.f32.mrb[0].mxu0
      %4887 = vmatprep.mubr.bf16.mxu0 0
      %4888 = vmatmul.mubr.bf16.gmra.mrb[0].mxu0 %v2937
      %v4889 = vpop.f32.mrb[0].mxu0
      %v4890 = vadd.f32 0.0, %v4889
      %v4891 = vpop.f32.mrb[0].mxu0
      %v4892 = vpop.f32.mrb[0].mxu0
      %v4893 = vadd.f32 0.0, %v4892
      %v4894 = vpop.f32.mrb[0].mxu0
      %4895 = vmatprep.mubr.bf16.mxu0 0
      %4896 = vmatmul.mubr.bf16.gmra.mrb[0].mxu0 %v2940
      %v4897 = vpop.f32.mrb[0].mxu0
      %v4898 = vadd.f32 0.0, %v4897
      %v4899 = vpop.f32.mrb[0].mxu0
      %v4900 = vpop.f32.mrb[0].mxu0
      %v4901 = vadd.f32 0.0, %v4900
      %v4902 = vpop.f32.mrb[0].mxu0
      %4903 = vmatprep.mubr.bf16.mxu0 0
      %4904 = vmatmul.mubr.bf16.gmra.mrb[0].mxu0 %v2943
      %v4905 = vpop.f32.mrb[0].mxu0
      %v4906 = vadd.f32 0.0, %v4905
      %v4907 = vpop.f32.mrb[0].mxu0
      %v4908 = vpop.f32.mrb[0].mxu0
      %v4909 = vadd.f32 0.0, %v4908
      %v4910 = vpop.f32.mrb[0].mxu0
      %4911 = vmatprep.mubr.bf16.mxu0 0
      %4912 = vmatmul.mubr.bf16.gmra.mrb[0].mxu0 %v2946
      %v4913 = vpop.f32.mrb[0].mxu0
      %v4914 = vadd.f32 0.0, %v4913
      %v4915 = vpop.f32.mrb[0].mxu0
      %v4916 = vpop.f32.mrb[0].mxu0
      %v4917 = vadd.f32 0.0, %v4916
      %v4918 = vpop.f32.mrb[0].mxu0
      %4919 = vmatprep.mubr.bf16.mxu0 0
      %4920 = vmatmul.mubr.bf16.gmra.mrb[0].mxu0 %v2949
      %v4921 = vpop.f32.mrb[0].mxu0
      %v4922 = vadd.f32 0.0, %v4921
      %v4923 = vpop.f32.mrb[0].mxu0
      %v4924 = vpop.f32.mrb[0].mxu0
      %v4925 = vadd.f32 0.0, %v4924
      %v4926 = vpop.f32.mrb[0].mxu0
      %4927 = vmatprep.mubr.bf16.mxu0 0
      %4928 = vmatmul.mubr.bf16.gmra.mrb[0].mxu0 %v4127
      %v4929 = vpop.f32.mrb[0].mxu0
      %v4930 = vadd.f32 0.0, %v4929
      %v4931 = vpop.f32.mrb[0].mxu0
      %v4932 = vpop.f32.mrb[0].mxu0
      %v4933 = vadd.f32 0.0, %v4932
      %v4934 = vpop.f32.mrb[0].mxu0
      %4935 = vmatprep.mubr.bf16.mxu0 0
      %4936 = vmatmul.mubr.bf16.gmra.mrb[0].mxu0 %v499
      %v4937 = vpop.f32.mrb[0].mxu0
      %v4938 = vadd.f32 0.0, %v4937
      %v4939 = vpop.f32.mrb[0].mxu0
      %v4940 = vpop.f32.mrb[0].mxu0
      %v4941 = vadd.f32 0.0, %v4940
      %v4942 = vpop.f32.mrb[0].mxu0
      %4943 = vdwg.mxu0
      %v4944 = vadd.f32 %v4748, %v4818
      %v4945 = vadd.f32 %v4749, %v4821
      %v4946 = vadd.f32 %v4750, %v4826
      %v4947 = vadd.f32 %v4751, %v4829
      %v4948 = vadd.f32 %v4752, %v4834
      %v4949 = vadd.f32 %v4753, %v4837
      %v4950 = vadd.f32 %v4754, %v4842
      %v4951 = vadd.f32 %v4755, %v4845
      %v4952 = vadd.f32 %v4756, %v4850
      %v4953 = vadd.f32 %v4757, %v4853
      %v4954 = vadd.f32 %v4758, %v4858
      %v4955 = vadd.f32 %v4759, %v4861
      %v4956 = vadd.f32 %v4760, %v4866
      %v4957 = vadd.f32 %v4761, %v4869
      %v4958 = vadd.f32 %v4762, %v4874
      %v4959 = vadd.f32 %v4763, %v4877
      %v4960 = vadd.f32 %v4764, %v4882
      %v4961 = vadd.f32 %v4765, %v4885
      %v4962 = vadd.f32 %v4766, %v4890
      %v4963 = vadd.f32 %v4767, %v4893
      %v4964 = vadd.f32 %v4768, %v4898
      %v4965 = vadd.f32 %v4769, %v4901
      %v4966 = vadd.f32 %v4770, %v4906
      %v4967 = vadd.f32 %v4771, %v4909
      %v4968 = vadd.f32 %v4772, %v4914
      %v4969 = vadd.f32 %v4773, %v4917
      %v4970 = vadd.f32 %v4774, %v4922
      %v4971 = vadd.f32 %v4775, %v4925
      %v4972 = vadd.f32 %v4776, %v4930
      %v4973 = vadd.f32 %v4777, %v4933
      %v4974 = vadd.f32 %v4778, %v4938
      %v4975 = vadd.f32 %v4779, %v4941
      %v4976 = vmul.f32 %v293, %v1079
      %v4977 = vpack.c.bf16 %v3474, %v4976
      %v4979 = vshrl.u32 %v4977, 16
      %v4981 = vshll.u32 %v4977, 16
      %v4983 = vrot.slane %v4981, 1
      %v4984 = vor.u32 %v4979, %v4983
      %v4985 = vsel %vm1137, %v4984, %v3537
      %v4986 = vsel %vm1137, %v4345, %v2634
      %v4988 = vsel %vm497, %v4985, 0
      %v4991 = vsel %vm497, %v4986, 0
      %v4994 = vsel %vm546, %v395, 0
      %4996 = vmatprep.subr.bf16.mxu0 0
      %4997 = vmatpush1.bf16.msra.mxu0 %v4994
      %4998 = vmatprep.subr.bf16.mxu0 0
      %4999 = vmatpush1.bf16.msra.mxu0 0
      %5000 = vmatprep.subr.bf16.mxu0 0
      %5001 = vmatpush1.bf16.msra.mxu0 0
      %5002 = vmatprep.subr.bf16.mxu0 0
      %5003 = vmatpush1.bf16.msra.mxu0 0
      %5004 = vmatprep.subr.bf16.mxu0 0
      %5005 = vmatpush1.bf16.msra.mxu0 0
      %5006 = vmatprep.subr.bf16.mxu0 0
      %5007 = vmatpush1.bf16.msra.mxu0 0
      %5008 = vmatprep.subr.bf16.mxu0 0
      %5009 = vmatpush1.bf16.msra.mxu0 0
      %5010 = vmatprep.subr.bf16.mxu0 0
      %5011 = vmatpush1.bf16.msra.mxu0 0
      %5012 = vmatprep.subr.bf16.mxu0 0
      %5013 = vmatpush1.bf16.msra.mxu0 0
      %5014 = vmatprep.subr.bf16.mxu0 0
      %5015 = vmatpush1.bf16.msra.mxu0 0
      %5016 = vmatprep.subr.bf16.mxu0 0
      %5017 = vmatpush1.bf16.msra.mxu0 0
      %5018 = vmatprep.subr.bf16.mxu0 0
      %5019 = vmatpush1.bf16.msra.mxu0 0
      %5020 = vmatprep.subr.bf16.mxu0 0
      %5021 = vmatpush1.bf16.msra.mxu0 0
      %5022 = vmatprep.subr.bf16.mxu0 0
      %5023 = vmatpush1.bf16.msra.mxu0 0
      %5024 = vmatprep.subr.bf16.mxu0 0
      %5025 = vmatpush1.bf16.msra.mxu0 0
      %5026 = vmatprep.subr.bf16.mxu0 0
      %5027 = vmatpush1.bf16.msra.mxu0 0
      %5028 = vmatprep.mubr.bf16.mxu0 0
      %5029 = vmatmul.mubr.bf16.gmra.mrb[0].mxu0 %v4988
      %v5030 = vpop.f32.mrb[0].mxu0
      %v5031 = vadd.f32 0.0, %v5030
      %v5032 = vpop.f32.mrb[0].mxu0
      %v5033 = vpop.f32.mrb[0].mxu0
      %v5034 = vadd.f32 0.0, %v5033
      %v5035 = vpop.f32.mrb[0].mxu0
      %5036 = vmatprep.mubr.bf16.mxu0 0
      %5037 = vmatmul.mubr.bf16.gmra.mrb[0].mxu0 %v3653
      %v5038 = vpop.f32.mrb[0].mxu0
      %v5039 = vadd.f32 0.0, %v5038
      %v5040 = vpop.f32.mrb[0].mxu0
      %v5041 = vpop.f32.mrb[0].mxu0
      %v5042 = vadd.f32 0.0, %v5041
      %v5043 = vpop.f32.mrb[0].mxu0
      %5044 = vmatprep.mubr.bf16.mxu0 0
      %5045 = vmatmul.mubr.bf16.gmra.mrb[0].mxu0 %v3656
      %v5046 = vpop.f32.mrb[0].mxu0
      %v5047 = vadd.f32 0.0, %v5046
      %v5048 = vpop.f32.mrb[0].mxu0
      %v5049 = vpop.f32.mrb[0].mxu0
      %v5050 = vadd.f32 0.0, %v5049
      %v5051 = vpop.f32.mrb[0].mxu0
      %5052 = vmatprep.mubr.bf16.mxu0 0
      %5053 = vmatmul.mubr.bf16.gmra.mrb[0].mxu0 %v3659
      %v5054 = vpop.f32.mrb[0].mxu0
      %v5055 = vadd.f32 0.0, %v5054
      %v5056 = vpop.f32.mrb[0].mxu0
      %v5057 = vpop.f32.mrb[0].mxu0
      %v5058 = vadd.f32 0.0, %v5057
      %v5059 = vpop.f32.mrb[0].mxu0
      %5060 = vmatprep.mubr.bf16.mxu0 0
      %5061 = vmatmul.mubr.bf16.gmra.mrb[0].mxu0 %v3662
      %v5062 = vpop.f32.mrb[0].mxu0
      %v5063 = vadd.f32 0.0, %v5062
      %v5064 = vpop.f32.mrb[0].mxu0
      %v5065 = vpop.f32.mrb[0].mxu0
      %v5066 = vadd.f32 0.0, %v5065
      %v5067 = vpop.f32.mrb[0].mxu0
      %5068 = vmatprep.mubr.bf16.mxu0 0
      %5069 = vmatmul.mubr.bf16.gmra.mrb[0].mxu0 %v3665
      %v5070 = vpop.f32.mrb[0].mxu0
      %v5071 = vadd.f32 0.0, %v5070
      %v5072 = vpop.f32.mrb[0].mxu0
      %v5073 = vpop.f32.mrb[0].mxu0
      %v5074 = vadd.f32 0.0, %v5073
      %v5075 = vpop.f32.mrb[0].mxu0
      %5076 = vmatprep.mubr.bf16.mxu0 0
      %5077 = vmatmul.mubr.bf16.gmra.mrb[0].mxu0 %v3668
      %v5078 = vpop.f32.mrb[0].mxu0
      %v5079 = vadd.f32 0.0, %v5078
      %v5080 = vpop.f32.mrb[0].mxu0
      %v5081 = vpop.f32.mrb[0].mxu0
      %v5082 = vadd.f32 0.0, %v5081
      %v5083 = vpop.f32.mrb[0].mxu0
      %5084 = vmatprep.mubr.bf16.mxu0 0
      %5085 = vmatmul.mubr.bf16.gmra.mrb[0].mxu0 %v3671
      %v5086 = vpop.f32.mrb[0].mxu0
      %v5087 = vadd.f32 0.0, %v5086
      %v5088 = vpop.f32.mrb[0].mxu0
      %v5089 = vpop.f32.mrb[0].mxu0
      %v5090 = vadd.f32 0.0, %v5089
      %v5091 = vpop.f32.mrb[0].mxu0
      %5092 = vmatprep.mubr.bf16.mxu0 0
      %5093 = vmatmul.mubr.bf16.gmra.mrb[0].mxu0 %v3674
      %v5094 = vpop.f32.mrb[0].mxu0
      %v5095 = vadd.f32 0.0, %v5094
      %v5096 = vpop.f32.mrb[0].mxu0
      %v5097 = vpop.f32.mrb[0].mxu0
      %v5098 = vadd.f32 0.0, %v5097
      %v5099 = vpop.f32.mrb[0].mxu0
      %5100 = vmatprep.mubr.bf16.mxu0 0
      %5101 = vmatmul.mubr.bf16.gmra.mrb[0].mxu0 %v3677
      %v5102 = vpop.f32.mrb[0].mxu0
      %v5103 = vadd.f32 0.0, %v5102
      %v5104 = vpop.f32.mrb[0].mxu0
      %v5105 = vpop.f32.mrb[0].mxu0
      %v5106 = vadd.f32 0.0, %v5105
      %v5107 = vpop.f32.mrb[0].mxu0
      %5108 = vmatprep.mubr.bf16.mxu0 0
      %5109 = vmatmul.mubr.bf16.gmra.mrb[0].mxu0 %v3680
      %v5110 = vpop.f32.mrb[0].mxu0
      %v5111 = vadd.f32 0.0, %v5110
      %v5112 = vpop.f32.mrb[0].mxu0
      %v5113 = vpop.f32.mrb[0].mxu0
      %v5114 = vadd.f32 0.0, %v5113
      %v5115 = vpop.f32.mrb[0].mxu0
      %5116 = vmatprep.mubr.bf16.mxu0 0
      %5117 = vmatmul.mubr.bf16.gmra.mrb[0].mxu0 %v3683
      %v5118 = vpop.f32.mrb[0].mxu0
      %v5119 = vadd.f32 0.0, %v5118
      %v5120 = vpop.f32.mrb[0].mxu0
      %v5121 = vpop.f32.mrb[0].mxu0
      %v5122 = vadd.f32 0.0, %v5121
      %v5123 = vpop.f32.mrb[0].mxu0
      %5124 = vmatprep.mubr.bf16.mxu0 0
      %5125 = vmatmul.mubr.bf16.gmra.mrb[0].mxu0 %v3686
      %v5126 = vpop.f32.mrb[0].mxu0
      %v5127 = vadd.f32 0.0, %v5126
      %v5128 = vpop.f32.mrb[0].mxu0
      %v5129 = vpop.f32.mrb[0].mxu0
      %v5130 = vadd.f32 0.0, %v5129
      %v5131 = vpop.f32.mrb[0].mxu0
      %5132 = vmatprep.mubr.bf16.mxu0 0
      %5133 = vmatmul.mubr.bf16.gmra.mrb[0].mxu0 %v4351
      %v5134 = vpop.f32.mrb[0].mxu0
      %v5135 = vadd.f32 0.0, %v5134
      %v5136 = vpop.f32.mrb[0].mxu0
      %v5137 = vpop.f32.mrb[0].mxu0
      %v5138 = vadd.f32 0.0, %v5137
      %v5139 = vpop.f32.mrb[0].mxu0
      %5140 = vmatprep.mubr.bf16.mxu0 0
      %5141 = vmatmul.mubr.bf16.gmra.mrb[0].mxu0 %v4991
      %v5142 = vpop.f32.mrb[0].mxu0
      %v5143 = vadd.f32 0.0, %v5142
      %v5144 = vpop.f32.mrb[0].mxu0
      %v5145 = vpop.f32.mrb[0].mxu0
      %v5146 = vadd.f32 0.0, %v5145
      %v5147 = vpop.f32.mrb[0].mxu0
      %5148 = vmatprep.mubr.bf16.mxu0 0
      %5149 = vmatmul.mubr.bf16.gmra.mrb[0].mxu0 %v2647
      %v5150 = vpop.f32.mrb[0].mxu0
      %v5151 = vadd.f32 0.0, %v5150
      %v5152 = vpop.f32.mrb[0].mxu0
      %v5153 = vpop.f32.mrb[0].mxu0
      %v5154 = vadd.f32 0.0, %v5153
      %v5155 = vpop.f32.mrb[0].mxu0
      %5156 = vdwg.mxu0
      %v5157 = vadd.f32 %v4944, %v5031
      %v5158 = vadd.f32 %v4945, %v5034
      %v5159 = vadd.f32 %v4946, %v5039
      %v5160 = vadd.f32 %v4947, %v5042
      %v5161 = vadd.f32 %v4948, %v5047
      %v5162 = vadd.f32 %v4949, %v5050
      %v5163 = vadd.f32 %v4950, %v5055
      %v5164 = vadd.f32 %v4951, %v5058
      %v5165 = vadd.f32 %v4952, %v5063
      %v5166 = vadd.f32 %v4953, %v5066
      %v5167 = vadd.f32 %v4954, %v5071
      %v5168 = vadd.f32 %v4955, %v5074
      %v5169 = vadd.f32 %v4956, %v5079
      %v5170 = vadd.f32 %v4957, %v5082
      %v5171 = vadd.f32 %v4958, %v5087
      %v5172 = vadd.f32 %v4959, %v5090
      %v5173 = vadd.f32 %v4960, %v5095
      %v5174 = vadd.f32 %v4961, %v5098
      %v5175 = vadd.f32 %v4962, %v5103
      %v5176 = vadd.f32 %v4963, %v5106
      %v5177 = vadd.f32 %v4964, %v5111
      %v5178 = vadd.f32 %v4965, %v5114
      %v5179 = vadd.f32 %v4966, %v5119
      %v5180 = vadd.f32 %v4967, %v5122
      %v5181 = vadd.f32 %v4968, %v5127
      %v5182 = vadd.f32 %v4969, %v5130
      %v5183 = vadd.f32 %v4970, %v5135
      %v5184 = vadd.f32 %v4971, %v5138
      %v5185 = vadd.f32 %v4972, %v5143
      %v5186 = vadd.f32 %v4973, %v5146
      %v5187 = vadd.f32 %v4974, %v5151
      %v5188 = vadd.f32 %v4975, %v5154
      %v5189 = vxor.u32 %v5157, 2147483648
      %v5190 = vxor.u32 %v5158, 2147483648
      %v5191 = vxor.u32 %v5159, 2147483648
      %v5192 = vxor.u32 %v5160, 2147483648
      %v5193 = vxor.u32 %v5161, 2147483648
      %v5194 = vxor.u32 %v5162, 2147483648
      %v5195 = vxor.u32 %v5163, 2147483648
      %v5196 = vxor.u32 %v5164, 2147483648
      %v5197 = vxor.u32 %v5165, 2147483648
      %v5198 = vxor.u32 %v5166, 2147483648
      %v5199 = vxor.u32 %v5167, 2147483648
      %v5200 = vxor.u32 %v5168, 2147483648
      %v5201 = vxor.u32 %v5169, 2147483648
      %v5202 = vxor.u32 %v5170, 2147483648
      %v5203 = vxor.u32 %v5171, 2147483648
      %v5204 = vxor.u32 %v5172, 2147483648
      %v5205 = vxor.u32 %v5173, 2147483648
      %v5206 = vxor.u32 %v5174, 2147483648
      %v5207 = vxor.u32 %v5175, 2147483648
      %v5208 = vxor.u32 %v5176, 2147483648
      %v5209 = vxor.u32 %v5177, 2147483648
      %v5210 = vxor.u32 %v5178, 2147483648
      %v5211 = vxor.u32 %v5179, 2147483648
      %v5212 = vxor.u32 %v5180, 2147483648
      %v5213 = vxor.u32 %v5181, 2147483648
      %v5214 = vxor.u32 %v5182, 2147483648
      %v5215 = vxor.u32 %v5183, 2147483648
      %v5216 = vxor.u32 %v5184, 2147483648
      %v5217 = vxor.u32 %v5185, 2147483648
      %v5218 = vxor.u32 %v5186, 2147483648
      %v5219 = vxor.u32 %v5187, 2147483648
      %v5220 = vxor.u32 %v5188, 2147483648
      %v5221 = vmul.f32 %v5189, 1.442695
      %v5222 = vpow.pop %v5221
      %v5223 = vmul.f32 %v5190, 1.442695
      %v5224 = vpow.pop %v5223
      %v5225 = vmul.f32 %v5191, 1.442695
      %v5226 = vpow.pop %v5225
      %v5227 = vmul.f32 %v5192, 1.442695
      %v5228 = vpow.pop %v5227
      %v5229 = vmul.f32 %v5193, 1.442695
      %v5230 = vpow.pop %v5229
      %v5231 = vmul.f32 %v5194, 1.442695
      %v5232 = vpow.pop %v5231
      %v5233 = vmul.f32 %v5195, 1.442695
      %v5234 = vpow.pop %v5233
      %v5235 = vmul.f32 %v5196, 1.442695
      %v5236 = vpow.pop %v5235
      %v5237 = vmul.f32 %v5197, 1.442695
      %v5238 = vpow.pop %v5237
      %v5239 = vmul.f32 %v5198, 1.442695
      %v5240 = vpow.pop %v5239
      %v5241 = vmul.f32 %v5199, 1.442695
      %v5242 = vpow.pop %v5241
      %v5243 = vmul.f32 %v5200, 1.442695
      %v5244 = vpow.pop %v5243
      %v5245 = vmul.f32 %v5201, 1.442695
      %v5246 = vpow.pop %v5245
      %v5247 = vmul.f32 %v5202, 1.442695
      %v5248 = vpow.pop %v5247
      %v5249 = vmul.f32 %v5203, 1.442695
      %v5250 = vpow.pop %v5249
      %v5251 = vmul.f32 %v5204, 1.442695
      %v5252 = vpow.pop %v5251
      %v5253 = vmul.f32 %v5205, 1.442695
      %v5254 = vpow.pop %v5253
      %v5255 = vmul.f32 %v5206, 1.442695
      %v5256 = vpow.pop %v5255
      %v5257 = vmul.f32 %v5207, 1.442695
      %v5258 = vpow.pop %v5257
      %v5259 = vmul.f32 %v5208, 1.442695
      %v5260 = vpow.pop %v5259
      %v5261 = vmul.f32 %v5209, 1.442695
      %v5262 = vpow.pop %v5261
      %v5263 = vmul.f32 %v5210, 1.442695
      %v5264 = vpow.pop %v5263
      %v5265 = vmul.f32 %v5211, 1.442695
      %v5266 = vpow.pop %v5265
      %v5267 = vmul.f32 %v5212, 1.442695
      %v5268 = vpow.pop %v5267
      %v5269 = vmul.f32 %v5213, 1.442695
      %v5270 = vpow.pop %v5269
      %v5271 = vmul.f32 %v5214, 1.442695
      %v5272 = vpow.pop %v5271
      %v5273 = vmul.f32 %v5215, 1.442695
      %v5274 = vpow.pop %v5273
      %v5275 = vmul.f32 %v5216, 1.442695
      %v5276 = vpow.pop %v5275
      %v5277 = vmul.f32 %v5217, 1.442695
      %v5278 = vpow.pop %v5277
      %v5279 = vmul.f32 %v5218, 1.442695
      %v5280 = vpow.pop %v5279
      %v5281 = vmul.f32 %v5219, 1.442695
      %v5282 = vpow.pop %v5281
      %v5283 = vmul.f32 %v5220, 1.442695
      %v5284 = vpow.pop %v5283
      %v5285 = vadd.f32 %v5222, 1.0
      %v5286 = vadd.f32 %v5224, 1.0
      %v5287 = vadd.f32 %v5226, 1.0
      %v5288 = vadd.f32 %v5228, 1.0
      %v5289 = vadd.f32 %v5230, 1.0
      %v5290 = vadd.f32 %v5232, 1.0
      %v5291 = vadd.f32 %v5234, 1.0
      %v5292 = vadd.f32 %v5236, 1.0
      %v5293 = vadd.f32 %v5238, 1.0
      %v5294 = vadd.f32 %v5240, 1.0
      %v5295 = vadd.f32 %v5242, 1.0
      %v5296 = vadd.f32 %v5244, 1.0
      %v5297 = vadd.f32 %v5246, 1.0
      %v5298 = vadd.f32 %v5248, 1.0
      %v5299 = vadd.f32 %v5250, 1.0
      %v5300 = vadd.f32 %v5252, 1.0
      %v5301 = vadd.f32 %v5254, 1.0
      %v5302 = vadd.f32 %v5256, 1.0
      %v5303 = vadd.f32 %v5258, 1.0
      %v5304 = vadd.f32 %v5260, 1.0
      %v5305 = vadd.f32 %v5262, 1.0
      %v5306 = vadd.f32 %v5264, 1.0
      %v5307 = vadd.f32 %v5266, 1.0
      %v5308 = vadd.f32 %v5268, 1.0
      %v5309 = vadd.f32 %v5270, 1.0
      %v5310 = vadd.f32 %v5272, 1.0
      %v5311 = vadd.f32 %v5274, 1.0
      %v5312 = vadd.f32 %v5276, 1.0
      %v5313 = vadd.f32 %v5278, 1.0
      %v5314 = vadd.f32 %v5280, 1.0
      %v5315 = vadd.f32 %v5282, 1.0
      %v5316 = vadd.f32 %v5284, 1.0
      %v5317 = vrcp.pop %v5285
      %v5318 = vmul.f32 1.0, %v5317
      %v5319 = vrcp.pop %v5286
      %v5320 = vmul.f32 1.0, %v5319
      %v5321 = vrcp.pop %v5287
      %v5322 = vmul.f32 1.0, %v5321
      %v5323 = vrcp.pop %v5288
      %v5324 = vmul.f32 1.0, %v5323
      %v5325 = vrcp.pop %v5289
      %v5326 = vmul.f32 1.0, %v5325
      %v5327 = vrcp.pop %v5290
      %v5328 = vmul.f32 1.0, %v5327
      %v5329 = vrcp.pop %v5291
      %v5330 = vmul.f32 1.0, %v5329
      %v5331 = vrcp.pop %v5292
      %v5332 = vmul.f32 1.0, %v5331
      %v5333 = vrcp.pop %v5293
      %v5334 = vmul.f32 1.0, %v5333
      %v5335 = vrcp.pop %v5294
      %v5336 = vmul.f32 1.0, %v5335
      %v5337 = vrcp.pop %v5295
      %v5338 = vmul.f32 1.0, %v5337
      %v5339 = vrcp.pop %v5296
      %v5340 = vmul.f32 1.0, %v5339
      %v5341 = vrcp.pop %v5297
      %v5342 = vmul.f32 1.0, %v5341
      %v5343 = vrcp.pop %v5298
      %v5344 = vmul.f32 1.0, %v5343
      %v5345 = vrcp.pop %v5299
      %v5346 = vmul.f32 1.0, %v5345
      %v5347 = vrcp.pop %v5300
      %v5348 = vmul.f32 1.0, %v5347
      %v5349 = vrcp.pop %v5301
      %v5350 = vmul.f32 1.0, %v5349
      %v5351 = vrcp.pop %v5302
      %v5352 = vmul.f32 1.0, %v5351
      %v5353 = vrcp.pop %v5303
      %v5354 = vmul.f32 1.0, %v5353
      %v5355 = vrcp.pop %v5304
      %v5356 = vmul.f32 1.0, %v5355
      %v5357 = vrcp.pop %v5305
      %v5358 = vmul.f32 1.0, %v5357
      %v5359 = vrcp.pop %v5306
      %v5360 = vmul.f32 1.0, %v5359
      %v5361 = vrcp.pop %v5307
      %v5362 = vmul.f32 1.0, %v5361
      %v5363 = vrcp.pop %v5308
      %v5364 = vmul.f32 1.0, %v5363
      %v5365 = vrcp.pop %v5309
      %v5366 = vmul.f32 1.0, %v5365
      %v5367 = vrcp.pop %v5310
      %v5368 = vmul.f32 1.0, %v5367
      %v5369 = vrcp.pop %v5311
      %v5370 = vmul.f32 1.0, %v5369
      %v5371 = vrcp.pop %v5312
      %v5372 = vmul.f32 1.0, %v5371
      %v5373 = vrcp.pop %v5313
      %v5374 = vmul.f32 1.0, %v5373
      %v5375 = vrcp.pop %v5314
      %v5376 = vmul.f32 1.0, %v5375
      %v5377 = vrcp.pop %v5315
      %v5378 = vmul.f32 1.0, %v5377
      %v5379 = vrcp.pop %v5316
      %v5380 = vmul.f32 1.0, %v5379
      %5413 = vrot.lane.b32.xlu0 %v5318, 124
      %v5414 = vpop.permute.xlu0 %5413
      %5415 = vrot.lane.b32.xlu0 %v5320, 124
      %v5416 = vpop.permute.xlu0 %5415
      %5417 = vrot.lane.b32.xlu0 %v5322, 124
      %v5418 = vpop.permute.xlu0 %5417
      %5419 = vrot.lane.b32.xlu0 %v5324, 124
      %v5420 = vpop.permute.xlu0 %5419
      %5421 = vrot.lane.b32.xlu0 %v5326, 124
      %v5422 = vpop.permute.xlu0 %5421
      %5423 = vrot.lane.b32.xlu0 %v5328, 124
      %v5424 = vpop.permute.xlu0 %5423
      %5425 = vrot.lane.b32.xlu0 %v5330, 124
      %v5426 = vpop.permute.xlu0 %5425
      %5427 = vrot.lane.b32.xlu0 %v5332, 124
      %v5428 = vpop.permute.xlu0 %5427
      %5429 = vrot.lane.b32.xlu0 %v5334, 124
      %v5430 = vpop.permute.xlu0 %5429
      %5431 = vrot.lane.b32.xlu0 %v5336, 124
      %v5432 = vpop.permute.xlu0 %5431
      %5433 = vrot.lane.b32.xlu0 %v5338, 124
      %v5434 = vpop.permute.xlu0 %5433
      %5435 = vrot.lane.b32.xlu0 %v5340, 124
      %v5436 = vpop.permute.xlu0 %5435
      %5437 = vrot.lane.b32.xlu0 %v5342, 124
      %v5438 = vpop.permute.xlu0 %5437
      %5439 = vrot.lane.b32.xlu0 %v5344, 124
      %v5440 = vpop.permute.xlu0 %5439
      %5441 = vrot.lane.b32.xlu0 %v5346, 124
      %v5442 = vpop.permute.xlu0 %5441
      %5443 = vrot.lane.b32.xlu0 %v5348, 124
      %v5444 = vpop.permute.xlu0 %5443
      %5445 = vrot.lane.b32.xlu0 %v5350, 124
      %v5446 = vpop.permute.xlu0 %5445
      %5447 = vrot.lane.b32.xlu0 %v5352, 124
      %v5448 = vpop.permute.xlu0 %5447
      %5449 = vrot.lane.b32.xlu0 %v5354, 124
      %v5450 = vpop.permute.xlu0 %5449
      %5451 = vrot.lane.b32.xlu0 %v5356, 124
      %v5452 = vpop.permute.xlu0 %5451
      %5453 = vrot.lane.b32.xlu0 %v5358, 124
      %v5454 = vpop.permute.xlu0 %5453
      %5455 = vrot.lane.b32.xlu0 %v5360, 124
      %v5456 = vpop.permute.xlu0 %5455
      %5457 = vrot.lane.b32.xlu0 %v5362, 124
      %v5458 = vpop.permute.xlu0 %5457
      %5459 = vrot.lane.b32.xlu0 %v5364, 124
      %v5460 = vpop.permute.xlu0 %5459
      %5461 = vrot.lane.b32.xlu0 %v5366, 124
      %v5462 = vpop.permute.xlu0 %5461
      %5463 = vrot.lane.b32.xlu0 %v5368, 124
      %v5464 = vpop.permute.xlu0 %5463
      %5465 = vrot.lane.b32.xlu0 %v5370, 124
      %v5466 = vpop.permute.xlu0 %5465
      %5467 = vrot.lane.b32.xlu0 %v5372, 124
      %v5468 = vpop.permute.xlu0 %5467
      %5469 = vrot.lane.b32.xlu0 %v5374, 124
      %v5470 = vpop.permute.xlu0 %5469
      %5471 = vrot.lane.b32.xlu0 %v5376, 124
      %v5472 = vpop.permute.xlu0 %5471
      %5473 = vrot.lane.b32.xlu0 %v5378, 124
      %v5474 = vpop.permute.xlu0 %5473
      %5475 = vrot.lane.b32.xlu0 %v5380, 124
      %v5476 = vpop.permute.xlu0 %5475
      %v5509 = vmul.f32 %v2813, %v5414
      %v5510 = vmul.f32 %v2814, %v5416
      %v5511 = vmul.f32 %v2815, %v5418
      %v5512 = vmul.f32 %v2816, %v5420
      %v5513 = vmul.f32 %v2817, %v5422
      %v5514 = vmul.f32 %v2818, %v5424
      %v5515 = vmul.f32 %v2819, %v5426
      %v5516 = vmul.f32 %v2820, %v5428
      %v5517 = vmul.f32 %v2821, %v5430
      %v5518 = vmul.f32 %v2822, %v5432
      %v5519 = vmul.f32 %v2823, %v5434
      %v5520 = vmul.f32 %v2824, %v5436
      %v5521 = vmul.f32 %v2825, %v5438
      %v5522 = vmul.f32 %v2826, %v5440
      %v5523 = vmul.f32 %v2827, %v5442
      %v5524 = vmul.f32 %v2828, %v5444
      %v5525 = vmul.f32 %v2829, %v5446
      %v5526 = vmul.f32 %v2830, %v5448
      %v5527 = vmul.f32 %v2831, %v5450
      %v5528 = vmul.f32 %v2832, %v5452
      %v5529 = vmul.f32 %v2833, %v5454
      %v5530 = vmul.f32 %v2834, %v5456
      %v5531 = vmul.f32 %v2835, %v5458
      %v5532 = vmul.f32 %v2836, %v5460
      %v5533 = vmul.f32 %v2837, %v5462
      %v5534 = vmul.f32 %v2838, %v5464
      %v5535 = vmul.f32 %v2839, %v5466
      %v5536 = vmul.f32 %v2840, %v5468
      %v5537 = vmul.f32 %v2841, %v5470
      %v5538 = vmul.f32 %v2842, %v5472
      %v5539 = vmul.f32 %v2843, %v5474
      %v5540 = vmul.f32 %v2844, %v5476
      %v5541 = vxor.u32 %v2813, 2147483648
      %v5542 = vxor.u32 %v2814, 2147483648
      %v5543 = vxor.u32 %v2815, 2147483648
      %v5544 = vxor.u32 %v2816, 2147483648
      %v5545 = vxor.u32 %v2817, 2147483648
      %v5546 = vxor.u32 %v2818, 2147483648
      %v5547 = vxor.u32 %v2819, 2147483648
      %v5548 = vxor.u32 %v2820, 2147483648
      %v5549 = vxor.u32 %v2821, 2147483648
      %v5550 = vxor.u32 %v2822, 2147483648
      %v5551 = vxor.u32 %v2823, 2147483648
      %v5552 = vxor.u32 %v2824, 2147483648
      %v5553 = vxor.u32 %v2825, 2147483648
      %v5554 = vxor.u32 %v2826, 2147483648
      %v5555 = vxor.u32 %v2827, 2147483648
      %v5556 = vxor.u32 %v2828, 2147483648
      %v5557 = vxor.u32 %v2829, 2147483648
      %v5558 = vxor.u32 %v2830, 2147483648
      %v5559 = vxor.u32 %v2831, 2147483648
      %v5560 = vxor.u32 %v2832, 2147483648
      %v5561 = vxor.u32 %v2833, 2147483648
      %v5562 = vxor.u32 %v2834, 2147483648
      %v5563 = vxor.u32 %v2835, 2147483648
      %v5564 = vxor.u32 %v2836, 2147483648
      %v5565 = vxor.u32 %v2837, 2147483648
      %v5566 = vxor.u32 %v2838, 2147483648
      %v5567 = vxor.u32 %v2839, 2147483648
      %v5568 = vxor.u32 %v2840, 2147483648
      %v5569 = vxor.u32 %v2841, 2147483648
      %v5570 = vxor.u32 %v2842, 2147483648
      %v5571 = vxor.u32 %v2843, 2147483648
      %v5572 = vxor.u32 %v2844, 2147483648
      %v5573 = vmul.f32 %v5541, 1.442695
      %v5574 = vpow.pop %v5573
      %v5575 = vmul.f32 %v5542, 1.442695
      %v5576 = vpow.pop %v5575
      %v5577 = vmul.f32 %v5543, 1.442695
      %v5578 = vpow.pop %v5577
      %v5579 = vmul.f32 %v5544, 1.442695
      %v5580 = vpow.pop %v5579
      %v5581 = vmul.f32 %v5545, 1.442695
      %v5582 = vpow.pop %v5581
      %v5583 = vmul.f32 %v5546, 1.442695
      %v5584 = vpow.pop %v5583
      %v5585 = vmul.f32 %v5547, 1.442695
      %v5586 = vpow.pop %v5585
      %v5587 = vmul.f32 %v5548, 1.442695
      %v5588 = vpow.pop %v5587
      %v5589 = vmul.f32 %v5549, 1.442695
      %v5590 = vpow.pop %v5589
      %v5591 = vmul.f32 %v5550, 1.442695
      %v5592 = vpow.pop %v5591
      %v5593 = vmul.f32 %v5551, 1.442695
      %v5594 = vpow.pop %v5593
      %v5595 = vmul.f32 %v5552, 1.442695
      %v5596 = vpow.pop %v5595
      %v5597 = vmul.f32 %v5553, 1.442695
      %v5598 = vpow.pop %v5597
      %v5599 = vmul.f32 %v5554, 1.442695
      %v5600 = vpow.pop %v5599
      %v5601 = vmul.f32 %v5555, 1.442695
      %v5602 = vpow.pop %v5601
      %v5603 = vmul.f32 %v5556, 1.442695
      %v5604 = vpow.pop %v5603
      %v5605 = vmul.f32 %v5557, 1.442695
      %v5606 = vpow.pop %v5605
      %v5607 = vmul.f32 %v5558, 1.442695
      %v5608 = vpow.pop %v5607
      %v5609 = vmul.f32 %v5559, 1.442695
      %v5610 = vpow.pop %v5609
      %v5611 = vmul.f32 %v5560, 1.442695
      %v5612 = vpow.pop %v5611
      %v5613 = vmul.f32 %v5561, 1.442695
      %v5614 = vpow.pop %v5613
      %v5615 = vmul.f32 %v5562, 1.442695
      %v5616 = vpow.pop %v5615
      %v5617 = vmul.f32 %v5563, 1.442695
      %v5618 = vpow.pop %v5617
      %v5619 = vmul.f32 %v5564, 1.442695
      %v5620 = vpow.pop %v5619
      %v5621 = vmul.f32 %v5565, 1.442695
      %v5622 = vpow.pop %v5621
      %v5623 = vmul.f32 %v5566, 1.442695
      %v5624 = vpow.pop %v5623
      %v5625 = vmul.f32 %v5567, 1.442695
      %v5626 = vpow.pop %v5625
      %v5627 = vmul.f32 %v5568, 1.442695
      %v5628 = vpow.pop %v5627
      %v5629 = vmul.f32 %v5569, 1.442695
      %v5630 = vpow.pop %v5629
      %v5631 = vmul.f32 %v5570, 1.442695
      %v5632 = vpow.pop %v5631
      %v5633 = vmul.f32 %v5571, 1.442695
      %v5634 = vpow.pop %v5633
      %v5635 = vmul.f32 %v5572, 1.442695
      %v5636 = vpow.pop %v5635
      %v5637 = vadd.f32 %v5574, 1.0
      %v5638 = vadd.f32 %v5576, 1.0
      %v5639 = vadd.f32 %v5578, 1.0
      %v5640 = vadd.f32 %v5580, 1.0
      %v5641 = vadd.f32 %v5582, 1.0
      %v5642 = vadd.f32 %v5584, 1.0
      %v5643 = vadd.f32 %v5586, 1.0
      %v5644 = vadd.f32 %v5588, 1.0
      %v5645 = vadd.f32 %v5590, 1.0
      %v5646 = vadd.f32 %v5592, 1.0
      %v5647 = vadd.f32 %v5594, 1.0
      %v5648 = vadd.f32 %v5596, 1.0
      %v5649 = vadd.f32 %v5598, 1.0
      %v5650 = vadd.f32 %v5600, 1.0
      %v5651 = vadd.f32 %v5602, 1.0
      %v5652 = vadd.f32 %v5604, 1.0
      %v5653 = vadd.f32 %v5606, 1.0
      %v5654 = vadd.f32 %v5608, 1.0
      %v5655 = vadd.f32 %v5610, 1.0
      %v5656 = vadd.f32 %v5612, 1.0
      %v5657 = vadd.f32 %v5614, 1.0
      %v5658 = vadd.f32 %v5616, 1.0
      %v5659 = vadd.f32 %v5618, 1.0
      %v5660 = vadd.f32 %v5620, 1.0
      %v5661 = vadd.f32 %v5622, 1.0
      %v5662 = vadd.f32 %v5624, 1.0
      %v5663 = vadd.f32 %v5626, 1.0
      %v5664 = vadd.f32 %v5628, 1.0
      %v5665 = vadd.f32 %v5630, 1.0
      %v5666 = vadd.f32 %v5632, 1.0
      %v5667 = vadd.f32 %v5634, 1.0
      %v5668 = vadd.f32 %v5636, 1.0
      %v5669 = vrcp.pop %v5637
      %v5670 = vmul.f32 1.0, %v5669
      %v5671 = vrcp.pop %v5638
      %v5672 = vmul.f32 1.0, %v5671
      %v5673 = vrcp.pop %v5639
      %v5674 = vmul.f32 1.0, %v5673
      %v5675 = vrcp.pop %v5640
      %v5676 = vmul.f32 1.0, %v5675
      %v5677 = vrcp.pop %v5641
      %v5678 = vmul.f32 1.0, %v5677
      %v5679 = vrcp.pop %v5642
      %v5680 = vmul.f32 1.0, %v5679
      %v5681 = vrcp.pop %v5643
      %v5682 = vmul.f32 1.0, %v5681
      %v5683 = vrcp.pop %v5644
      %v5684 = vmul.f32 1.0, %v5683
      %v5685 = vrcp.pop %v5645
      %v5686 = vmul.f32 1.0, %v5685
      %v5687 = vrcp.pop %v5646
      %v5688 = vmul.f32 1.0, %v5687
      %v5689 = vrcp.pop %v5647
      %v5690 = vmul.f32 1.0, %v5689
      %v5691 = vrcp.pop %v5648
      %v5692 = vmul.f32 1.0, %v5691
      %v5693 = vrcp.pop %v5649
      %v5694 = vmul.f32 1.0, %v5693
      %v5695 = vrcp.pop %v5650
      %v5696 = vmul.f32 1.0, %v5695
      %v5697 = vrcp.pop %v5651
      %v5698 = vmul.f32 1.0, %v5697
      %v5699 = vrcp.pop %v5652
      %v5700 = vmul.f32 1.0, %v5699
      %v5701 = vrcp.pop %v5653
      %v5702 = vmul.f32 1.0, %v5701
      %v5703 = vrcp.pop %v5654
      %v5704 = vmul.f32 1.0, %v5703
      %v5705 = vrcp.pop %v5655
      %v5706 = vmul.f32 1.0, %v5705
      %v5707 = vrcp.pop %v5656
      %v5708 = vmul.f32 1.0, %v5707
      %v5709 = vrcp.pop %v5657
      %v5710 = vmul.f32 1.0, %v5709
      %v5711 = vrcp.pop %v5658
      %v5712 = vmul.f32 1.0, %v5711
      %v5713 = vrcp.pop %v5659
      %v5714 = vmul.f32 1.0, %v5713
      %v5715 = vrcp.pop %v5660
      %v5716 = vmul.f32 1.0, %v5715
      %v5717 = vrcp.pop %v5661
      %v5718 = vmul.f32 1.0, %v5717
      %v5719 = vrcp.pop %v5662
      %v5720 = vmul.f32 1.0, %v5719
      %v5721 = vrcp.pop %v5663
      %v5722 = vmul.f32 1.0, %v5721
      %v5723 = vrcp.pop %v5664
      %v5724 = vmul.f32 1.0, %v5723
      %v5725 = vrcp.pop %v5665
      %v5726 = vmul.f32 1.0, %v5725
      %v5727 = vrcp.pop %v5666
      %v5728 = vmul.f32 1.0, %v5727
      %v5729 = vrcp.pop %v5667
      %v5730 = vmul.f32 1.0, %v5729
      %v5731 = vrcp.pop %v5668
      %v5732 = vmul.f32 1.0, %v5731
      %5765 = vrot.lane.b32.xlu0 %v5670, 124
      %v5766 = vpop.permute.xlu0 %5765
      %5767 = vrot.lane.b32.xlu0 %v5672, 124
      %v5768 = vpop.permute.xlu0 %5767
      %5769 = vrot.lane.b32.xlu0 %v5674, 124
      %v5770 = vpop.permute.xlu0 %5769
      %5771 = vrot.lane.b32.xlu0 %v5676, 124
      %v5772 = vpop.permute.xlu0 %5771
      %5773 = vrot.lane.b32.xlu0 %v5678, 124
      %v5774 = vpop.permute.xlu0 %5773
      %5775 = vrot.lane.b32.xlu0 %v5680, 124
      %v5776 = vpop.permute.xlu0 %5775
      %5777 = vrot.lane.b32.xlu0 %v5682, 124
      %v5778 = vpop.permute.xlu0 %5777
      %5779 = vrot.lane.b32.xlu0 %v5684, 124
      %v5780 = vpop.permute.xlu0 %5779
      %5781 = vrot.lane.b32.xlu0 %v5686, 124
      %v5782 = vpop.permute.xlu0 %5781
      %5783 = vrot.lane.b32.xlu0 %v5688, 124
      %v5784 = vpop.permute.xlu0 %5783
      %5785 = vrot.lane.b32.xlu0 %v5690, 124
      %v5786 = vpop.permute.xlu0 %5785
      %5787 = vrot.lane.b32.xlu0 %v5692, 124
      %v5788 = vpop.permute.xlu0 %5787
      %5789 = vrot.lane.b32.xlu0 %v5694, 124
      %v5790 = vpop.permute.xlu0 %5789
      %5791 = vrot.lane.b32.xlu0 %v5696, 124
      %v5792 = vpop.permute.xlu0 %5791
      %5793 = vrot.lane.b32.xlu0 %v5698, 124
      %v5794 = vpop.permute.xlu0 %5793
      %5795 = vrot.lane.b32.xlu0 %v5700, 124
      %v5796 = vpop.permute.xlu0 %5795
      %5797 = vrot.lane.b32.xlu0 %v5702, 124
      %v5798 = vpop.permute.xlu0 %5797
      %5799 = vrot.lane.b32.xlu0 %v5704, 124
      %v5800 = vpop.permute.xlu0 %5799
      %5801 = vrot.lane.b32.xlu0 %v5706, 124
      %v5802 = vpop.permute.xlu0 %5801
      %5803 = vrot.lane.b32.xlu0 %v5708, 124
      %v5804 = vpop.permute.xlu0 %5803
      %5805 = vrot.lane.b32.xlu0 %v5710, 124
      %v5806 = vpop.permute.xlu0 %5805
      %5807 = vrot.lane.b32.xlu0 %v5712, 124
      %v5808 = vpop.permute.xlu0 %5807
      %5809 = vrot.lane.b32.xlu0 %v5714, 124
      %v5810 = vpop.permute.xlu0 %5809
      %5811 = vrot.lane.b32.xlu0 %v5716, 124
      %v5812 = vpop.permute.xlu0 %5811
      %5813 = vrot.lane.b32.xlu0 %v5718, 124
      %v5814 = vpop.permute.xlu0 %5813
      %5815 = vrot.lane.b32.xlu0 %v5720, 124
      %v5816 = vpop.permute.xlu0 %5815
      %5817 = vrot.lane.b32.xlu0 %v5722, 124
      %v5818 = vpop.permute.xlu0 %5817
      %5819 = vrot.lane.b32.xlu0 %v5724, 124
      %v5820 = vpop.permute.xlu0 %5819
      %5821 = vrot.lane.b32.xlu0 %v5726, 124
      %v5822 = vpop.permute.xlu0 %5821
      %5823 = vrot.lane.b32.xlu0 %v5728, 124
      %v5824 = vpop.permute.xlu0 %5823
      %5825 = vrot.lane.b32.xlu0 %v5730, 124
      %v5826 = vpop.permute.xlu0 %5825
      %5827 = vrot.lane.b32.xlu0 %v5732, 124
      %v5828 = vpop.permute.xlu0 %5827
      %v5861 = vmul.f32 %v5157, %v5766
      %v5862 = vmul.f32 %v5158, %v5768
      %v5863 = vmul.f32 %v5159, %v5770
      %v5864 = vmul.f32 %v5160, %v5772
      %v5865 = vmul.f32 %v5161, %v5774
      %v5866 = vmul.f32 %v5162, %v5776
      %v5867 = vmul.f32 %v5163, %v5778
      %v5868 = vmul.f32 %v5164, %v5780
      %v5869 = vmul.f32 %v5165, %v5782
      %v5870 = vmul.f32 %v5166, %v5784
      %v5871 = vmul.f32 %v5167, %v5786
      %v5872 = vmul.f32 %v5168, %v5788
      %v5873 = vmul.f32 %v5169, %v5790
      %v5874 = vmul.f32 %v5170, %v5792
      %v5875 = vmul.f32 %v5171, %v5794
      %v5876 = vmul.f32 %v5172, %v5796
      %v5877 = vmul.f32 %v5173, %v5798
      %v5878 = vmul.f32 %v5174, %v5800
      %v5879 = vmul.f32 %v5175, %v5802
      %v5880 = vmul.f32 %v5176, %v5804
      %v5881 = vmul.f32 %v5177, %v5806
      %v5882 = vmul.f32 %v5178, %v5808
      %v5883 = vmul.f32 %v5179, %v5810
      %v5884 = vmul.f32 %v5180, %v5812
      %v5885 = vmul.f32 %v5181, %v5814
      %v5886 = vmul.f32 %v5182, %v5816
      %v5887 = vmul.f32 %v5183, %v5818
      %v5888 = vmul.f32 %v5184, %v5820
      %v5889 = vmul.f32 %v5185, %v5822
      %v5890 = vmul.f32 %v5186, %v5824
      %v5891 = vmul.f32 %v5187, %v5826
      %v5892 = vmul.f32 %v5188, %v5828
      %v5893 = vadd.f32 %v291, %v5509
      %v5894 = vadd.f32 %v292, %v5510
      %v5895 = vadd.f32 %v293, %v5511
      %v5896 = vadd.f32 %v294, %v5512
      %v5897 = vadd.f32 %v295, %v5513
      %v5898 = vadd.f32 %v296, %v5514
      %v5899 = vadd.f32 %v297, %v5515
      %v5900 = vadd.f32 %v298, %v5516
      %v5901 = vadd.f32 %v299, %v5517
      %v5902 = vadd.f32 %v300, %v5518
      %v5903 = vadd.f32 %v301, %v5519
      %v5904 = vadd.f32 %v302, %v5520
      %v5905 = vadd.f32 %v303, %v5521
      %v5906 = vadd.f32 %v304, %v5522
      %v5907 = vadd.f32 %v305, %v5523
      %v5908 = vadd.f32 %v306, %v5524
      %v5909 = vadd.f32 %v307, %v5525
      %v5910 = vadd.f32 %v308, %v5526
      %v5911 = vadd.f32 %v309, %v5527
      %v5912 = vadd.f32 %v310, %v5528
      %v5913 = vadd.f32 %v311, %v5529
      %v5914 = vadd.f32 %v312, %v5530
      %v5915 = vadd.f32 %v313, %v5531
      %v5916 = vadd.f32 %v314, %v5532
      %v5917 = vadd.f32 %v315, %v5533
      %v5918 = vadd.f32 %v316, %v5534
      %v5919 = vadd.f32 %v317, %v5535
      %v5920 = vadd.f32 %v318, %v5536
      %v5921 = vadd.f32 %v319, %v5537
      %v5922 = vadd.f32 %v320, %v5538
      %v5923 = vadd.f32 %v321, %v5539
      %v5924 = vadd.f32 %v322, %v5540
      %5925 = vst.msk [vmem:[%s252] sm:$0xff] %vm497, %v5893
      %5926 = vst.msk [vmem:[%s252 + $0x8] sm:$0xff] %vm497, %v5894
      %5927 = vst.msk [vmem:[%s252 + $0x10] sm:$0xff] %vm497, %v5895
      %5928 = vst.msk [vmem:[%s252 + $0x18] sm:$0xff] %vm497, %v5896
      %5929 = vst.msk [vmem:[%s252 + $0x20] sm:$0xff] %vm497, %v5897
      %5930 = vst.msk [vmem:[%s252 + $0x28] sm:$0xff] %vm497, %v5898
      %5931 = vst.msk [vmem:[%s252 + $0x30] sm:$0xff] %vm497, %v5899
      %5932 = vst.msk [vmem:[%s252 + $0x38] sm:$0xff] %vm497, %v5900
      %5933 = vst.msk [vmem:[%s252 + $0x40] sm:$0xff] %vm497, %v5901
      %5934 = vst.msk [vmem:[%s252 + $0x48] sm:$0xff] %vm497, %v5902
      %5935 = vst.msk [vmem:[%s252 + $0x50] sm:$0xff] %vm497, %v5903
      %5936 = vst.msk [vmem:[%s252 + $0x58] sm:$0xff] %vm497, %v5904
      %5937 = vst.msk [vmem:[%s252 + $0x60] sm:$0xff] %vm497, %v5905
      %5938 = vst.msk [vmem:[%s252 + $0x68] sm:$0xff] %vm497, %v5906
      %5939 = vst.msk [vmem:[%s252 + $0x70] sm:$0xff] %vm497, %v5907
      %5940 = vst.msk [vmem:[%s252 + $0x78] sm:$0xff] %vm497, %v5908
      %5941 = vst.msk [vmem:[%s252 + $0x80] sm:$0xff] %vm497, %v5909
      %5942 = vst.msk [vmem:[%s252 + $0x88] sm:$0xff] %vm497, %v5910
      %5943 = vst.msk [vmem:[%s252 + $0x90] sm:$0xff] %vm497, %v5911
      %5944 = vst.msk [vmem:[%s252 + $0x98] sm:$0xff] %vm497, %v5912
      %5945 = vst.msk [vmem:[%s252 + $0xa0] sm:$0xff] %vm497, %v5913
      %5946 = vst.msk [vmem:[%s252 + $0xa8] sm:$0xff] %vm497, %v5914
      %5947 = vst.msk [vmem:[%s252 + $0xb0] sm:$0xff] %vm497, %v5915
      %5948 = vst.msk [vmem:[%s252 + $0xb8] sm:$0xff] %vm497, %v5916
      %5949 = vst.msk [vmem:[%s252 + $0xc0] sm:$0xff] %vm497, %v5917
      %5950 = vst.msk [vmem:[%s252 + $0xc8] sm:$0xff] %vm497, %v5918
      %5951 = vst.msk [vmem:[%s252 + $0xd0] sm:$0xff] %vm497, %v5919
      %5952 = vst.msk [vmem:[%s252 + $0xd8] sm:$0xff] %vm497, %v5920
      %5953 = vst.msk [vmem:[%s252 + $0xe0] sm:$0xff] %vm497, %v5921
      %5954 = vst.msk [vmem:[%s252 + $0xe8] sm:$0xff] %vm497, %v5922
      %5955 = vst.msk [vmem:[%s252 + $0xf0] sm:$0xff] %vm497, %v5923
      %5956 = vst.msk [vmem:[%s252 + $0xf8] sm:$0xff] %vm497, %v5924
      %v5957 = vadd.f32 %v355, %v5861
      %v5958 = vadd.f32 %v356, %v5862
      %v5959 = vadd.f32 %v357, %v5863
      %v5960 = vadd.f32 %v358, %v5864
      %v5961 = vadd.f32 %v359, %v5865
      %v5962 = vadd.f32 %v360, %v5866
      %v5963 = vadd.f32 %v361, %v5867
      %v5964 = vadd.f32 %v362, %v5868
      %v5965 = vadd.f32 %v363, %v5869
      %v5966 = vadd.f32 %v364, %v5870
      %v5967 = vadd.f32 %v365, %v5871
      %v5968 = vadd.f32 %v366, %v5872
      %v5969 = vadd.f32 %v367, %v5873
      %v5970 = vadd.f32 %v368, %v5874
      %v5971 = vadd.f32 %v369, %v5875
      %v5972 = vadd.f32 %v370, %v5876
      %v5973 = vadd.f32 %v371, %v5877
      %v5974 = vadd.f32 %v372, %v5878
      %v5975 = vadd.f32 %v373, %v5879
      %v5976 = vadd.f32 %v374, %v5880
      %v5977 = vadd.f32 %v375, %v5881
      %v5978 = vadd.f32 %v376, %v5882
      %v5979 = vadd.f32 %v377, %v5883
      %v5980 = vadd.f32 %v378, %v5884
      %v5981 = vadd.f32 %v379, %v5885
      %v5982 = vadd.f32 %v380, %v5886
      %v5983 = vadd.f32 %v381, %v5887
      %v5984 = vadd.f32 %v382, %v5888
      %v5985 = vadd.f32 %v383, %v5889
      %v5986 = vadd.f32 %v384, %v5890
      %v5987 = vadd.f32 %v385, %v5891
      %v5988 = vadd.f32 %v386, %v5892
      %5989 = vst.msk [vmem:[%s257] sm:$0xff] %vm497, %v5957
      %5990 = vst.msk [vmem:[%s257 + $0x8] sm:$0xff] %vm497, %v5958
      %5991 = vst.msk [vmem:[%s257 + $0x10] sm:$0xff] %vm497, %v5959
      %5992 = vst.msk [vmem:[%s257 + $0x18] sm:$0xff] %vm497, %v5960
      %5993 = vst.msk [vmem:[%s257 + $0x20] sm:$0xff] %vm497, %v5961
      %5994 = vst.msk [vmem:[%s257 + $0x28] sm:$0xff] %vm497, %v5962
      %5995 = vst.msk [vmem:[%s257 + $0x30] sm:$0xff] %vm497, %v5963
      %5996 = vst.msk [vmem:[%s257 + $0x38] sm:$0xff] %vm497, %v5964
      %5997 = vst.msk [vmem:[%s257 + $0x40] sm:$0xff] %vm497, %v5965
      %5998 = vst.msk [vmem:[%s257 + $0x48] sm:$0xff] %vm497, %v5966
      %5999 = vst.msk [vmem:[%s257 + $0x50] sm:$0xff] %vm497, %v5967
      %6000 = vst.msk [vmem:[%s257 + $0x58] sm:$0xff] %vm497, %v5968
      %6001 = vst.msk [vmem:[%s257 + $0x60] sm:$0xff] %vm497, %v5969
      %6002 = vst.msk [vmem:[%s257 + $0x68] sm:$0xff] %vm497, %v5970
      %6003 = vst.msk [vmem:[%s257 + $0x70] sm:$0xff] %vm497, %v5971
      %6004 = vst.msk [vmem:[%s257 + $0x78] sm:$0xff] %vm497, %v5972
      %6005 = vst.msk [vmem:[%s257 + $0x80] sm:$0xff] %vm497, %v5973
      %6006 = vst.msk [vmem:[%s257 + $0x88] sm:$0xff] %vm497, %v5974
      %6007 = vst.msk [vmem:[%s257 + $0x90] sm:$0xff] %vm497, %v5975
      %6008 = vst.msk [vmem:[%s257 + $0x98] sm:$0xff] %vm497, %v5976
      %6009 = vst.msk [vmem:[%s257 + $0xa0] sm:$0xff] %vm497, %v5977
      %6010 = vst.msk [vmem:[%s257 + $0xa8] sm:$0xff] %vm497, %v5978
      %6011 = vst.msk [vmem:[%s257 + $0xb0] sm:$0xff] %vm497, %v5979
      %6012 = vst.msk [vmem:[%s257 + $0xb8] sm:$0xff] %vm497, %v5980
      %6013 = vst.msk [vmem:[%s257 + $0xc0] sm:$0xff] %vm497, %v5981
      %6014 = vst.msk [vmem:[%s257 + $0xc8] sm:$0xff] %vm497, %v5982
      %6015 = vst.msk [vmem:[%s257 + $0xd0] sm:$0xff] %vm497, %v5983
      %6016 = vst.msk [vmem:[%s257 + $0xd8] sm:$0xff] %vm497, %v5984
      %6017 = vst.msk [vmem:[%s257 + $0xe0] sm:$0xff] %vm497, %v5985
      %6018 = vst.msk [vmem:[%s257 + $0xe8] sm:$0xff] %vm497, %v5986
      %6019 = vst.msk [vmem:[%s257 + $0xf0] sm:$0xff] %vm497, %v5987
      %6020 = vst.msk [vmem:[%s257 + $0xf8] sm:$0xff] %vm497, %v5988
      %p6021 = scmp.lt.s32.totalorder %s17, 1
      %s6022 = scalar_select %p6021, %s17, 1
      %s6023 = smul.addr %s6022, 32
      %s6024 = smul.addr %s6023, 8
      %s6025 = scalar_lea.vmem %s4, %s6024
      %p6026 = scmp.lt.s32.totalorder %s17, 1
      %s6027 = scalar_select %p6026, %s17, 1
      %s6028 = smul.addr %s6027, 32
      %s6029 = smul.addr %s6028, 8
      %s6030 = scalar_lea.vmem %s5, %s6029
      // Predicated region
      $region37: #{multi_task_distillation.1} parent=35 // pred_check
        %p6031 = pneg %p129
      $region38: #{multi_task_distillation.1} parent=35 // pred_check_branch
        %6033 = sbr.rel (%p6031) target = $region40
      $region39: #{multi_task_distillation.1} parent=35 // pred_region
        _
      $region40: #{multi_task_distillation.1} parent=35 // pred_fallthru
        _
      // Predicated region
      $region41: #{multi_task_distillation.1} parent=35 // pred_check
        %p6034 = pneg %p155
      $region42: #{multi_task_distillation.1} parent=35 // pred_check_branch
        %6036 = sbr.rel (%p6034) target = $region44
      $region43: #{multi_task_distillation.1} parent=35 // pred_region
        _
      $region44: #{multi_task_distillation.1} parent=35 // pred_fallthru
        _
    $region36: #{multi_task_distillation.1} parent=5 // pred_fallthru
      _
    %p6037 = scmp.le.s32.totalorder 2, %s12
    // Predicated region
    $region45: #{multi_task_distillation.1} parent=5 // pred_check
      %p6038 = pneg %p6037
    $region46: #{multi_task_distillation.1} parent=5 // pred_check_branch
      %6040 = sbr.rel (%p6038) target = $region48
    $region47: #{multi_task_distillation.1} parent=5 // pred_region
      %s6041 = ssub.s32 %s12, 2
      // Predicated region
      $region49: #{multi_task_distillation.1} parent=47 // pred_check
        %p6042 = pneg %p135
      $region50: #{multi_task_distillation.1} parent=47 // pred_check_branch
        %6044 = sbr.rel (%p6042) target = $region52
      $region51: #{multi_task_distillation.1} parent=47 // pred_region
        %p6045 = scmp.lt.s32.totalorder %s18, 1
        %s6046 = scalar_select %p6045, %s18, 1
        %s6047 = smul.addr %s6046, 32
        %s6048 = smul.addr %s6047, 8
        %s6049 = scalar_lea.vmem %s4, %s6048
      $region52: #{multi_task_distillation.1} parent=47 // pred_fallthru
        _
      // Predicated region
      $region53: #{multi_task_distillation.1} parent=47 // pred_check
        %p6050 = pneg %p161
      $region54: #{multi_task_distillation.1} parent=47 // pred_check_branch
        %6052 = sbr.rel (%p6050) target = $region56
      $region55: #{multi_task_distillation.1} parent=47 // pred_region
        %p6053 = scmp.lt.s32.totalorder %s18, 1
        %s6054 = scalar_select %p6053, %s18, 1
        %s6055 = smul.addr %s6054, 32
        %s6056 = smul.addr %s6055, 8
        %s6057 = scalar_lea.vmem %s5, %s6056
      $region56: #{multi_task_distillation.1} parent=47 // pred_fallthru
        _
    $region48: #{multi_task_distillation.1} parent=5 // pred_fallthru
      _
  $region6: #{multi_task_distillation.1} parent=0 // loop_footer
    %s16 = sadd.s32 1, %s12
  $region7: #{multi_task_distillation.1} parent=0 // loop_footer_branch
    %11 = sbr.rel target = $region3
  $region8: #{multi_task_distillation.1} parent=0 // loop_exit
    _

</llo_original>
